<compile_context>
chip_gen: v6e
topology: v6e:2x2x1
jax: 0.10.0
libtpu: 0.0.40
codegen_flags: <defaults>
</compile_context>

<pallas_src>
import functools

import jax
import jax.numpy as jnp
from jax.experimental import pallas as pl
from jax.experimental.pallas import tpu as pltpu

EPS = 1e-5


def _round_up(x, m):
    return (x + m - 1) // m * m


# ----------------------------------------------------------------------------
# Fused trident-block kernel (one grid step == one batch image)
# ----------------------------------------------------------------------------
def _trident_kernel(x_ref, w1_ref, b1_ref, w2_ref, b2_ref, w3_ref, b3_ref,
                    o_ref, hpad_ref, *, H, W, d, off):
    Cin = x_ref.shape[-1]
    P = w1_ref.shape[-1]
    HW = H * W
    DW = d * W
    tail = DW + d                       # rows read past the interior by the last tap

    # ---- conv1x1 -> (BN folded into w1/b1) -> ReLU; bf16 MXU, f32 accumulate --
    xb = x_ref[...].reshape(HW, Cin).astype(jnp.bfloat16)
    h1 = jnp.dot(xb, w1_ref[...], preferred_element_type=jnp.float32)
    h1 = jnp.maximum(h1 + b1_ref[...], 0.0).astype(jnp.bfloat16)

    # ---- stage h1 into a row-padded flat buffer (zero only the borders) -------
    hpad_ref[0:off, :] = jnp.zeros((off, P), jnp.bfloat16)
    hpad_ref[off + HW:off + HW + tail, :] = jnp.zeros((tail, P), jnp.bfloat16)
    hpad_ref[off:off + HW, :] = h1

    # ---- conv3x3(dilated) as 9 accumulating matmuls over shifted flat views ---
    # Row (y) shift is absorbed by the padded rows; the column (x) shift is a
    # flat-index shift whose row-wrapped entries are zeroed with an iota mask.
    col = jax.lax.broadcasted_iota(jnp.int32, (HW, 1), 0) % W
    left_ok = col >= d                  # valid positions when column shift is -d
    right_ok = col < (W - d)            # valid positions when column shift is +d
    acc = jnp.zeros((HW, P), jnp.float32)
    for k in range(9):
        ky, kx = divmod(k, 3)
        start = off + (ky - 1) * DW + (kx - 1) * d
        tap = hpad_ref[start:start + HW, :]
        if kx == 0:
            tap = jnp.where(left_ok, tap, jnp.zeros_like(tap))
        elif kx == 2:
            tap = jnp.where(right_ok, tap, jnp.zeros_like(tap))
        acc = acc + jnp.dot(tap, w2_ref[k * P:(k + 1) * P, :],
                            preferred_element_type=jnp.float32)
    h2 = jnp.maximum(acc + b2_ref[...], 0.0).astype(jnp.bfloat16)

    # ---- conv1x1 -> (BN folded, NL='None') -> +residual -> ReLU ---------------
    y = jnp.dot(h2, w3_ref[...], preferred_element_type=jnp.float32)
    y = y + b3_ref[...] + x_ref[...].reshape(HW, Cin).astype(jnp.float32)
    y = jnp.maximum(y, 0.0)
    o_ref[...] = y.reshape(o_ref.shape).astype(o_ref.dtype)


# ----------------------------------------------------------------------------
# Wrappers.  NHWC is the native layout; NCHW adapter matches the PyTorch module.
# ----------------------------------------------------------------------------
def trident_block_forward_nhwc(x, params, *, dilation):
    d = int(dilation)                                    # static (bound before jit)
    N, H, W, Cin = x.shape
    c1, c2, c3 = params["c1"], params["c2"], params["c3"]
    P = c1["w"].shape[-1]

    # Fold the inference-mode BN scale into the weight columns; biases stay f32.
    w1 = (c1["w"][0] * c1["scale"][None, :]).astype(jnp.bfloat16)            # (Cin, P)
    w2 = (c2["w"] * c2["scale"][None, None, :]).reshape(9 * P, P).astype(jnp.bfloat16)
    w3 = (c3["w"][0] * c3["scale"][None, :]).astype(jnp.bfloat16)            # (P, Cin)
    b1 = c1["bias"].reshape(1, P).astype(jnp.float32)
    b2 = c2["bias"].reshape(1, P).astype(jnp.float32)
    b3 = c3["bias"].reshape(1, Cin).astype(jnp.float32)

    off = _round_up(d * W + d, 16)              # packed-bf16 sublane alignment
    rows = off + H * W + d * W + d              # staging-buffer rows

    def rep(shape):                             # replicated (weights / biases)
        nd = len(shape)
        return pl.BlockSpec(shape, lambda n, _nd=nd: (0,) * _nd)

    return pl.pallas_call(
        functools.partial(_trident_kernel, H=H, W=W, d=d, off=off),
        out_shape=jax.ShapeDtypeStruct((N, H, W, Cin), x.dtype),
        grid=(N,),
        in_specs=[
            pl.BlockSpec((1, H, W, Cin), lambda n: (n, 0, 0, 0)),
            rep((Cin, P)), rep((1, P)),
            rep((9 * P, P)), rep((1, P)),
            rep((P, Cin)), rep((1, Cin)),
        ],
        out_specs=pl.BlockSpec((1, H, W, Cin), lambda n: (n, 0, 0, 0)),
        scratch_shapes=[pltpu.VMEM((rows, P), jnp.bfloat16)],  # row-padded h1 stage
        compiler_params=pltpu.CompilerParams(
            dimension_semantics=("parallel",),
            vmem_limit_bytes=48 * 1024 * 1024),
    )(x, w1, b1, w2, b2, w3, b3)


def trident_block_forward(x_nchw, params, *, dilation):
    x = jnp.transpose(x_nchw, (0, 2, 3, 1))              # NCHW -> NHWC (C = lanes)
    y = trident_block_forward_nhwc(x, params, dilation=dilation)
    return jnp.transpose(y, (0, 3, 1, 2))                # back to NCHW


# ----------------------------------------------------------------------------
# Parameter construction (deterministic, inference-mode BN folded)
# ----------------------------------------------------------------------------
def make_conv_params(key, ksize, cin, cout):
    k1, k2, k3, k4, k5, k6 = jax.random.split(key, 6)
    ntaps = ksize * ksize
    w = jax.random.normal(k1, (ntaps, cin, cout), jnp.float32) / jnp.sqrt(
        float(ntaps * cin))
    conv_b = 0.1 * jax.random.normal(k2, (cout,), jnp.float32)
    gamma = 1.0 + 0.1 * jax.random.normal(k3, (cout,), jnp.float32)
    beta = 0.1 * jax.random.normal(k4, (cout,), jnp.float32)
    mean = 0.1 * jax.random.normal(k5, (cout,), jnp.float32)
    var = 0.5 + jnp.abs(jax.random.normal(k6, (cout,), jnp.float32))
    scale = gamma / jnp.sqrt(var + EPS)                  # folded BN scale
    bias = beta + (conv_b - mean) * scale                # folded BN bias (+conv bias)
    return dict(w=w, scale=scale, bias=bias, conv_b=conv_b, gamma=gamma,
                beta=beta, mean=mean, var=var, ksize=ksize)


def make_trident_params(key, inchannel, planes):
    k1, k2, k3 = jax.random.split(key, 3)
    return dict(c1=make_conv_params(k1, 1, inchannel, planes),
                c2=make_conv_params(k2, 3, planes, planes),
                c3=make_conv_params(k3, 1, planes, inchannel))


# ----------------------------------------------------------------------------
# Pure-JAX reference (lax.conv, f32) for the correctness check
# ----------------------------------------------------------------------------
def _ref_conv(x_nhwc, p, dilation, relu):
    ksize = p["ksize"]
    ntaps, cin, cout = p["w"].shape
    w_hwio = p["w"].reshape(ksize, ksize, cin, cout)
    pad = dilation * (ksize - 1) // 2
    y = jax.lax.conv_general_dilated(
        x_nhwc, w_hwio, window_strides=(1, 1),
        padding=[(pad, pad), (pad, pad)], rhs_dilation=(dilation, dilation),
        dimension_numbers=("NHWC", "HWIO", "NHWC"),
        precision=jax.lax.Precision.HIGHEST)
    y = y + p["conv_b"]
    y = (y - p["mean"]) / jnp.sqrt(p["var"] + EPS) * p["gamma"] + p["beta"]
    if relu:
        y = jnp.maximum(y, 0.0)
    return y


def trident_block_reference(x_nchw, params, *, dilation):
    x = jnp.transpose(x_nchw, (0, 2, 3, 1))
    h = _ref_conv(x, params["c1"], 1, True)
    h = _ref_conv(h, params["c2"], dilation, True)
    h = _ref_conv(h, params["c3"], 1, False)
    y = jnp.maximum(h + x, 0.0)
    return jnp.transpose(y, (0, 3, 1, 2))


# ----------------------------------------------------------------------------
if __name__ == "__main__":
    # inchannel=128, planes_channel=128 (module default), small spatial map.
    N, C, H, W = 2, 128, 16, 16
    PLANES = 128

    key = jax.random.PRNGKey(0)
    kx_, kp = jax.random.split(key)
    x = jax.random.normal(kx_, (N, C, H, W), jnp.float32)   # NCHW, like PyTorch

    for d in (1, 2, 3):   # dilation ratios the decoder instantiates trident_block with
        params = make_trident_params(jax.random.fold_in(kp, d), C, PLANES)
        fwd = jax.jit(functools.partial(trident_block_forward, dilation=d))
        out = jax.block_until_ready(fwd(x, params))
        assert out.shape == (N, C, H, W), out.shape
        assert bool(jnp.all(jnp.isfinite(out)))
        ref = jax.block_until_ready(trident_block_reference(x, params, dilation=d))
        err_max = float(jnp.max(jnp.abs(out - ref)))
        err_mean = float(jnp.mean(jnp.abs(out - ref)))
        # bf16 MXU operands with f32 accumulation: ~1e-2 max abs error expected.
        assert err_max < 1.5e-1, (d, err_max)
        assert err_mean < 2e-2, (d, err_mean)

    print("KERNEL_OK")
</pallas_src>

<mosaic_0001>
module attributes {stable_mosaic.version = 11 : i64} {
  func.func @_trident_kernel(%arg0: i32, %arg1: memref<1x16x16x128xf32, #tpu.memory_space<vmem>>, %arg2: memref<128x128xbf16, #tpu.memory_space<vmem>>, %arg3: memref<1x128xf32, #tpu.memory_space<vmem>>, %arg4: memref<1152x128xbf16, #tpu.memory_space<vmem>>, %arg5: memref<1x128xf32, #tpu.memory_space<vmem>>, %arg6: memref<128x128xbf16, #tpu.memory_space<vmem>>, %arg7: memref<1x128xf32, #tpu.memory_space<vmem>>, %arg8: memref<1x16x16x128xf32, #tpu.memory_space<vmem>>, %arg9: memref<305x128xbf16, #tpu.memory_space<vmem>>) attributes {dimension_semantics = [#tpu.dimension_semantics<parallel>], iteration_bounds = array<i64: 2>, scalar_prefetch = 0 : i64, scratch_operands = 1 : i64, tpu.core_type = #tpu.core_type<tc>, window_params = [{transform_indices = @transform_0, window_bounds = array<i64: 1, 16, 16, 128>}, {pipeline_mode = #tpu.pipeline_mode<synchronous>, transform_indices = @transform_1, window_bounds = array<i64: 128, 128>}, {pipeline_mode = #tpu.pipeline_mode<synchronous>, transform_indices = @transform_2, window_bounds = array<i64: 1, 128>}, {pipeline_mode = #tpu.pipeline_mode<synchronous>, transform_indices = @transform_3, window_bounds = array<i64: 1152, 128>}, {pipeline_mode = #tpu.pipeline_mode<synchronous>, transform_indices = @transform_4, window_bounds = array<i64: 1, 128>}, {pipeline_mode = #tpu.pipeline_mode<synchronous>, transform_indices = @transform_5, window_bounds = array<i64: 128, 128>}, {pipeline_mode = #tpu.pipeline_mode<synchronous>, transform_indices = @transform_6, window_bounds = array<i64: 1, 128>}, {transform_indices = @transform_7, window_bounds = array<i64: 1, 16, 16, 128>}]} {
    %c0 = arith.constant 0 : index
    %c0_0 = arith.constant 0 : index
    %c0_1 = arith.constant 0 : index
    %c0_2 = arith.constant 0 : index
    %0 = vector.load %arg1[%c0, %c0_0, %c0_1, %c0_2] : memref<1x16x16x128xf32, #tpu.memory_space<vmem>>, vector<1x16x16x128xf32>
    %1 = vector.shape_cast %0 : vector<1x16x16x128xf32> to vector<256x128xf32>
    %2 = arith.truncf %1 : vector<256x128xf32> to vector<256x128xbf16>
    %c0_3 = arith.constant 0 : index
    %c0_4 = arith.constant 0 : index
    %3 = vector.load %arg2[%c0_3, %c0_4] : memref<128x128xbf16, #tpu.memory_space<vmem>>, vector<128x128xbf16>
    %cst = arith.constant dense<0.000000e+00> : vector<256x128xf32>
    %4 = tpu.matmul %2, %3, %cst {dimension_numbers = #tpu.dot_dimension_numbers<[1], [0], [0], [1], [0, 0, 1, 1], [], []>} : vector<256x128xbf16>, vector<128x128xbf16>, vector<256x128xf32> -> vector<256x128xf32>
    %c0_5 = arith.constant 0 : index
    %c0_6 = arith.constant 0 : index
    %5 = vector.load %arg3[%c0_5, %c0_6] : memref<1x128xf32, #tpu.memory_space<vmem>>, vector<1x128xf32>
    %6 = vector.broadcast %5 : vector<1x128xf32> to vector<256x128xf32>
    %7 = arith.addf %4, %6 : vector<256x128xf32>
    %cst_7 = arith.constant 0.000000e+00 : f32
    %8 = vector.broadcast %cst_7 : f32 to vector<256x128xf32>
    %9 = arith.maximumf %7, %8 : vector<256x128xf32>
    %10 = arith.truncf %9 : vector<256x128xf32> to vector<256x128xbf16>
    %cst_8 = arith.constant 0.000000e+00 : bf16
    %11 = vector.broadcast %cst_8 : bf16 to vector<32x128xbf16>
    %c0_9 = arith.constant 0 : index
    %c0_10 = arith.constant 0 : index
    %12 = vector.load %arg9[%c0_9, %c0_10] : memref<305x128xbf16, #tpu.memory_space<vmem>>, vector<32x128xbf16>
    tpu.vector_store %arg9[%c0_9, %c0_10], %11 {strides = array<i32>} : memref<305x128xbf16, #tpu.memory_space<vmem>>, vector<32x128xbf16>,
    %cst_11 = arith.constant 0.000000e+00 : bf16
    %13 = vector.broadcast %cst_11 : bf16 to vector<17x128xbf16>
    %c288 = arith.constant 288 : index
    %c0_12 = arith.constant 0 : index
    %14 = vector.load %arg9[%c288, %c0_12] : memref<305x128xbf16, #tpu.memory_space<vmem>>, vector<17x128xbf16>
    tpu.vector_store %arg9[%c288, %c0_12], %13 {strides = array<i32>} : memref<305x128xbf16, #tpu.memory_space<vmem>>, vector<17x128xbf16>,
    %c32 = arith.constant 32 : index
    %c0_13 = arith.constant 0 : index
    %15 = vector.load %arg9[%c32, %c0_13] : memref<305x128xbf16, #tpu.memory_space<vmem>>, vector<256x128xbf16>
    tpu.vector_store %arg9[%c32, %c0_13], %10 {strides = array<i32>} : memref<305x128xbf16, #tpu.memory_space<vmem>>, vector<256x128xbf16>,
    %16 = tpu.iota {dimensions = array<i32: 0>} : vector<256x1xi32>
    %c16_i32 = arith.constant 16 : i32
    %c0_i32 = arith.constant 0 : i32
    %17 = arith.cmpi eq, %c16_i32, %c0_i32 : i32
    %c1_i32 = arith.constant 1 : i32
    %18 = arith.select %17, %c1_i32, %c16_i32 : i32
    %19 = vector.broadcast %18 : i32 to vector<256x1xi32>
    %20 = arith.remsi %16, %19 : vector<256x1xi32>
    %c0_i32_14 = arith.constant 0 : i32
    %21 = vector.broadcast %c0_i32_14 : i32 to vector<256x1xi32>
    %22 = arith.cmpi ne, %20, %21 : vector<256x1xi32>
    %c0_i32_15 = arith.constant 0 : i32
    %23 = vector.broadcast %c0_i32_15 : i32 to vector<256x1xi32>
    %24 = arith.cmpi slt, %20, %23 : vector<256x1xi32>
    %c0_i32_16 = arith.constant 0 : i32
    %25 = arith.cmpi slt, %18, %c0_i32_16 : i32
    %26 = vector.broadcast %25 : i1 to vector<256x1xi1>
    %27 = vector.broadcast %26 : vector<256x1xi1> to vector<256x1xi1>
    %28 = arith.xori %24, %27 : vector<256x1xi1>
    %29 = arith.andi %28, %22 : vector<256x1xi1>
    %30 = vector.broadcast %18 : i32 to vector<256x1xi32>
    %31 = arith.addi %20, %30 : vector<256x1xi32>
    %32 = arith.select %29, %31, %20 : vector<256x1xi1>, vector<256x1xi32>
    %c1_i32_17 = arith.constant 1 : i32
    %33 = vector.broadcast %c1_i32_17 : i32 to vector<256x1xi32>
    %34 = arith.cmpi sge, %32, %33 : vector<256x1xi32>
    %c15_i32 = arith.constant 15 : i32
    %35 = vector.broadcast %c15_i32 : i32 to vector<256x1xi32>
    %36 = arith.cmpi slt, %32, %35 : vector<256x1xi32>
    %cst_18 = arith.constant 0.000000e+00 : f32
    %37 = vector.broadcast %cst_18 : f32 to vector<256x128xf32>
    %c15 = arith.constant 15 : index
    %c0_19 = arith.constant 0 : index
    %38 = vector.load %arg9[%c15, %c0_19] : memref<305x128xbf16, #tpu.memory_space<vmem>>, vector<256x128xbf16>
    %cst_20 = arith.constant 0.000000e+00 : bf16
    %39 = vector.broadcast %cst_20 : bf16 to vector<256x128xbf16>
    %40 = vector.shape_cast %34 : vector<256x1xi1> to vector<256x1xi1>
    %41 = vector.broadcast %40 : vector<256x1xi1> to vector<256x128xi1>
    %42 = arith.select %41, %38, %39 : vector<256x128xi1>, vector<256x128xbf16>
    %c0_21 = arith.constant 0 : index
    %c0_22 = arith.constant 0 : index
    %43 = vector.load %arg4[%c0_21, %c0_22] : memref<1152x128xbf16, #tpu.memory_space<vmem>>, vector<128x128xbf16>
    %cst_23 = arith.constant dense<0.000000e+00> : vector<256x128xf32>
    %44 = tpu.matmul %42, %43, %cst_23 {dimension_numbers = #tpu.dot_dimension_numbers<[1], [0], [0], [1], [0, 0, 1, 1], [], []>} : vector<256x128xbf16>, vector<128x128xbf16>, vector<256x128xf32> -> vector<256x128xf32>
    %45 = arith.addf %37, %44 : vector<256x128xf32>
    %c16 = arith.constant 16 : index
    %c0_24 = arith.constant 0 : index
    %46 = vector.load %arg9[%c16, %c0_24] : memref<305x128xbf16, #tpu.memory_space<vmem>>, vector<256x128xbf16>
    %c128 = arith.constant 128 : index
    %c0_25 = arith.constant 0 : index
    %47 = vector.load %arg4[%c128, %c0_25] : memref<1152x128xbf16, #tpu.memory_space<vmem>>, vector<128x128xbf16>
    %cst_26 = arith.constant dense<0.000000e+00> : vector<256x128xf32>
    %48 = tpu.matmul %46, %47, %cst_26 {dimension_numbers = #tpu.dot_dimension_numbers<[1], [0], [0], [1], [0, 0, 1, 1], [], []>} : vector<256x128xbf16>, vector<128x128xbf16>, vector<256x128xf32> -> vector<256x128xf32>
    %49 = arith.addf %45, %48 : vector<256x128xf32>
    %c17 = arith.constant 17 : index
    %c0_27 = arith.constant 0 : index
    %50 = vector.load %arg9[%c17, %c0_27] : memref<305x128xbf16, #tpu.memory_space<vmem>>, vector<256x128xbf16>
    %cst_28 = arith.constant 0.000000e+00 : bf16
    %51 = vector.broadcast %cst_28 : bf16 to vector<256x128xbf16>
    %52 = vector.shape_cast %36 : vector<256x1xi1> to vector<256x1xi1>
    %53 = vector.broadcast %52 : vector<256x1xi1> to vector<256x128xi1>
    %54 = arith.select %53, %50, %51 : vector<256x128xi1>, vector<256x128xbf16>
    %c256 = arith.constant 256 : index
    %c0_29 = arith.constant 0 : index
    %55 = vector.load %arg4[%c256, %c0_29] : memref<1152x128xbf16, #tpu.memory_space<vmem>>, vector<128x128xbf16>
    %cst_30 = arith.constant dense<0.000000e+00> : vector<256x128xf32>
    %56 = tpu.matmul %54, %55, %cst_30 {dimension_numbers = #tpu.dot_dimension_numbers<[1], [0], [0], [1], [0, 0, 1, 1], [], []>} : vector<256x128xbf16>, vector<128x128xbf16>, vector<256x128xf32> -> vector<256x128xf32>
    %57 = arith.addf %49, %56 : vector<256x128xf32>
    %c31 = arith.constant 31 : index
    %c0_31 = arith.constant 0 : index
    %58 = vector.load %arg9[%c31, %c0_31] : memref<305x128xbf16, #tpu.memory_space<vmem>>, vector<256x128xbf16>
    %cst_32 = arith.constant 0.000000e+00 : bf16
    %59 = vector.broadcast %cst_32 : bf16 to vector<256x128xbf16>
    %60 = vector.shape_cast %34 : vector<256x1xi1> to vector<256x1xi1>
    %61 = vector.broadcast %60 : vector<256x1xi1> to vector<256x128xi1>
    %62 = arith.select %61, %58, %59 : vector<256x128xi1>, vector<256x128xbf16>
    %c384 = arith.constant 384 : index
    %c0_33 = arith.constant 0 : index
    %63 = vector.load %arg4[%c384, %c0_33] : memref<1152x128xbf16, #tpu.memory_space<vmem>>, vector<128x128xbf16>
    %cst_34 = arith.constant dense<0.000000e+00> : vector<256x128xf32>
    %64 = tpu.matmul %62, %63, %cst_34 {dimension_numbers = #tpu.dot_dimension_numbers<[1], [0], [0], [1], [0, 0, 1, 1], [], []>} : vector<256x128xbf16>, vector<128x128xbf16>, vector<256x128xf32> -> vector<256x128xf32>
    %65 = arith.addf %57, %64 : vector<256x128xf32>
    %c32_35 = arith.constant 32 : index
    %c0_36 = arith.constant 0 : index
    %66 = vector.load %arg9[%c32_35, %c0_36] : memref<305x128xbf16, #tpu.memory_space<vmem>>, vector<256x128xbf16>
    %c512 = arith.constant 512 : index
    %c0_37 = arith.constant 0 : index
    %67 = vector.load %arg4[%c512, %c0_37] : memref<1152x128xbf16, #tpu.memory_space<vmem>>, vector<128x128xbf16>
    %cst_38 = arith.constant dense<0.000000e+00> : vector<256x128xf32>
    %68 = tpu.matmul %66, %67, %cst_38 {dimension_numbers = #tpu.dot_dimension_numbers<[1], [0], [0], [1], [0, 0, 1, 1], [], []>} : vector<256x128xbf16>, vector<128x128xbf16>, vector<256x128xf32> -> vector<256x128xf32>
    %69 = arith.addf %65, %68 : vector<256x128xf32>
    %c33 = arith.constant 33 : index
    %c0_39 = arith.constant 0 : index
    %70 = vector.load %arg9[%c33, %c0_39] : memref<305x128xbf16, #tpu.memory_space<vmem>>, vector<256x128xbf16>
    %cst_40 = arith.constant 0.000000e+00 : bf16
    %71 = vector.broadcast %cst_40 : bf16 to vector<256x128xbf16>
    %72 = vector.shape_cast %36 : vector<256x1xi1> to vector<256x1xi1>
    %73 = vector.broadcast %72 : vector<256x1xi1> to vector<256x128xi1>
    %74 = arith.select %73, %70, %71 : vector<256x128xi1>, vector<256x128xbf16>
    %c640 = arith.constant 640 : index
    %c0_41 = arith.constant 0 : index
    %75 = vector.load %arg4[%c640, %c0_41] : memref<1152x128xbf16, #tpu.memory_space<vmem>>, vector<128x128xbf16>
    %cst_42 = arith.constant dense<0.000000e+00> : vector<256x128xf32>
    %76 = tpu.matmul %74, %75, %cst_42 {dimension_numbers = #tpu.dot_dimension_numbers<[1], [0], [0], [1], [0, 0, 1, 1], [], []>} : vector<256x128xbf16>, vector<128x128xbf16>, vector<256x128xf32> -> vector<256x128xf32>
    %77 = arith.addf %69, %76 : vector<256x128xf32>
    %c47 = arith.constant 47 : index
    %c0_43 = arith.constant 0 : index
    %78 = vector.load %arg9[%c47, %c0_43] : memref<305x128xbf16, #tpu.memory_space<vmem>>, vector<256x128xbf16>
    %cst_44 = arith.constant 0.000000e+00 : bf16
    %79 = vector.broadcast %cst_44 : bf16 to vector<256x128xbf16>
    %80 = vector.shape_cast %34 : vector<256x1xi1> to vector<256x1xi1>
    %81 = vector.broadcast %80 : vector<256x1xi1> to vector<256x128xi1>
    %82 = arith.select %81, %78, %79 : vector<256x128xi1>, vector<256x128xbf16>
    %c768 = arith.constant 768 : index
    %c0_45 = arith.constant 0 : index
    %83 = vector.load %arg4[%c768, %c0_45] : memref<1152x128xbf16, #tpu.memory_space<vmem>>, vector<128x128xbf16>
    %cst_46 = arith.constant dense<0.000000e+00> : vector<256x128xf32>
    %84 = tpu.matmul %82, %83, %cst_46 {dimension_numbers = #tpu.dot_dimension_numbers<[1], [0], [0], [1], [0, 0, 1, 1], [], []>} : vector<256x128xbf16>, vector<128x128xbf16>, vector<256x128xf32> -> vector<256x128xf32>
    %85 = arith.addf %77, %84 : vector<256x128xf32>
    %c48 = arith.constant 48 : index
    %c0_47 = arith.constant 0 : index
    %86 = vector.load %arg9[%c48, %c0_47] : memref<305x128xbf16, #tpu.memory_space<vmem>>, vector<256x128xbf16>
    %c896 = arith.constant 896 : index
    %c0_48 = arith.constant 0 : index
    %87 = vector.load %arg4[%c896, %c0_48] : memref<1152x128xbf16, #tpu.memory_space<vmem>>, vector<128x128xbf16>
    %cst_49 = arith.constant dense<0.000000e+00> : vector<256x128xf32>
    %88 = tpu.matmul %86, %87, %cst_49 {dimension_numbers = #tpu.dot_dimension_numbers<[1], [0], [0], [1], [0, 0, 1, 1], [], []>} : vector<256x128xbf16>, vector<128x128xbf16>, vector<256x128xf32> -> vector<256x128xf32>
    %89 = arith.addf %85, %88 : vector<256x128xf32>
    %c49 = arith.constant 49 : index
    %c0_50 = arith.constant 0 : index
    %90 = vector.load %arg9[%c49, %c0_50] : memref<305x128xbf16, #tpu.memory_space<vmem>>, vector<256x128xbf16>
    %cst_51 = arith.constant 0.000000e+00 : bf16
    %91 = vector.broadcast %cst_51 : bf16 to vector<256x128xbf16>
    %92 = vector.shape_cast %36 : vector<256x1xi1> to vector<256x1xi1>
    %93 = vector.broadcast %92 : vector<256x1xi1> to vector<256x128xi1>
    %94 = arith.select %93, %90, %91 : vector<256x128xi1>, vector<256x128xbf16>
    %c1024 = arith.constant 1024 : index
    %c0_52 = arith.constant 0 : index
    %95 = vector.load %arg4[%c1024, %c0_52] : memref<1152x128xbf16, #tpu.memory_space<vmem>>, vector<128x128xbf16>
    %cst_53 = arith.constant dense<0.000000e+00> : vector<256x128xf32>
    %96 = tpu.matmul %94, %95, %cst_53 {dimension_numbers = #tpu.dot_dimension_numbers<[1], [0], [0], [1], [0, 0, 1, 1], [], []>} : vector<256x128xbf16>, vector<128x128xbf16>, vector<256x128xf32> -> vector<256x128xf32>
    %97 = arith.addf %89, %96 : vector<256x128xf32>
    %c0_54 = arith.constant 0 : index
    %c0_55 = arith.constant 0 : index
    %98 = vector.load %arg5[%c0_54, %c0_55] : memref<1x128xf32, #tpu.memory_space<vmem>>, vector<1x128xf32>
    %99 = vector.broadcast %98 : vector<1x128xf32> to vector<256x128xf32>
    %100 = arith.addf %97, %99 : vector<256x128xf32>
    %cst_56 = arith.constant 0.000000e+00 : f32
    %101 = vector.broadcast %cst_56 : f32 to vector<256x128xf32>
    %102 = arith.maximumf %100, %101 : vector<256x128xf32>
    %103 = arith.truncf %102 : vector<256x128xf32> to vector<256x128xbf16>
    %c0_57 = arith.constant 0 : index
    %c0_58 = arith.constant 0 : index
    %104 = vector.load %arg6[%c0_57, %c0_58] : memref<128x128xbf16, #tpu.memory_space<vmem>>, vector<128x128xbf16>
    %cst_59 = arith.constant dense<0.000000e+00> : vector<256x128xf32>
    %105 = tpu.matmul %103, %104, %cst_59 {dimension_numbers = #tpu.dot_dimension_numbers<[1], [0], [0], [1], [0, 0, 1, 1], [], []>} : vector<256x128xbf16>, vector<128x128xbf16>, vector<256x128xf32> -> vector<256x128xf32>
    %c0_60 = arith.constant 0 : index
    %c0_61 = arith.constant 0 : index
    %106 = vector.load %arg7[%c0_60, %c0_61] : memref<1x128xf32, #tpu.memory_space<vmem>>, vector<1x128xf32>
    %107 = vector.broadcast %106 : vector<1x128xf32> to vector<256x128xf32>
    %108 = arith.addf %105, %107 : vector<256x128xf32>
    %c0_62 = arith.constant 0 : index
    %c0_63 = arith.constant 0 : index
    %c0_64 = arith.constant 0 : index
    %c0_65 = arith.constant 0 : index
    %109 = vector.load %arg1[%c0_62, %c0_63, %c0_64, %c0_65] : memref<1x16x16x128xf32, #tpu.memory_space<vmem>>, vector<1x16x16x128xf32>
    %110 = vector.shape_cast %109 : vector<1x16x16x128xf32> to vector<256x128xf32>
    %111 = arith.addf %108, %110 : vector<256x128xf32>
    %cst_66 = arith.constant 0.000000e+00 : f32
    %112 = vector.broadcast %cst_66 : f32 to vector<256x128xf32>
    %113 = arith.maximumf %111, %112 : vector<256x128xf32>
    %114 = vector.shape_cast %113 : vector<256x128xf32> to vector<1x16x16x128xf32>
    %c0_67 = arith.constant 0 : index
    %c0_68 = arith.constant 0 : index
    %c0_69 = arith.constant 0 : index
    %c0_70 = arith.constant 0 : index
    %115 = vector.load %arg8[%c0_67, %c0_68, %c0_69, %c0_70] : memref<1x16x16x128xf32, #tpu.memory_space<vmem>>, vector<1x16x16x128xf32>
    tpu.vector_store %arg8[%c0_67, %c0_68, %c0_69, %c0_70], %114 {strides = array<i32>} : memref<1x16x16x128xf32, #tpu.memory_space<vmem>>, vector<1x16x16x128xf32>,
    return
  }
  func.func @transform_0(%arg0: i32) -> (i32, i32, i32, i32) {
    %c0_i32 = arith.constant 0 : i32
    %c0_i32_0 = arith.constant 0 : i32
    %c0_i32_1 = arith.constant 0 : i32
    %c0_i32_2 = arith.constant 0 : i32
    return %arg0, %c0_i32, %c0_i32_0, %c0_i32_1 : i32, i32, i32, i32
  }
  func.func @transform_1(%arg0: i32) -> (i32, i32) {
    %c0_i32 = arith.constant 0 : i32
    %c0_i32_0 = arith.constant 0 : i32
    %c0_i32_1 = arith.constant 0 : i32
    return %c0_i32, %c0_i32_0 : i32, i32
  }
  func.func @transform_2(%arg0: i32) -> (i32, i32) {
    %c0_i32 = arith.constant 0 : i32
    %c0_i32_0 = arith.constant 0 : i32
    %c0_i32_1 = arith.constant 0 : i32
    return %c0_i32, %c0_i32_0 : i32, i32
  }
  func.func @transform_3(%arg0: i32) -> (i32, i32) {
    %c0_i32 = arith.constant 0 : i32
    %c0_i32_0 = arith.constant 0 : i32
    %c0_i32_1 = arith.constant 0 : i32
    return %c0_i32, %c0_i32_0 : i32, i32
  }
  func.func @transform_4(%arg0: i32) -> (i32, i32) {
    %c0_i32 = arith.constant 0 : i32
    %c0_i32_0 = arith.constant 0 : i32
    %c0_i32_1 = arith.constant 0 : i32
    return %c0_i32, %c0_i32_0 : i32, i32
  }
  func.func @transform_5(%arg0: i32) -> (i32, i32) {
    %c0_i32 = arith.constant 0 : i32
    %c0_i32_0 = arith.constant 0 : i32
    %c0_i32_1 = arith.constant 0 : i32
    return %c0_i32, %c0_i32_0 : i32, i32
  }
  func.func @transform_6(%arg0: i32) -> (i32, i32) {
    %c0_i32 = arith.constant 0 : i32
    %c0_i32_0 = arith.constant 0 : i32
    %c0_i32_1 = arith.constant 0 : i32
    return %c0_i32, %c0_i32_0 : i32, i32
  }
  func.func @transform_7(%arg0: i32) -> (i32, i32, i32, i32) {
    %c0_i32 = arith.constant 0 : i32
    %c0_i32_0 = arith.constant 0 : i32
    %c0_i32_1 = arith.constant 0 : i32
    %c0_i32_2 = arith.constant 0 : i32
    return %arg0, %c0_i32, %c0_i32_0, %c0_i32_1 : i32, i32, i32, i32
  }
}

</mosaic_0001>

<llo_original>
// kernel: trident_block_forward.1
$region0: #{trident_block_forward.1}
  #allocation0 [shape = 'u32[]', space=smem, size = 0x4, offset = 0x4, fixed_abs, tag = 'smem constant byte address 0x4 - core index']
  #allocation1 [shape = 'u32[144,128]{1,0:T(1,128)}', space=vmem, size = 0x12000, scoped, tag = 'internal scratch']
  #allocation2 [shape = 'bf16[305,128]{1,0:T(8,128)(2,1)}', space=vmem, size = 0x13800, scoped, tag = 'scratch operand']
  %s0 = inlined_call_operand.vmem [shape: f32[2,16,16,128], index: 0, kind: input, shape index: {}]
  %s1 = inlined_call_operand.vmem [shape: bf16[128,128], index: 1, kind: input, shape index: {}]
  %s2 = inlined_call_operand.vmem [shape: f32[1,128], index: 2, kind: input, shape index: {}]
  %s3 = inlined_call_operand.vmem [shape: bf16[1152,128], index: 3, kind: input, shape index: {}]
  %s4 = inlined_call_operand.vmem [shape: f32[1,128], index: 4, kind: input, shape index: {}]
  %s5 = inlined_call_operand.vmem [shape: bf16[128,128], index: 5, kind: input, shape index: {}]
  %s6 = inlined_call_operand.vmem [shape: f32[1,128], index: 6, kind: input, shape index: {}]
  %s7 = inlined_call_operand.hbm [shape: f32[2,16,16,128], index: 7, kind: output, shape index: {}]
  %s8 = sld [smem:[#allocation0]]
  $region61: #{trident_block_forward.1} parent=0
    _
  %s10 = ssub.s32 1, %s8
  %s11 = scalar_select 0, %s10, %s8
  $region1: #{trident_block_forward.1} parent=0
    #allocation3 [shape = 'u8[262144]{0}', space=vmem, size = 0x40000, scoped, tag = 'output window, operand 0']
    #allocation4 [shape = 's32[2]{0}', space=sflag, size = 0x8, scoped, tag = 'scoped memory for trident_block_forward.1']
    %12 = vsyncpa [#allocation4], 0
    %s13 = scalar_lea.sflag [#allocation4], 1
    %14 = vsyncpa %s13, 0
    loop: start=0, step=1, limit=4
    $region2: #{trident_block_forward.1} parent=1 // loop_pre_header
      _
    $region3: #{trident_block_forward.1} parent=1 // loop_header
      %s16 = sphi 0, %s20
      %p17 = scmp.ge.s32.totalorder %s16, 4
      %s26 = sphi 0, %s28
      %s29 = sphi 0, %s26
      %s30 = sphi 0, %s29
      %s46 = sphi 0, %s30
      %s50 = sphi 0, %s50
      %s52 = sphi 0, %s50
      %s53 = sphi 0, %s52
      %s67 = sphi 0, %s53
      %s71 = sphi 0, %s71
      %s73 = sphi 0, %s71
      %s74 = sphi 0, %s73
      %s88 = sphi 0, %s74
      %s92 = sphi 0, %s92
      %s94 = sphi 0, %s92
      %s95 = sphi 0, %s94
      %s109 = sphi 0, %s95
      %s113 = sphi 0, %s113
      %s115 = sphi 0, %s113
      %s116 = sphi 0, %s115
      %s130 = sphi 0, %s116
      %s134 = sphi 0, %s134
      %s136 = sphi 0, %s134
      %s137 = sphi 0, %s136
      %s151 = sphi 0, %s137
      %s155 = sphi 0, %s155
      %s157 = sphi 0, %s155
      %s158 = sphi 0, %s157
      %s172 = sphi 0, %s158
      %s178 = sphi 0, %s180
      %s181 = sphi 0, %s178
      %s182 = sphi 0, %s181
      %s198 = sphi 0, %s182
    $region4: #{trident_block_forward.1} parent=1 // loop_header_branch
      %19 = sbr.rel (%p17) target = $region8
    $region5: #{trident_block_forward.1} parent=1 // loop_body
      %s21 = ssub.s32 %s16, 1
      %s22 = ssub.s32 %s16, 2
      %s23 = sadd.s32 %s16, 1
      %s24 = ssub.s32 %s16, %s23
      %p25 = scmp.eq.s32.totalorder %s24, 0
      %s27 = sadd.s32 %s26, 1
      %s28 = scalar_select %p25, %s26, %s27
      %p31 = pneg %p25
      %p32 = scmp.eq.s32.totalorder %s16, 1
      %p33 = por %p31, %p32
      %p34 = scmp.ne.s32.totalorder %s26, %s29
      %p35 = scmp.eq.s32.totalorder %s16, 0
      %p36 = por %p34, %p35
      %p37 = scmp.ne.s32.totalorder %s26, %s29
      %p38 = scmp.eq.s32.totalorder %s21, 1
      %p39 = por %p37, %p38
      %p40 = scmp.ne.s32.totalorder %s29, %s30
      %p41 = scmp.eq.s32.totalorder %s21, 0
      %p42 = por %p40, %p41
      %p43 = scmp.ne.s32.totalorder %s29, %s30
      %p44 = scmp.eq.s32.totalorder %s22, 1
      %p45 = por %p43, %p44
      %p47 = scmp.ne.s32.totalorder %s30, %s46
      %p48 = scmp.eq.s32.totalorder %s22, 0
      %p49 = por %p47, %p48
      %s51 = sadd.s32 %s50, 1
      %p54 = scmp.eq.s32.totalorder %s16, 1
      %p55 = scmp.ne.s32.totalorder %s50, %s52
      %p56 = scmp.eq.s32.totalorder %s16, 0
      %p57 = por %p55, %p56
      %p58 = scmp.ne.s32.totalorder %s50, %s52
      %p59 = scmp.eq.s32.totalorder %s21, 1
      %p60 = por %p58, %p59
      %p61 = scmp.ne.s32.totalorder %s52, %s53
      %p62 = scmp.eq.s32.totalorder %s21, 0
      %p63 = por %p61, %p62
      %p64 = scmp.ne.s32.totalorder %s52, %s53
      %p65 = scmp.eq.s32.totalorder %s22, 1
      %p66 = por %p64, %p65
      %p68 = scmp.ne.s32.totalorder %s53, %s67
      %p69 = scmp.eq.s32.totalorder %s22, 0
      %p70 = por %p68, %p69
      %s72 = sadd.s32 %s71, 1
      %p75 = scmp.eq.s32.totalorder %s16, 1
      %p76 = scmp.ne.s32.totalorder %s71, %s73
      %p77 = scmp.eq.s32.totalorder %s16, 0
      %p78 = por %p76, %p77
      %p79 = scmp.ne.s32.totalorder %s71, %s73
      %p80 = scmp.eq.s32.totalorder %s21, 1
      %p81 = por %p79, %p80
      %p82 = scmp.ne.s32.totalorder %s73, %s74
      %p83 = scmp.eq.s32.totalorder %s21, 0
      %p84 = por %p82, %p83
      %p85 = scmp.ne.s32.totalorder %s73, %s74
      %p86 = scmp.eq.s32.totalorder %s22, 1
      %p87 = por %p85, %p86
      %p89 = scmp.ne.s32.totalorder %s74, %s88
      %p90 = scmp.eq.s32.totalorder %s22, 0
      %p91 = por %p89, %p90
      %s93 = sadd.s32 %s92, 1
      %p96 = scmp.eq.s32.totalorder %s16, 1
      %p97 = scmp.ne.s32.totalorder %s92, %s94
      %p98 = scmp.eq.s32.totalorder %s16, 0
      %p99 = por %p97, %p98
      %p100 = scmp.ne.s32.totalorder %s92, %s94
      %p101 = scmp.eq.s32.totalorder %s21, 1
      %p102 = por %p100, %p101
      %p103 = scmp.ne.s32.totalorder %s94, %s95
      %p104 = scmp.eq.s32.totalorder %s21, 0
      %p105 = por %p103, %p104
      %p106 = scmp.ne.s32.totalorder %s94, %s95
      %p107 = scmp.eq.s32.totalorder %s22, 1
      %p108 = por %p106, %p107
      %p110 = scmp.ne.s32.totalorder %s95, %s109
      %p111 = scmp.eq.s32.totalorder %s22, 0
      %p112 = por %p110, %p111
      %s114 = sadd.s32 %s113, 1
      %p117 = scmp.eq.s32.totalorder %s16, 1
      %p118 = scmp.ne.s32.totalorder %s113, %s115
      %p119 = scmp.eq.s32.totalorder %s16, 0
      %p120 = por %p118, %p119
      %p121 = scmp.ne.s32.totalorder %s113, %s115
      %p122 = scmp.eq.s32.totalorder %s21, 1
      %p123 = por %p121, %p122
      %p124 = scmp.ne.s32.totalorder %s115, %s116
      %p125 = scmp.eq.s32.totalorder %s21, 0
      %p126 = por %p124, %p125
      %p127 = scmp.ne.s32.totalorder %s115, %s116
      %p128 = scmp.eq.s32.totalorder %s22, 1
      %p129 = por %p127, %p128
      %p131 = scmp.ne.s32.totalorder %s116, %s130
      %p132 = scmp.eq.s32.totalorder %s22, 0
      %p133 = por %p131, %p132
      %s135 = sadd.s32 %s134, 1
      %p138 = scmp.eq.s32.totalorder %s16, 1
      %p139 = scmp.ne.s32.totalorder %s134, %s136
      %p140 = scmp.eq.s32.totalorder %s16, 0
      %p141 = por %p139, %p140
      %p142 = scmp.ne.s32.totalorder %s134, %s136
      %p143 = scmp.eq.s32.totalorder %s21, 1
      %p144 = por %p142, %p143
      %p145 = scmp.ne.s32.totalorder %s136, %s137
      %p146 = scmp.eq.s32.totalorder %s21, 0
      %p147 = por %p145, %p146
      %p148 = scmp.ne.s32.totalorder %s136, %s137
      %p149 = scmp.eq.s32.totalorder %s22, 1
      %p150 = por %p148, %p149
      %p152 = scmp.ne.s32.totalorder %s137, %s151
      %p153 = scmp.eq.s32.totalorder %s22, 0
      %p154 = por %p152, %p153
      %s156 = sadd.s32 %s155, 1
      %p159 = scmp.eq.s32.totalorder %s16, 1
      %p160 = scmp.ne.s32.totalorder %s155, %s157
      %p161 = scmp.eq.s32.totalorder %s16, 0
      %p162 = por %p160, %p161
      %p163 = scmp.ne.s32.totalorder %s155, %s157
      %p164 = scmp.eq.s32.totalorder %s21, 1
      %p165 = por %p163, %p164
      %p166 = scmp.ne.s32.totalorder %s157, %s158
      %p167 = scmp.eq.s32.totalorder %s21, 0
      %p168 = por %p166, %p167
      %p169 = scmp.ne.s32.totalorder %s157, %s158
      %p170 = scmp.eq.s32.totalorder %s22, 1
      %p171 = por %p169, %p170
      %p173 = scmp.ne.s32.totalorder %s158, %s172
      %p174 = scmp.eq.s32.totalorder %s22, 0
      %p175 = por %p173, %p174
      %s176 = ssub.s32 %s16, %s23
      %p177 = scmp.eq.s32.totalorder %s176, 0
      %s179 = sadd.s32 %s178, 1
      %s180 = scalar_select %p177, %s178, %s179
      %p183 = pneg %p177
      %p184 = scmp.eq.s32.totalorder %s16, 1
      %p185 = por %p183, %p184
      %p186 = scmp.ne.s32.totalorder %s178, %s181
      %p187 = scmp.eq.s32.totalorder %s16, 0
      %p188 = por %p186, %p187
      %p189 = scmp.ne.s32.totalorder %s178, %s181
      %p190 = scmp.eq.s32.totalorder %s21, 1
      %p191 = por %p189, %p190
      %p192 = scmp.ne.s32.totalorder %s181, %s182
      %p193 = scmp.eq.s32.totalorder %s21, 0
      %p194 = por %p192, %p193
      %p195 = scmp.ne.s32.totalorder %s181, %s182
      %p196 = scmp.eq.s32.totalorder %s22, 1
      %p197 = por %p195, %p196
      %p199 = scmp.ne.s32.totalorder %s182, %s198
      %p200 = scmp.eq.s32.totalorder %s22, 0
      %p201 = por %p199, %p200
      %p202 = scmp.le.s32.totalorder 1, %s16
      %p203 = scmp.lt.s32.totalorder %s16, 3
      %p204 = pnand %p202, %p203
      %p205 = pneg %p204
      // Predicated region
      $region9: #{trident_block_forward.1} parent=5 // pred_check
        _
      $region10: #{trident_block_forward.1} parent=5 // pred_check_branch
        %207 = sbr.rel (%p204) target = $region12
      $region11: #{trident_block_forward.1} parent=5 // pred_region
        %s208 = ssub.s32 %s16, 1
        // Predicated region
        $region13: #{trident_block_forward.1} parent=11 // pred_check
          %p209 = pneg %p63
        $region14: #{trident_block_forward.1} parent=11 // pred_check_branch
          %211 = sbr.rel (%p209) target = $region16
        $region15: #{trident_block_forward.1} parent=11 // pred_region
          _
        $region16: #{trident_block_forward.1} parent=11 // pred_fallthru
          _
        // Predicated region
        $region17: #{trident_block_forward.1} parent=11 // pred_check
          %p212 = pneg %p84
        $region18: #{trident_block_forward.1} parent=11 // pred_check_branch
          %214 = sbr.rel (%p212) target = $region20
        $region19: #{trident_block_forward.1} parent=11 // pred_region
          _
        $region20: #{trident_block_forward.1} parent=11 // pred_fallthru
          _
        // Predicated region
        $region21: #{trident_block_forward.1} parent=11 // pred_check
          %p215 = pneg %p105
        $region22: #{trident_block_forward.1} parent=11 // pred_check_branch
          %217 = sbr.rel (%p215) target = $region24
        $region23: #{trident_block_forward.1} parent=11 // pred_region
          _
        $region24: #{trident_block_forward.1} parent=11 // pred_fallthru
          _
        // Predicated region
        $region25: #{trident_block_forward.1} parent=11 // pred_check
          %p218 = pneg %p126
        $region26: #{trident_block_forward.1} parent=11 // pred_check_branch
          %220 = sbr.rel (%p218) target = $region28
        $region27: #{trident_block_forward.1} parent=11 // pred_region
          _
        $region28: #{trident_block_forward.1} parent=11 // pred_fallthru
          _
        // Predicated region
        $region29: #{trident_block_forward.1} parent=11 // pred_check
          %p221 = pneg %p147
        $region30: #{trident_block_forward.1} parent=11 // pred_check_branch
          %223 = sbr.rel (%p221) target = $region32
        $region31: #{trident_block_forward.1} parent=11 // pred_region
          _
        $region32: #{trident_block_forward.1} parent=11 // pred_fallthru
          _
        // Predicated region
        $region33: #{trident_block_forward.1} parent=11 // pred_check
          %p224 = pneg %p168
        $region34: #{trident_block_forward.1} parent=11 // pred_check_branch
          %226 = sbr.rel (%p224) target = $region36
        $region35: #{trident_block_forward.1} parent=11 // pred_region
          _
        $region36: #{trident_block_forward.1} parent=11 // pred_fallthru
          _
      $region12: #{trident_block_forward.1} parent=5 // pred_fallthru
        _
      %p227 = scmp.lt.s32.totalorder %s16, 2
      // Predicated region
      $region37: #{trident_block_forward.1} parent=5 // pred_check
        %p228 = pneg %p227
      $region38: #{trident_block_forward.1} parent=5 // pred_check_branch
        %230 = sbr.rel (%p228) target = $region40
      $region39: #{trident_block_forward.1} parent=5 // pred_region
        // Predicated region
        $region41: #{trident_block_forward.1} parent=39 // pred_check
          %p231 = pneg %p36
        $region42: #{trident_block_forward.1} parent=39 // pred_check_branch
          %233 = sbr.rel (%p231) target = $region44
        $region43: #{trident_block_forward.1} parent=39 // pred_region
          %p234 = scmp.lt.s32.totalorder %s16, 1
          %s235 = scalar_select %p234, %s16, 1
          %s236 = smul.addr %s235, 32
          %s237 = smul.addr %s236, 8
          %s238 = scalar_lea.vmem %s0, %s237
        $region44: #{trident_block_forward.1} parent=39 // pred_fallthru
          _
      $region40: #{trident_block_forward.1} parent=5 // pred_fallthru
        _
      %p239 = scmp.le.s32.totalorder 1, %s16
      %p240 = scmp.lt.s32.totalorder %s16, 3
      %p241 = pnand %p239, %p240
      %p242 = pneg %p241
      // Predicated region
      $region45: #{trident_block_forward.1} parent=5 // pred_check
        _
      $region46: #{trident_block_forward.1} parent=5 // pred_check_branch
        %244 = sbr.rel (%p241) target = $region48
      $region47: #{trident_block_forward.1} parent=5 // pred_region
        %s245 = ssub.s32 %s16, 1
        %p246 = scmp.lt.s32.totalorder %s21, 1
        %s247 = scalar_select %p246, %s21, 1
        %s248 = smul.addr %s247, 32
        %s249 = smul.addr %s248, 8
        %s250 = scalar_lea.vmem %s0, %s249
        %p251 = pneg %p42
        %p252 = pneg %p39
        %p253 = pneg %p63
        %p254 = pneg %p60
        %p255 = pneg %p84
        %p256 = pneg %p81
        %p257 = pneg %p105
        %p258 = pneg %p102
        %p259 = pneg %p126
        %p260 = pneg %p123
        %p261 = pneg %p147
        %p262 = pneg %p144
        %p263 = pneg %p168
        %p264 = pneg %p165
        %p265 = pneg %p194
        %p266 = pneg %p191
        %s267 = sand.u32 %s181, 1
        %s268 = scalar_lea.sflag [#allocation4], %s267
        %s269 = sand.u32 %s181, 1
        %s270 = smul.addr %s269, 256
        %s271 = scalar_lea.vmem [#allocation3], %s270
        %p272 = scmp.lt.s32.totalorder %s21, 1
        %s273 = scalar_select %p272, %s21, 1
        %s274 = smul.addr %s273, 32
        %s275 = smul.addr %s274, 8
        %s276 = scalar_lea.vmem %s0, %s275
        %v280 = vld [vmem:[%s276] sm:$0xff]
        %v281 = vld [vmem:[%s276 + $0x8] sm:$0xff]
        %v282 = vld [vmem:[%s276 + $0x10] sm:$0xff]
        %v283 = vld [vmem:[%s276 + $0x18] sm:$0xff]
        %v284 = vld [vmem:[%s276 + $0x20] sm:$0xff]
        %v285 = vld [vmem:[%s276 + $0x28] sm:$0xff]
        %v286 = vld [vmem:[%s276 + $0x30] sm:$0xff]
        %v287 = vld [vmem:[%s276 + $0x38] sm:$0xff]
        %v288 = vld [vmem:[%s276 + $0x40] sm:$0xff]
        %v289 = vld [vmem:[%s276 + $0x48] sm:$0xff]
        %v290 = vld [vmem:[%s276 + $0x50] sm:$0xff]
        %v291 = vld [vmem:[%s276 + $0x58] sm:$0xff]
        %v292 = vld [vmem:[%s276 + $0x60] sm:$0xff]
        %v293 = vld [vmem:[%s276 + $0x68] sm:$0xff]
        %v294 = vld [vmem:[%s276 + $0x70] sm:$0xff]
        %v295 = vld [vmem:[%s276 + $0x78] sm:$0xff]
        %v296 = vld [vmem:[%s276 + $0x80] sm:$0xff]
        %v297 = vld [vmem:[%s276 + $0x88] sm:$0xff]
        %v298 = vld [vmem:[%s276 + $0x90] sm:$0xff]
        %v299 = vld [vmem:[%s276 + $0x98] sm:$0xff]
        %v300 = vld [vmem:[%s276 + $0xa0] sm:$0xff]
        %v301 = vld [vmem:[%s276 + $0xa8] sm:$0xff]
        %v302 = vld [vmem:[%s276 + $0xb0] sm:$0xff]
        %v303 = vld [vmem:[%s276 + $0xb8] sm:$0xff]
        %v304 = vld [vmem:[%s276 + $0xc0] sm:$0xff]
        %v305 = vld [vmem:[%s276 + $0xc8] sm:$0xff]
        %v306 = vld [vmem:[%s276 + $0xd0] sm:$0xff]
        %v307 = vld [vmem:[%s276 + $0xd8] sm:$0xff]
        %v308 = vld [vmem:[%s276 + $0xe0] sm:$0xff]
        %v309 = vld [vmem:[%s276 + $0xe8] sm:$0xff]
        %v310 = vld [vmem:[%s276 + $0xf0] sm:$0xff]
        %v311 = vld [vmem:[%s276 + $0xf8] sm:$0xff]
        %v312 = vpack.c.bf16 %v281, %v280
        %v313 = vpack.c.bf16 %v283, %v282
        %v314 = vpack.c.bf16 %v285, %v284
        %v315 = vpack.c.bf16 %v287, %v286
        %v316 = vpack.c.bf16 %v289, %v288
        %v317 = vpack.c.bf16 %v291, %v290
        %v318 = vpack.c.bf16 %v293, %v292
        %v319 = vpack.c.bf16 %v295, %v294
        %v320 = vpack.c.bf16 %v297, %v296
        %v321 = vpack.c.bf16 %v299, %v298
        %v322 = vpack.c.bf16 %v301, %v300
        %v323 = vpack.c.bf16 %v303, %v302
        %v324 = vpack.c.bf16 %v305, %v304
        %v325 = vpack.c.bf16 %v307, %v306
        %v326 = vpack.c.bf16 %v309, %v308
        %v327 = vpack.c.bf16 %v311, %v310
        %v328 = vld [vmem:[%s1] sm:$0xf]
        %v329 = vld [vmem:[%s1 + $0x4] sm:$0xf]
        %v330 = vld [vmem:[%s1 + $0x8] sm:$0xf]
        %v331 = vld [vmem:[%s1 + $0xc] sm:$0xf]
        %v332 = vld [vmem:[%s1 + $0x10] sm:$0xf]
        %v333 = vld [vmem:[%s1 + $0x14] sm:$0xf]
        %v334 = vld [vmem:[%s1 + $0x18] sm:$0xf]
        %v335 = vld [vmem:[%s1 + $0x1c] sm:$0xf]
        %v336 = vld [vmem:[%s1 + $0x20] sm:$0xf]
        %v337 = vld [vmem:[%s1 + $0x24] sm:$0xf]
        %v338 = vld [vmem:[%s1 + $0x28] sm:$0xf]
        %v339 = vld [vmem:[%s1 + $0x2c] sm:$0xf]
        %v340 = vld [vmem:[%s1 + $0x30] sm:$0xf]
        %v341 = vld [vmem:[%s1 + $0x34] sm:$0xf]
        %v342 = vld [vmem:[%s1 + $0x38] sm:$0xf]
        %v343 = vld [vmem:[%s1 + $0x3c] sm:$0xf]
        %v344 = vld [vmem:[%s2] sm:$0x1]
        %v346 = vlaneseq
        %v347 = vshrl.u32 %v346, 7
        %v348 = vsub.s32 0, %v347
        %v349 = vrot.slane %v344, %v348
        %v367 = vunpack.c.l.b16 %v328
        %v368 = vunpack.c.l.b16 %v329
        %v369 = vunpack.c.l.b16 %v330
        %v370 = vunpack.c.l.b16 %v331
        %v371 = vunpack.c.l.b16 %v332
        %v372 = vunpack.c.l.b16 %v333
        %v373 = vunpack.c.l.b16 %v334
        %v374 = vunpack.c.l.b16 %v335
        %v375 = vunpack.c.l.b16 %v336
        %v376 = vunpack.c.l.b16 %v337
        %v377 = vunpack.c.l.b16 %v338
        %v378 = vunpack.c.l.b16 %v339
        %v379 = vunpack.c.l.b16 %v340
        %v380 = vunpack.c.l.b16 %v341
        %v381 = vunpack.c.l.b16 %v342
        %v382 = vunpack.c.l.b16 %v343
        %v383 = vpack.c.b16 %v368, %v367
        %v384 = vpack.c.b16 %v370, %v369
        %v385 = vpack.c.b16 %v372, %v371
        %v386 = vpack.c.b16 %v374, %v373
        %v387 = vpack.c.b16 %v376, %v375
        %v388 = vpack.c.b16 %v378, %v377
        %v389 = vpack.c.b16 %v380, %v379
        %v390 = vpack.c.b16 %v382, %v381
        %399 = vmatprep.subr.bf16.mxu0 0
        %400 = vmatpush1.bf16.msra.mxu0 %v390
        %401 = vmatprep.subr.bf16.mxu0 0
        %402 = vmatpush1.bf16.msra.mxu0 %v389
        %403 = vmatprep.subr.bf16.mxu0 0
        %404 = vmatpush1.bf16.msra.mxu0 %v388
        %405 = vmatprep.subr.bf16.mxu0 0
        %406 = vmatpush1.bf16.msra.mxu0 %v387
        %407 = vmatprep.subr.bf16.mxu0 0
        %408 = vmatpush1.bf16.msra.mxu0 %v386
        %409 = vmatprep.subr.bf16.mxu0 0
        %410 = vmatpush1.bf16.msra.mxu0 %v385
        %411 = vmatprep.subr.bf16.mxu0 0
        %412 = vmatpush1.bf16.msra.mxu0 %v384
        %413 = vmatprep.subr.bf16.mxu0 0
        %414 = vmatpush1.bf16.msra.mxu0 %v383
        %415 = vmatprep.subr.bf16.mxu0 0
        %416 = vmatpush2.bf16.msra.mxu0 0
        %417 = vmatprep.subr.bf16.mxu0 0
        %418 = vmatpush2.bf16.msra.mxu0 0
        %419 = vmatprep.subr.bf16.mxu0 0
        %420 = vmatpush2.bf16.msra.mxu0 0
        %421 = vmatprep.subr.bf16.mxu0 0
        %422 = vmatpush2.bf16.msra.mxu0 0
        %423 = vmatprep.subr.bf16.mxu0 0
        %424 = vmatpush2.bf16.msra.mxu0 0
        %425 = vmatprep.subr.bf16.mxu0 0
        %426 = vmatpush2.bf16.msra.mxu0 0
        %427 = vmatprep.subr.bf16.mxu0 0
        %428 = vmatpush2.bf16.msra.mxu0 0
        %429 = vmatprep.subr.bf16.mxu0 0
        %430 = vmatpush2.bf16.msra.mxu0 0
        %431 = vmatprep.mubr.bf16.mxu0 0
        %432 = vmatmul.mubr.bf16.gmra.mxu0 %v312
        %v433 = vpop.f32.mrf.mxu0
        %v434 = vadd.f32 %v349, %v433
        %v435 = vpop.f32.mrf.mxu0
        %v436 = vpop.f32.mrf.mxu0
        %v437 = vadd.f32 %v349, %v436
        %v438 = vpop.f32.mrf.mxu0
        %439 = vmatprep.mubr.bf16.mxu0 0
        %440 = vmatmul.mubr.bf16.gmra.mxu0 %v313
        %v441 = vpop.f32.mrf.mxu0
        %v442 = vadd.f32 %v349, %v441
        %v443 = vpop.f32.mrf.mxu0
        %v444 = vpop.f32.mrf.mxu0
        %v445 = vadd.f32 %v349, %v444
        %v446 = vpop.f32.mrf.mxu0
        %447 = vmatprep.mubr.bf16.mxu0 0
        %448 = vmatmul.mubr.bf16.gmra.mxu0 %v314
        %v449 = vpop.f32.mrf.mxu0
        %v450 = vadd.f32 %v349, %v449
        %v451 = vpop.f32.mrf.mxu0
        %v452 = vpop.f32.mrf.mxu0
        %v453 = vadd.f32 %v349, %v452
        %v454 = vpop.f32.mrf.mxu0
        %455 = vmatprep.mubr.bf16.mxu0 0
        %456 = vmatmul.mubr.bf16.gmra.mxu0 %v315
        %v457 = vpop.f32.mrf.mxu0
        %v458 = vadd.f32 %v349, %v457
        %v459 = vpop.f32.mrf.mxu0
        %v460 = vpop.f32.mrf.mxu0
        %v461 = vadd.f32 %v349, %v460
        %v462 = vpop.f32.mrf.mxu0
        %463 = vmatprep.mubr.bf16.mxu0 0
        %464 = vmatmul.mubr.bf16.gmra.mxu0 %v316
        %v465 = vpop.f32.mrf.mxu0
        %v466 = vadd.f32 %v349, %v465
        %v467 = vpop.f32.mrf.mxu0
        %v468 = vpop.f32.mrf.mxu0
        %v469 = vadd.f32 %v349, %v468
        %v470 = vpop.f32.mrf.mxu0
        %471 = vmatprep.mubr.bf16.mxu0 0
        %472 = vmatmul.mubr.bf16.gmra.mxu0 %v317
        %v473 = vpop.f32.mrf.mxu0
        %v474 = vadd.f32 %v349, %v473
        %v475 = vpop.f32.mrf.mxu0
        %v476 = vpop.f32.mrf.mxu0
        %v477 = vadd.f32 %v349, %v476
        %v478 = vpop.f32.mrf.mxu0
        %479 = vmatprep.mubr.bf16.mxu0 0
        %480 = vmatmul.mubr.bf16.gmra.mxu0 %v318
        %v481 = vpop.f32.mrf.mxu0
        %v482 = vadd.f32 %v349, %v481
        %v483 = vpop.f32.mrf.mxu0
        %v484 = vpop.f32.mrf.mxu0
        %v485 = vadd.f32 %v349, %v484
        %v486 = vpop.f32.mrf.mxu0
        %487 = vmatprep.mubr.bf16.mxu0 0
        %488 = vmatmul.mubr.bf16.gmra.mxu0 %v319
        %v489 = vpop.f32.mrf.mxu0
        %v490 = vadd.f32 %v349, %v489
        %v491 = vpop.f32.mrf.mxu0
        %v492 = vpop.f32.mrf.mxu0
        %v493 = vadd.f32 %v349, %v492
        %v494 = vpop.f32.mrf.mxu0
        %495 = vmatprep.mubr.bf16.mxu0 0
        %496 = vmatmul.mubr.bf16.gmra.mxu0 %v320
        %v497 = vpop.f32.mrf.mxu0
        %v498 = vadd.f32 %v349, %v497
        %v499 = vpop.f32.mrf.mxu0
        %v500 = vpop.f32.mrf.mxu0
        %v501 = vadd.f32 %v349, %v500
        %v502 = vpop.f32.mrf.mxu0
        %503 = vmatprep.mubr.bf16.mxu0 0
        %504 = vmatmul.mubr.bf16.gmra.mxu0 %v321
        %v505 = vpop.f32.mrf.mxu0
        %v506 = vadd.f32 %v349, %v505
        %v507 = vpop.f32.mrf.mxu0
        %v508 = vpop.f32.mrf.mxu0
        %v509 = vadd.f32 %v349, %v508
        %v510 = vpop.f32.mrf.mxu0
        %511 = vmatprep.mubr.bf16.mxu0 0
        %512 = vmatmul.mubr.bf16.gmra.mxu0 %v322
        %v513 = vpop.f32.mrf.mxu0
        %v514 = vadd.f32 %v349, %v513
        %v515 = vpop.f32.mrf.mxu0
        %v516 = vpop.f32.mrf.mxu0
        %v517 = vadd.f32 %v349, %v516
        %v518 = vpop.f32.mrf.mxu0
        %519 = vmatprep.mubr.bf16.mxu0 0
        %520 = vmatmul.mubr.bf16.gmra.mxu0 %v323
        %v521 = vpop.f32.mrf.mxu0
        %v522 = vadd.f32 %v349, %v521
        %v523 = vpop.f32.mrf.mxu0
        %v524 = vpop.f32.mrf.mxu0
        %v525 = vadd.f32 %v349, %v524
        %v526 = vpop.f32.mrf.mxu0
        %527 = vmatprep.mubr.bf16.mxu0 0
        %528 = vmatmul.mubr.bf16.gmra.mxu0 %v324
        %v529 = vpop.f32.mrf.mxu0
        %v530 = vadd.f32 %v349, %v529
        %v531 = vpop.f32.mrf.mxu0
        %v532 = vpop.f32.mrf.mxu0
        %v533 = vadd.f32 %v349, %v532
        %v534 = vpop.f32.mrf.mxu0
        %535 = vmatprep.mubr.bf16.mxu0 0
        %536 = vmatmul.mubr.bf16.gmra.mxu0 %v325
        %v537 = vpop.f32.mrf.mxu0
        %v538 = vadd.f32 %v349, %v537
        %v539 = vpop.f32.mrf.mxu0
        %v540 = vpop.f32.mrf.mxu0
        %v541 = vadd.f32 %v349, %v540
        %v542 = vpop.f32.mrf.mxu0
        %543 = vmatprep.mubr.bf16.mxu0 0
        %544 = vmatmul.mubr.bf16.gmra.mxu0 %v326
        %v545 = vpop.f32.mrf.mxu0
        %v546 = vadd.f32 %v349, %v545
        %v547 = vpop.f32.mrf.mxu0
        %v548 = vpop.f32.mrf.mxu0
        %v549 = vadd.f32 %v349, %v548
        %v550 = vpop.f32.mrf.mxu0
        %551 = vmatprep.mubr.bf16.mxu0 0
        %552 = vmatmul.mubr.bf16.gmra.mxu0 %v327
        %v553 = vpop.f32.mrf.mxu0
        %v554 = vadd.f32 %v349, %v553
        %v555 = vpop.f32.mrf.mxu0
        %v556 = vpop.f32.mrf.mxu0
        %v557 = vadd.f32 %v349, %v556
        %v558 = vpop.f32.mrf.mxu0
        %559 = vdwg.mxu0
        %v560 = vmax.f32 %v434, 0.0
        %v561 = vmax.f32 %v437, 0.0
        %v562 = vmax.f32 %v442, 0.0
        %v563 = vmax.f32 %v445, 0.0
        %v564 = vmax.f32 %v450, 0.0
        %v565 = vmax.f32 %v453, 0.0
        %v566 = vmax.f32 %v458, 0.0
        %v567 = vmax.f32 %v461, 0.0
        %v568 = vmax.f32 %v466, 0.0
        %v569 = vmax.f32 %v469, 0.0
        %v570 = vmax.f32 %v474, 0.0
        %v571 = vmax.f32 %v477, 0.0
        %v572 = vmax.f32 %v482, 0.0
        %v573 = vmax.f32 %v485, 0.0
        %v574 = vmax.f32 %v490, 0.0
        %v575 = vmax.f32 %v493, 0.0
        %v576 = vmax.f32 %v498, 0.0
        %v577 = vmax.f32 %v501, 0.0
        %v578 = vmax.f32 %v506, 0.0
        %v579 = vmax.f32 %v509, 0.0
        %v580 = vmax.f32 %v514, 0.0
        %v581 = vmax.f32 %v517, 0.0
        %v582 = vmax.f32 %v522, 0.0
        %v583 = vmax.f32 %v525, 0.0
        %v584 = vmax.f32 %v530, 0.0
        %v585 = vmax.f32 %v533, 0.0
        %v586 = vmax.f32 %v538, 0.0
        %v587 = vmax.f32 %v541, 0.0
        %v588 = vmax.f32 %v546, 0.0
        %v589 = vmax.f32 %v549, 0.0
        %v590 = vmax.f32 %v554, 0.0
        %v591 = vmax.f32 %v557, 0.0
        %v592 = vpack.c.bf16 %v561, %v560
        %v593 = vpack.c.bf16 %v563, %v562
        %v594 = vpack.c.bf16 %v565, %v564
        %v595 = vpack.c.bf16 %v567, %v566
        %v596 = vpack.c.bf16 %v569, %v568
        %v597 = vpack.c.bf16 %v571, %v570
        %v598 = vpack.c.bf16 %v573, %v572
        %v599 = vpack.c.bf16 %v575, %v574
        %v600 = vpack.c.bf16 %v577, %v576
        %v601 = vpack.c.bf16 %v579, %v578
        %v602 = vpack.c.bf16 %v581, %v580
        %v603 = vpack.c.bf16 %v583, %v582
        %v604 = vpack.c.bf16 %v585, %v584
        %v605 = vpack.c.bf16 %v587, %v586
        %v606 = vpack.c.bf16 %v589, %v588
        %v607 = vpack.c.bf16 %v591, %v590
        %608 = vst [vmem:[#allocation2] sm:$0xf] 0
        %609 = vst [vmem:[#allocation2 + $0x4] sm:$0xf] 0
        %610 = vst [vmem:[#allocation2 + $0x8] sm:$0xf] 0
        %611 = vst [vmem:[#allocation2 + $0xc] sm:$0xf] 0
        %612 = vst [vmem:[#allocation2 + $0x90] sm:$0xf] 0
        %613 = vst [vmem:[#allocation2 + $0x94] sm:$0xf] 0
        %vm614 = vcmask 1040384
        %vm615 = vsmask.f32 256
        %vm616 = vmand %vm614, %vm615
        %v617 = vld [vmem:[#allocation2 + $0x98] sm:$0x1]
        %v618 = vsel %vm616, 0, %v617
        %619 = vst [vmem:[#allocation2 + $0x98] sm:$0x1] %v618
        %v636 = vunpack.c.l.b16 %v592
        %v637 = vunpack.c.h.b16 %v592
        %v638 = vunpack.c.l.b16 %v593
        %v639 = vunpack.c.h.b16 %v593
        %v640 = vunpack.c.l.b16 %v594
        %v641 = vunpack.c.h.b16 %v594
        %v642 = vunpack.c.l.b16 %v595
        %v643 = vunpack.c.h.b16 %v595
        %v644 = vunpack.c.l.b16 %v596
        %v645 = vunpack.c.h.b16 %v596
        %v646 = vunpack.c.l.b16 %v597
        %v647 = vunpack.c.h.b16 %v597
        %v648 = vunpack.c.l.b16 %v598
        %v649 = vunpack.c.h.b16 %v598
        %v650 = vunpack.c.l.b16 %v599
        %v651 = vunpack.c.h.b16 %v599
        %v652 = vunpack.c.l.b16 %v600
        %v653 = vunpack.c.h.b16 %v600
        %v654 = vunpack.c.l.b16 %v601
        %v655 = vunpack.c.h.b16 %v601
        %v656 = vunpack.c.l.b16 %v602
        %v657 = vunpack.c.h.b16 %v602
        %v658 = vunpack.c.l.b16 %v603
        %v659 = vunpack.c.h.b16 %v603
        %v660 = vunpack.c.l.b16 %v604
        %v661 = vunpack.c.h.b16 %v604
        %v662 = vunpack.c.l.b16 %v605
        %v663 = vunpack.c.h.b16 %v605
        %v664 = vunpack.c.l.b16 %v606
        %v665 = vunpack.c.h.b16 %v606
        %v666 = vunpack.c.l.b16 %v607
        %v667 = vunpack.c.h.b16 %v607
        %v668 = vpack.c.b16 %v636, %v636
        %v669 = vpack.c.b16 %v637, %v637
        %v670 = vpack.c.b16 %v638, %v638
        %v671 = vpack.c.b16 %v639, %v639
        %v672 = vpack.c.b16 %v640, %v640
        %v673 = vpack.c.b16 %v641, %v641
        %v674 = vpack.c.b16 %v642, %v642
        %v675 = vpack.c.b16 %v643, %v643
        %v676 = vpack.c.b16 %v644, %v644
        %v677 = vpack.c.b16 %v645, %v645
        %v678 = vpack.c.b16 %v646, %v646
        %v679 = vpack.c.b16 %v647, %v647
        %v680 = vpack.c.b16 %v648, %v648
        %v681 = vpack.c.b16 %v649, %v649
        %v682 = vpack.c.b16 %v650, %v650
        %v683 = vpack.c.b16 %v651, %v651
        %v684 = vpack.c.b16 %v652, %v652
        %v685 = vpack.c.b16 %v653, %v653
        %v686 = vpack.c.b16 %v654, %v654
        %v687 = vpack.c.b16 %v655, %v655
        %v688 = vpack.c.b16 %v656, %v656
        %v689 = vpack.c.b16 %v657, %v657
        %v690 = vpack.c.b16 %v658, %v658
        %v691 = vpack.c.b16 %v659, %v659
        %v692 = vpack.c.b16 %v660, %v660
        %v693 = vpack.c.b16 %v661, %v661
        %v694 = vpack.c.b16 %v662, %v662
        %v695 = vpack.c.b16 %v663, %v663
        %v696 = vpack.c.b16 %v664, %v664
        %v697 = vpack.c.b16 %v665, %v665
        %v698 = vpack.c.b16 %v666, %v666
        %v699 = vpack.c.b16 %v667, %v667
        %732 = vst [vmem:[#allocation2 + $0x10] sm:$0xf] %v668
        %733 = vst [vmem:[#allocation2 + $0x14] sm:$0xf] %v669
        %734 = vst [vmem:[#allocation2 + $0x18] sm:$0xf] %v670
        %735 = vst [vmem:[#allocation2 + $0x1c] sm:$0xf] %v671
        %736 = vst [vmem:[#allocation2 + $0x20] sm:$0xf] %v672
        %737 = vst [vmem:[#allocation2 + $0x24] sm:$0xf] %v673
        %738 = vst [vmem:[#allocation2 + $0x28] sm:$0xf] %v674
        %739 = vst [vmem:[#allocation2 + $0x2c] sm:$0xf] %v675
        %740 = vst [vmem:[#allocation2 + $0x30] sm:$0xf] %v676
        %741 = vst [vmem:[#allocation2 + $0x34] sm:$0xf] %v677
        %742 = vst [vmem:[#allocation2 + $0x38] sm:$0xf] %v678
        %743 = vst [vmem:[#allocation2 + $0x3c] sm:$0xf] %v679
        %744 = vst [vmem:[#allocation2 + $0x40] sm:$0xf] %v680
        %745 = vst [vmem:[#allocation2 + $0x44] sm:$0xf] %v681
        %746 = vst [vmem:[#allocation2 + $0x48] sm:$0xf] %v682
        %747 = vst [vmem:[#allocation2 + $0x4c] sm:$0xf] %v683
        %748 = vst [vmem:[#allocation2 + $0x50] sm:$0xf] %v684
        %749 = vst [vmem:[#allocation2 + $0x54] sm:$0xf] %v685
        %750 = vst [vmem:[#allocation2 + $0x58] sm:$0xf] %v686
        %751 = vst [vmem:[#allocation2 + $0x5c] sm:$0xf] %v687
        %752 = vst [vmem:[#allocation2 + $0x60] sm:$0xf] %v688
        %753 = vst [vmem:[#allocation2 + $0x64] sm:$0xf] %v689
        %754 = vst [vmem:[#allocation2 + $0x68] sm:$0xf] %v690
        %755 = vst [vmem:[#allocation2 + $0x6c] sm:$0xf] %v691
        %756 = vst [vmem:[#allocation2 + $0x70] sm:$0xf] %v692
        %757 = vst [vmem:[#allocation2 + $0x74] sm:$0xf] %v693
        %758 = vst [vmem:[#allocation2 + $0x78] sm:$0xf] %v694
        %759 = vst [vmem:[#allocation2 + $0x7c] sm:$0xf] %v695
        %760 = vst [vmem:[#allocation2 + $0x80] sm:$0xf] %v696
        %761 = vst [vmem:[#allocation2 + $0x84] sm:$0xf] %v697
        %762 = vst [vmem:[#allocation2 + $0x88] sm:$0xf] %v698
        %763 = vst [vmem:[#allocation2 + $0x8c] sm:$0xf] %v699
        %v764 = vlaneseq
        %v765 = vshrl.u32 %v764, 7
        %v766 = vadd.s32 %v765, 8
        %v767 = vadd.s32 %v765, 16
        %v768 = vadd.s32 %v765, 24
        %v769 = vadd.s32 %v765, 32
        %v770 = vadd.s32 %v765, 40
        %v771 = vadd.s32 %v765, 48
        %v772 = vadd.s32 %v765, 56
        %v773 = vadd.s32 %v765, 64
        %v774 = vadd.s32 %v765, 72
        %v775 = vadd.s32 %v765, 80
        %v776 = vadd.s32 %v765, 88
        %v777 = vadd.s32 %v765, 96
        %v778 = vadd.s32 %v765, 104
        %v779 = vadd.s32 %v765, 112
        %v780 = vadd.s32 %v765, 120
        %v781 = vadd.s32 %v765, 128
        %v782 = vadd.s32 %v765, 136
        %v783 = vadd.s32 %v765, 144
        %v784 = vadd.s32 %v765, 152
        %v785 = vadd.s32 %v765, 160
        %v786 = vadd.s32 %v765, 168
        %v787 = vadd.s32 %v765, 176
        %v788 = vadd.s32 %v765, 184
        %v789 = vadd.s32 %v765, 192
        %v790 = vadd.s32 %v765, 200
        %v791 = vadd.s32 %v765, 208
        %v792 = vadd.s32 %v765, 216
        %v793 = vadd.s32 %v765, 224
        %v794 = vadd.s32 %v765, 232
        %v795 = vadd.s32 %v765, 240
        %v796 = vadd.s32 %v765, 248
        %vm797 = vcmp.lt.s32.totalorder %v765, 0
        %v798 = vsub.s32 0, %v765
        %v799 = vsel %vm797, %v798, %v765
        %v800 = vshrl.u32 %v799, 4
        %v801 = vand.u32 %v799, 15
        %v802 = vsub.s32 0, %v801
        %v803 = vsel %vm797, %v802, %v801
        %vm804 = vcmp.lt.s32.totalorder %v766, 0
        %v805 = vsub.s32 0, %v766
        %v806 = vsel %vm804, %v805, %v766
        %v807 = vshrl.u32 %v806, 4
        %v808 = vand.u32 %v806, 15
        %v809 = vsub.s32 0, %v808
        %v810 = vsel %vm804, %v809, %v808
        %vm811 = vcmp.lt.s32.totalorder %v767, 0
        %v812 = vsub.s32 0, %v767
        %v813 = vsel %vm811, %v812, %v767
        %v814 = vshrl.u32 %v813, 4
        %v815 = vand.u32 %v813, 15
        %v816 = vsub.s32 0, %v815
        %v817 = vsel %vm811, %v816, %v815
        %vm818 = vcmp.lt.s32.totalorder %v768, 0
        %v819 = vsub.s32 0, %v768
        %v820 = vsel %vm818, %v819, %v768
        %v821 = vshrl.u32 %v820, 4
        %v822 = vand.u32 %v820, 15
        %v823 = vsub.s32 0, %v822
        %v824 = vsel %vm818, %v823, %v822
        %vm825 = vcmp.lt.s32.totalorder %v769, 0
        %v826 = vsub.s32 0, %v769
        %v827 = vsel %vm825, %v826, %v769
        %v828 = vshrl.u32 %v827, 4
        %v829 = vand.u32 %v827, 15
        %v830 = vsub.s32 0, %v829
        %v831 = vsel %vm825, %v830, %v829
        %vm832 = vcmp.lt.s32.totalorder %v770, 0
        %v833 = vsub.s32 0, %v770
        %v834 = vsel %vm832, %v833, %v770
        %v835 = vshrl.u32 %v834, 4
        %v836 = vand.u32 %v834, 15
        %v837 = vsub.s32 0, %v836
        %v838 = vsel %vm832, %v837, %v836
        %vm839 = vcmp.lt.s32.totalorder %v771, 0
        %v840 = vsub.s32 0, %v771
        %v841 = vsel %vm839, %v840, %v771
        %v842 = vshrl.u32 %v841, 4
        %v843 = vand.u32 %v841, 15
        %v844 = vsub.s32 0, %v843
        %v845 = vsel %vm839, %v844, %v843
        %vm846 = vcmp.lt.s32.totalorder %v772, 0
        %v847 = vsub.s32 0, %v772
        %v848 = vsel %vm846, %v847, %v772
        %v849 = vshrl.u32 %v848, 4
        %v850 = vand.u32 %v848, 15
        %v851 = vsub.s32 0, %v850
        %v852 = vsel %vm846, %v851, %v850
        %vm853 = vcmp.lt.s32.totalorder %v773, 0
        %v854 = vsub.s32 0, %v773
        %v855 = vsel %vm853, %v854, %v773
        %v856 = vshrl.u32 %v855, 4
        %v857 = vand.u32 %v855, 15
        %v858 = vsub.s32 0, %v857
        %v859 = vsel %vm853, %v858, %v857
        %vm860 = vcmp.lt.s32.totalorder %v774, 0
        %v861 = vsub.s32 0, %v774
        %v862 = vsel %vm860, %v861, %v774
        %v863 = vshrl.u32 %v862, 4
        %v864 = vand.u32 %v862, 15
        %v865 = vsub.s32 0, %v864
        %v866 = vsel %vm860, %v865, %v864
        %vm867 = vcmp.lt.s32.totalorder %v775, 0
        %v868 = vsub.s32 0, %v775
        %v869 = vsel %vm867, %v868, %v775
        %v870 = vshrl.u32 %v869, 4
        %v871 = vand.u32 %v869, 15
        %v872 = vsub.s32 0, %v871
        %v873 = vsel %vm867, %v872, %v871
        %vm874 = vcmp.lt.s32.totalorder %v776, 0
        %v875 = vsub.s32 0, %v776
        %v876 = vsel %vm874, %v875, %v776
        %v877 = vshrl.u32 %v876, 4
        %v878 = vand.u32 %v876, 15
        %v879 = vsub.s32 0, %v878
        %v880 = vsel %vm874, %v879, %v878
        %vm881 = vcmp.lt.s32.totalorder %v777, 0
        %v882 = vsub.s32 0, %v777
        %v883 = vsel %vm881, %v882, %v777
        %v884 = vshrl.u32 %v883, 4
        %v885 = vand.u32 %v883, 15
        %v886 = vsub.s32 0, %v885
        %v887 = vsel %vm881, %v886, %v885
        %vm888 = vcmp.lt.s32.totalorder %v778, 0
        %v889 = vsub.s32 0, %v778
        %v890 = vsel %vm888, %v889, %v778
        %v891 = vshrl.u32 %v890, 4
        %v892 = vand.u32 %v890, 15
        %v893 = vsub.s32 0, %v892
        %v894 = vsel %vm888, %v893, %v892
        %vm895 = vcmp.lt.s32.totalorder %v779, 0
        %v896 = vsub.s32 0, %v779
        %v897 = vsel %vm895, %v896, %v779
        %v898 = vshrl.u32 %v897, 4
        %v899 = vand.u32 %v897, 15
        %v900 = vsub.s32 0, %v899
        %v901 = vsel %vm895, %v900, %v899
        %vm902 = vcmp.lt.s32.totalorder %v780, 0
        %v903 = vsub.s32 0, %v780
        %v904 = vsel %vm902, %v903, %v780
        %v905 = vshrl.u32 %v904, 4
        %v906 = vand.u32 %v904, 15
        %v907 = vsub.s32 0, %v906
        %v908 = vsel %vm902, %v907, %v906
        %vm909 = vcmp.lt.s32.totalorder %v781, 0
        %v910 = vsub.s32 0, %v781
        %v911 = vsel %vm909, %v910, %v781
        %v912 = vshrl.u32 %v911, 4
        %v913 = vand.u32 %v911, 15
        %v914 = vsub.s32 0, %v913
        %v915 = vsel %vm909, %v914, %v913
        %vm916 = vcmp.lt.s32.totalorder %v782, 0
        %v917 = vsub.s32 0, %v782
        %v918 = vsel %vm916, %v917, %v782
        %v919 = vshrl.u32 %v918, 4
        %v920 = vand.u32 %v918, 15
        %v921 = vsub.s32 0, %v920
        %v922 = vsel %vm916, %v921, %v920
        %vm923 = vcmp.lt.s32.totalorder %v783, 0
        %v924 = vsub.s32 0, %v783
        %v925 = vsel %vm923, %v924, %v783
        %v926 = vshrl.u32 %v925, 4
        %v927 = vand.u32 %v925, 15
        %v928 = vsub.s32 0, %v927
        %v929 = vsel %vm923, %v928, %v927
        %vm930 = vcmp.lt.s32.totalorder %v784, 0
        %v931 = vsub.s32 0, %v784
        %v932 = vsel %vm930, %v931, %v784
        %v933 = vshrl.u32 %v932, 4
        %v934 = vand.u32 %v932, 15
        %v935 = vsub.s32 0, %v934
        %v936 = vsel %vm930, %v935, %v934
        %vm937 = vcmp.lt.s32.totalorder %v785, 0
        %v938 = vsub.s32 0, %v785
        %v939 = vsel %vm937, %v938, %v785
        %v940 = vshrl.u32 %v939, 4
        %v941 = vand.u32 %v939, 15
        %v942 = vsub.s32 0, %v941
        %v943 = vsel %vm937, %v942, %v941
        %vm944 = vcmp.lt.s32.totalorder %v786, 0
        %v945 = vsub.s32 0, %v786
        %v946 = vsel %vm944, %v945, %v786
        %v947 = vshrl.u32 %v946, 4
        %v948 = vand.u32 %v946, 15
        %v949 = vsub.s32 0, %v948
        %v950 = vsel %vm944, %v949, %v948
        %vm951 = vcmp.lt.s32.totalorder %v787, 0
        %v952 = vsub.s32 0, %v787
        %v953 = vsel %vm951, %v952, %v787
        %v954 = vshrl.u32 %v953, 4
        %v955 = vand.u32 %v953, 15
        %v956 = vsub.s32 0, %v955
        %v957 = vsel %vm951, %v956, %v955
        %vm958 = vcmp.lt.s32.totalorder %v788, 0
        %v959 = vsub.s32 0, %v788
        %v960 = vsel %vm958, %v959, %v788
        %v961 = vshrl.u32 %v960, 4
        %v962 = vand.u32 %v960, 15
        %v963 = vsub.s32 0, %v962
        %v964 = vsel %vm958, %v963, %v962
        %vm965 = vcmp.lt.s32.totalorder %v789, 0
        %v966 = vsub.s32 0, %v789
        %v967 = vsel %vm965, %v966, %v789
        %v968 = vshrl.u32 %v967, 4
        %v969 = vand.u32 %v967, 15
        %v970 = vsub.s32 0, %v969
        %v971 = vsel %vm965, %v970, %v969
        %vm972 = vcmp.lt.s32.totalorder %v790, 0
        %v973 = vsub.s32 0, %v790
        %v974 = vsel %vm972, %v973, %v790
        %v975 = vshrl.u32 %v974, 4
        %v976 = vand.u32 %v974, 15
        %v977 = vsub.s32 0, %v976
        %v978 = vsel %vm972, %v977, %v976
        %vm979 = vcmp.lt.s32.totalorder %v791, 0
        %v980 = vsub.s32 0, %v791
        %v981 = vsel %vm979, %v980, %v791
        %v982 = vshrl.u32 %v981, 4
        %v983 = vand.u32 %v981, 15
        %v984 = vsub.s32 0, %v983
        %v985 = vsel %vm979, %v984, %v983
        %vm986 = vcmp.lt.s32.totalorder %v792, 0
        %v987 = vsub.s32 0, %v792
        %v988 = vsel %vm986, %v987, %v792
        %v989 = vshrl.u32 %v988, 4
        %v990 = vand.u32 %v988, 15
        %v991 = vsub.s32 0, %v990
        %v992 = vsel %vm986, %v991, %v990
        %vm993 = vcmp.lt.s32.totalorder %v793, 0
        %v994 = vsub.s32 0, %v793
        %v995 = vsel %vm993, %v994, %v793
        %v996 = vshrl.u32 %v995, 4
        %v997 = vand.u32 %v995, 15
        %v998 = vsub.s32 0, %v997
        %v999 = vsel %vm993, %v998, %v997
        %vm1000 = vcmp.lt.s32.totalorder %v794, 0
        %v1001 = vsub.s32 0, %v794
        %v1002 = vsel %vm1000, %v1001, %v794
        %v1003 = vshrl.u32 %v1002, 4
        %v1004 = vand.u32 %v1002, 15
        %v1005 = vsub.s32 0, %v1004
        %v1006 = vsel %vm1000, %v1005, %v1004
        %vm1007 = vcmp.lt.s32.totalorder %v795, 0
        %v1008 = vsub.s32 0, %v795
        %v1009 = vsel %vm1007, %v1008, %v795
        %v1010 = vshrl.u32 %v1009, 4
        %v1011 = vand.u32 %v1009, 15
        %v1012 = vsub.s32 0, %v1011
        %v1013 = vsel %vm1007, %v1012, %v1011
        %vm1014 = vcmp.lt.s32.totalorder %v796, 0
        %v1015 = vsub.s32 0, %v796
        %v1016 = vsel %vm1014, %v1015, %v796
        %v1017 = vshrl.u32 %v1016, 4
        %v1018 = vand.u32 %v1016, 15
        %v1019 = vsub.s32 0, %v1018
        %v1020 = vsel %vm1014, %v1019, %v1018
        %vm1021 = vcmp.ne.s32.totalorder %v803, 0
        %vm1022 = vcmp.ne.s32.totalorder %v810, 0
        %vm1023 = vcmp.ne.s32.totalorder %v817, 0
        %vm1024 = vcmp.ne.s32.totalorder %v824, 0
        %vm1025 = vcmp.ne.s32.totalorder %v831, 0
        %vm1026 = vcmp.ne.s32.totalorder %v838, 0
        %vm1027 = vcmp.ne.s32.totalorder %v845, 0
        %vm1028 = vcmp.ne.s32.totalorder %v852, 0
        %vm1029 = vcmp.ne.s32.totalorder %v859, 0
        %vm1030 = vcmp.ne.s32.totalorder %v866, 0
        %vm1031 = vcmp.ne.s32.totalorder %v873, 0
        %vm1032 = vcmp.ne.s32.totalorder %v880, 0
        %vm1033 = vcmp.ne.s32.totalorder %v887, 0
        %vm1034 = vcmp.ne.s32.totalorder %v894, 0
        %vm1035 = vcmp.ne.s32.totalorder %v901, 0
        %vm1036 = vcmp.ne.s32.totalorder %v908, 0
        %vm1037 = vcmp.ne.s32.totalorder %v915, 0
        %vm1038 = vcmp.ne.s32.totalorder %v922, 0
        %vm1039 = vcmp.ne.s32.totalorder %v929, 0
        %vm1040 = vcmp.ne.s32.totalorder %v936, 0
        %vm1041 = vcmp.ne.s32.totalorder %v943, 0
        %vm1042 = vcmp.ne.s32.totalorder %v950, 0
        %vm1043 = vcmp.ne.s32.totalorder %v957, 0
        %vm1044 = vcmp.ne.s32.totalorder %v964, 0
        %vm1045 = vcmp.ne.s32.totalorder %v971, 0
        %vm1046 = vcmp.ne.s32.totalorder %v978, 0
        %vm1047 = vcmp.ne.s32.totalorder %v985, 0
        %vm1048 = vcmp.ne.s32.totalorder %v992, 0
        %vm1049 = vcmp.ne.s32.totalorder %v999, 0
        %vm1050 = vcmp.ne.s32.totalorder %v1006, 0
        %vm1051 = vcmp.ne.s32.totalorder %v1013, 0
        %vm1052 = vcmp.ne.s32.totalorder %v1020, 0
        %vm1053 = vcmp.lt.s32.totalorder %v803, 0
        %vm1054 = vcmp.lt.s32.totalorder %v810, 0
        %vm1055 = vcmp.lt.s32.totalorder %v817, 0
        %vm1056 = vcmp.lt.s32.totalorder %v824, 0
        %vm1057 = vcmp.lt.s32.totalorder %v831, 0
        %vm1058 = vcmp.lt.s32.totalorder %v838, 0
        %vm1059 = vcmp.lt.s32.totalorder %v845, 0
        %vm1060 = vcmp.lt.s32.totalorder %v852, 0
        %vm1061 = vcmp.lt.s32.totalorder %v859, 0
        %vm1062 = vcmp.lt.s32.totalorder %v866, 0
        %vm1063 = vcmp.lt.s32.totalorder %v873, 0
        %vm1064 = vcmp.lt.s32.totalorder %v880, 0
        %vm1065 = vcmp.lt.s32.totalorder %v887, 0
        %vm1066 = vcmp.lt.s32.totalorder %v894, 0
        %vm1067 = vcmp.lt.s32.totalorder %v901, 0
        %vm1068 = vcmp.lt.s32.totalorder %v908, 0
        %vm1069 = vcmp.lt.s32.totalorder %v915, 0
        %vm1070 = vcmp.lt.s32.totalorder %v922, 0
        %vm1071 = vcmp.lt.s32.totalorder %v929, 0
        %vm1072 = vcmp.lt.s32.totalorder %v936, 0
        %vm1073 = vcmp.lt.s32.totalorder %v943, 0
        %vm1074 = vcmp.lt.s32.totalorder %v950, 0
        %vm1075 = vcmp.lt.s32.totalorder %v957, 0
        %vm1076 = vcmp.lt.s32.totalorder %v964, 0
        %vm1077 = vcmp.lt.s32.totalorder %v971, 0
        %vm1078 = vcmp.lt.s32.totalorder %v978, 0
        %vm1079 = vcmp.lt.s32.totalorder %v985, 0
        %vm1080 = vcmp.lt.s32.totalorder %v992, 0
        %vm1081 = vcmp.lt.s32.totalorder %v999, 0
        %vm1082 = vcmp.lt.s32.totalorder %v1006, 0
        %vm1083 = vcmp.lt.s32.totalorder %v1013, 0
        %vm1084 = vcmp.lt.s32.totalorder %v1020, 0
        %vm1085 = vmand %vm1053, %vm1021
        %vm1086 = vmand %vm1054, %vm1022
        %vm1087 = vmand %vm1055, %vm1023
        %vm1088 = vmand %vm1056, %vm1024
        %vm1089 = vmand %vm1057, %vm1025
        %vm1090 = vmand %vm1058, %vm1026
        %vm1091 = vmand %vm1059, %vm1027
        %vm1092 = vmand %vm1060, %vm1028
        %vm1093 = vmand %vm1061, %vm1029
        %vm1094 = vmand %vm1062, %vm1030
        %vm1095 = vmand %vm1063, %vm1031
        %vm1096 = vmand %vm1064, %vm1032
        %vm1097 = vmand %vm1065, %vm1033
        %vm1098 = vmand %vm1066, %vm1034
        %vm1099 = vmand %vm1067, %vm1035
        %vm1100 = vmand %vm1068, %vm1036
        %vm1101 = vmand %vm1069, %vm1037
        %vm1102 = vmand %vm1070, %vm1038
        %vm1103 = vmand %vm1071, %vm1039
        %vm1104 = vmand %vm1072, %vm1040
        %vm1105 = vmand %vm1073, %vm1041
        %vm1106 = vmand %vm1074, %vm1042
        %vm1107 = vmand %vm1075, %vm1043
        %vm1108 = vmand %vm1076, %vm1044
        %vm1109 = vmand %vm1077, %vm1045
        %vm1110 = vmand %vm1078, %vm1046
        %vm1111 = vmand %vm1079, %vm1047
        %vm1112 = vmand %vm1080, %vm1048
        %vm1113 = vmand %vm1081, %vm1049
        %vm1114 = vmand %vm1082, %vm1050
        %vm1115 = vmand %vm1083, %vm1051
        %vm1116 = vmand %vm1084, %vm1052
        %v1117 = vadd.s32 %v803, 16
        %v1118 = vadd.s32 %v810, 16
        %v1119 = vadd.s32 %v817, 16
        %v1120 = vadd.s32 %v824, 16
        %v1121 = vadd.s32 %v831, 16
        %v1122 = vadd.s32 %v838, 16
        %v1123 = vadd.s32 %v845, 16
        %v1124 = vadd.s32 %v852, 16
        %v1125 = vadd.s32 %v859, 16
        %v1126 = vadd.s32 %v866, 16
        %v1127 = vadd.s32 %v873, 16
        %v1128 = vadd.s32 %v880, 16
        %v1129 = vadd.s32 %v887, 16
        %v1130 = vadd.s32 %v894, 16
        %v1131 = vadd.s32 %v901, 16
        %v1132 = vadd.s32 %v908, 16
        %v1133 = vadd.s32 %v915, 16
        %v1134 = vadd.s32 %v922, 16
        %v1135 = vadd.s32 %v929, 16
        %v1136 = vadd.s32 %v936, 16
        %v1137 = vadd.s32 %v943, 16
        %v1138 = vadd.s32 %v950, 16
        %v1139 = vadd.s32 %v957, 16
        %v1140 = vadd.s32 %v964, 16
        %v1141 = vadd.s32 %v971, 16
        %v1142 = vadd.s32 %v978, 16
        %v1143 = vadd.s32 %v985, 16
        %v1144 = vadd.s32 %v992, 16
        %v1145 = vadd.s32 %v999, 16
        %v1146 = vadd.s32 %v1006, 16
        %v1147 = vadd.s32 %v1013, 16
        %v1148 = vadd.s32 %v1020, 16
        %v1149 = vsel %vm1085, %v1117, %v803
        %v1150 = vsel %vm1086, %v1118, %v810
        %v1151 = vsel %vm1087, %v1119, %v817
        %v1152 = vsel %vm1088, %v1120, %v824
        %v1153 = vsel %vm1089, %v1121, %v831
        %v1154 = vsel %vm1090, %v1122, %v838
        %v1155 = vsel %vm1091, %v1123, %v845
        %v1156 = vsel %vm1092, %v1124, %v852
        %v1157 = vsel %vm1093, %v1125, %v859
        %v1158 = vsel %vm1094, %v1126, %v866
        %v1159 = vsel %vm1095, %v1127, %v873
        %v1160 = vsel %vm1096, %v1128, %v880
        %v1161 = vsel %vm1097, %v1129, %v887
        %v1162 = vsel %vm1098, %v1130, %v894
        %v1163 = vsel %vm1099, %v1131, %v901
        %v1164 = vsel %vm1100, %v1132, %v908
        %v1165 = vsel %vm1101, %v1133, %v915
        %v1166 = vsel %vm1102, %v1134, %v922
        %v1167 = vsel %vm1103, %v1135, %v929
        %v1168 = vsel %vm1104, %v1136, %v936
        %v1169 = vsel %vm1105, %v1137, %v943
        %v1170 = vsel %vm1106, %v1138, %v950
        %v1171 = vsel %vm1107, %v1139, %v957
        %v1172 = vsel %vm1108, %v1140, %v964
        %v1173 = vsel %vm1109, %v1141, %v971
        %v1174 = vsel %vm1110, %v1142, %v978
        %v1175 = vsel %vm1111, %v1143, %v985
        %v1176 = vsel %vm1112, %v1144, %v992
        %v1177 = vsel %vm1113, %v1145, %v999
        %v1178 = vsel %vm1114, %v1146, %v1006
        %v1179 = vsel %vm1115, %v1147, %v1013
        %v1180 = vsel %vm1116, %v1148, %v1020
        %vm1181 = vcmp.ge.s32.totalorder %v1149, 1
        %vm1182 = vcmp.ge.s32.totalorder %v1150, 1
        %vm1183 = vcmp.ge.s32.totalorder %v1151, 1
        %vm1184 = vcmp.ge.s32.totalorder %v1152, 1
        %vm1185 = vcmp.ge.s32.totalorder %v1153, 1
        %vm1186 = vcmp.ge.s32.totalorder %v1154, 1
        %vm1187 = vcmp.ge.s32.totalorder %v1155, 1
        %vm1188 = vcmp.ge.s32.totalorder %v1156, 1
        %vm1189 = vcmp.ge.s32.totalorder %v1157, 1
        %vm1190 = vcmp.ge.s32.totalorder %v1158, 1
        %vm1191 = vcmp.ge.s32.totalorder %v1159, 1
        %vm1192 = vcmp.ge.s32.totalorder %v1160, 1
        %vm1193 = vcmp.ge.s32.totalorder %v1161, 1
        %vm1194 = vcmp.ge.s32.totalorder %v1162, 1
        %vm1195 = vcmp.ge.s32.totalorder %v1163, 1
        %vm1196 = vcmp.ge.s32.totalorder %v1164, 1
        %vm1197 = vcmp.ge.s32.totalorder %v1165, 1
        %vm1198 = vcmp.ge.s32.totalorder %v1166, 1
        %vm1199 = vcmp.ge.s32.totalorder %v1167, 1
        %vm1200 = vcmp.ge.s32.totalorder %v1168, 1
        %vm1201 = vcmp.ge.s32.totalorder %v1169, 1
        %vm1202 = vcmp.ge.s32.totalorder %v1170, 1
        %vm1203 = vcmp.ge.s32.totalorder %v1171, 1
        %vm1204 = vcmp.ge.s32.totalorder %v1172, 1
        %vm1205 = vcmp.ge.s32.totalorder %v1173, 1
        %vm1206 = vcmp.ge.s32.totalorder %v1174, 1
        %vm1207 = vcmp.ge.s32.totalorder %v1175, 1
        %vm1208 = vcmp.ge.s32.totalorder %v1176, 1
        %vm1209 = vcmp.ge.s32.totalorder %v1177, 1
        %vm1210 = vcmp.ge.s32.totalorder %v1178, 1
        %vm1211 = vcmp.ge.s32.totalorder %v1179, 1
        %vm1212 = vcmp.ge.s32.totalorder %v1180, 1
        %vm1213 = vcmp.lt.s32.totalorder %v1149, 15
        %vm1214 = vcmp.lt.s32.totalorder %v1150, 15
        %vm1215 = vcmp.lt.s32.totalorder %v1151, 15
        %vm1216 = vcmp.lt.s32.totalorder %v1152, 15
        %vm1217 = vcmp.lt.s32.totalorder %v1153, 15
        %vm1218 = vcmp.lt.s32.totalorder %v1154, 15
        %vm1219 = vcmp.lt.s32.totalorder %v1155, 15
        %vm1220 = vcmp.lt.s32.totalorder %v1156, 15
        %vm1221 = vcmp.lt.s32.totalorder %v1157, 15
        %vm1222 = vcmp.lt.s32.totalorder %v1158, 15
        %vm1223 = vcmp.lt.s32.totalorder %v1159, 15
        %vm1224 = vcmp.lt.s32.totalorder %v1160, 15
        %vm1225 = vcmp.lt.s32.totalorder %v1161, 15
        %vm1226 = vcmp.lt.s32.totalorder %v1162, 15
        %vm1227 = vcmp.lt.s32.totalorder %v1163, 15
        %vm1228 = vcmp.lt.s32.totalorder %v1164, 15
        %vm1229 = vcmp.lt.s32.totalorder %v1165, 15
        %vm1230 = vcmp.lt.s32.totalorder %v1166, 15
        %vm1231 = vcmp.lt.s32.totalorder %v1167, 15
        %vm1232 = vcmp.lt.s32.totalorder %v1168, 15
        %vm1233 = vcmp.lt.s32.totalorder %v1169, 15
        %vm1234 = vcmp.lt.s32.totalorder %v1170, 15
        %vm1235 = vcmp.lt.s32.totalorder %v1171, 15
        %vm1236 = vcmp.lt.s32.totalorder %v1172, 15
        %vm1237 = vcmp.lt.s32.totalorder %v1173, 15
        %vm1238 = vcmp.lt.s32.totalorder %v1174, 15
        %vm1239 = vcmp.lt.s32.totalorder %v1175, 15
        %vm1240 = vcmp.lt.s32.totalorder %v1176, 15
        %vm1241 = vcmp.lt.s32.totalorder %v1177, 15
        %vm1242 = vcmp.lt.s32.totalorder %v1178, 15
        %vm1243 = vcmp.lt.s32.totalorder %v1179, 15
        %vm1244 = vcmp.lt.s32.totalorder %v1180, 15
        %v1245 = vld [vmem:[#allocation2 + $0x4] sm:$0x8]
        %v1246 = vld [vmem:[#allocation2 + $0x8] sm:$0xf]
        %v1247 = vld [vmem:[#allocation2 + $0xc] sm:$0xf]
        %v1248 = vld [vmem:[#allocation2 + $0x10] sm:$0xf]
        %v1249 = vld [vmem:[#allocation2 + $0x14] sm:$0xf]
        %v1250 = vld [vmem:[#allocation2 + $0x18] sm:$0xf]
        %v1251 = vld [vmem:[#allocation2 + $0x1c] sm:$0xf]
        %v1252 = vld [vmem:[#allocation2 + $0x20] sm:$0xf]
        %v1253 = vld [vmem:[#allocation2 + $0x24] sm:$0xf]
        %v1254 = vld [vmem:[#allocation2 + $0x28] sm:$0xf]
        %v1255 = vld [vmem:[#allocation2 + $0x2c] sm:$0xf]
        %v1256 = vld [vmem:[#allocation2 + $0x30] sm:$0xf]
        %v1257 = vld [vmem:[#allocation2 + $0x34] sm:$0xf]
        %v1258 = vld [vmem:[#allocation2 + $0x38] sm:$0xf]
        %v1259 = vld [vmem:[#allocation2 + $0x3c] sm:$0xf]
        %v1260 = vld [vmem:[#allocation2 + $0x40] sm:$0xf]
        %v1261 = vld [vmem:[#allocation2 + $0x44] sm:$0xf]
        %v1262 = vld [vmem:[#allocation2 + $0x48] sm:$0xf]
        %v1263 = vld [vmem:[#allocation2 + $0x4c] sm:$0xf]
        %v1264 = vld [vmem:[#allocation2 + $0x50] sm:$0xf]
        %v1265 = vld [vmem:[#allocation2 + $0x54] sm:$0xf]
        %v1266 = vld [vmem:[#allocation2 + $0x58] sm:$0xf]
        %v1267 = vld [vmem:[#allocation2 + $0x5c] sm:$0xf]
        %v1268 = vld [vmem:[#allocation2 + $0x60] sm:$0xf]
        %v1269 = vld [vmem:[#allocation2 + $0x64] sm:$0xf]
        %v1270 = vld [vmem:[#allocation2 + $0x68] sm:$0xf]
        %v1271 = vld [vmem:[#allocation2 + $0x6c] sm:$0xf]
        %v1272 = vld [vmem:[#allocation2 + $0x70] sm:$0xf]
        %v1273 = vld [vmem:[#allocation2 + $0x74] sm:$0xf]
        %v1274 = vld [vmem:[#allocation2 + $0x78] sm:$0xf]
        %v1275 = vld [vmem:[#allocation2 + $0x7c] sm:$0xf]
        %v1276 = vld [vmem:[#allocation2 + $0x80] sm:$0xf]
        %v1277 = vld [vmem:[#allocation2 + $0x84] sm:$0xf]
        %v1278 = vsel %vm1181, 1, 0
        %v1279 = vsel %vm1182, 1, 0
        %v1280 = vsel %vm1183, 1, 0
        %v1281 = vsel %vm1184, 1, 0
        %v1282 = vsel %vm1185, 1, 0
        %v1283 = vsel %vm1186, 1, 0
        %v1284 = vsel %vm1187, 1, 0
        %v1285 = vsel %vm1188, 1, 0
        %v1286 = vsel %vm1189, 1, 0
        %v1287 = vsel %vm1190, 1, 0
        %v1288 = vsel %vm1191, 1, 0
        %v1289 = vsel %vm1192, 1, 0
        %v1290 = vsel %vm1193, 1, 0
        %v1291 = vsel %vm1194, 1, 0
        %v1292 = vsel %vm1195, 1, 0
        %v1293 = vsel %vm1196, 1, 0
        %v1294 = vsel %vm1197, 1, 0
        %v1295 = vsel %vm1198, 1, 0
        %v1296 = vsel %vm1199, 1, 0
        %v1297 = vsel %vm1200, 1, 0
        %v1298 = vsel %vm1201, 1, 0
        %v1299 = vsel %vm1202, 1, 0
        %v1300 = vsel %vm1203, 1, 0
        %v1301 = vsel %vm1204, 1, 0
        %v1302 = vsel %vm1205, 1, 0
        %v1303 = vsel %vm1206, 1, 0
        %v1304 = vsel %vm1207, 1, 0
        %v1305 = vsel %vm1208, 1, 0
        %v1306 = vsel %vm1209, 1, 0
        %v1307 = vsel %vm1210, 1, 0
        %v1308 = vsel %vm1211, 1, 0
        %v1309 = vsel %vm1212, 1, 0
        %vm1310 = vcmp.eq.s32.totalorder %v1278, 1
        %vm1311 = vcmp.eq.s32.totalorder %v1279, 1
        %vm1312 = vcmp.eq.s32.totalorder %v1280, 1
        %vm1313 = vcmp.eq.s32.totalorder %v1281, 1
        %vm1314 = vcmp.eq.s32.totalorder %v1282, 1
        %vm1315 = vcmp.eq.s32.totalorder %v1283, 1
        %vm1316 = vcmp.eq.s32.totalorder %v1284, 1
        %vm1317 = vcmp.eq.s32.totalorder %v1285, 1
        %vm1318 = vcmp.eq.s32.totalorder %v1286, 1
        %vm1319 = vcmp.eq.s32.totalorder %v1287, 1
        %vm1320 = vcmp.eq.s32.totalorder %v1288, 1
        %vm1321 = vcmp.eq.s32.totalorder %v1289, 1
        %vm1322 = vcmp.eq.s32.totalorder %v1290, 1
        %vm1323 = vcmp.eq.s32.totalorder %v1291, 1
        %vm1324 = vcmp.eq.s32.totalorder %v1292, 1
        %vm1325 = vcmp.eq.s32.totalorder %v1293, 1
        %vm1326 = vcmp.eq.s32.totalorder %v1294, 1
        %vm1327 = vcmp.eq.s32.totalorder %v1295, 1
        %vm1328 = vcmp.eq.s32.totalorder %v1296, 1
        %vm1329 = vcmp.eq.s32.totalorder %v1297, 1
        %vm1330 = vcmp.eq.s32.totalorder %v1298, 1
        %vm1331 = vcmp.eq.s32.totalorder %v1299, 1
        %vm1332 = vcmp.eq.s32.totalorder %v1300, 1
        %vm1333 = vcmp.eq.s32.totalorder %v1301, 1
        %vm1334 = vcmp.eq.s32.totalorder %v1302, 1
        %vm1335 = vcmp.eq.s32.totalorder %v1303, 1
        %vm1336 = vcmp.eq.s32.totalorder %v1304, 1
        %vm1337 = vcmp.eq.s32.totalorder %v1305, 1
        %vm1338 = vcmp.eq.s32.totalorder %v1306, 1
        %vm1339 = vcmp.eq.s32.totalorder %v1307, 1
        %vm1340 = vcmp.eq.s32.totalorder %v1308, 1
        %vm1341 = vcmp.eq.s32.totalorder %v1309, 1
        %vm1342 = vmpackc.low %vm1310, %vm1310
        %vm1343 = vmpackc.low %vm1311, %vm1311
        %vm1344 = vmpackc.low %vm1312, %vm1312
        %vm1345 = vmpackc.low %vm1313, %vm1313
        %vm1346 = vmpackc.low %vm1314, %vm1314
        %vm1347 = vmpackc.low %vm1315, %vm1315
        %vm1348 = vmpackc.low %vm1316, %vm1316
        %vm1349 = vmpackc.low %vm1317, %vm1317
        %vm1350 = vmpackc.low %vm1318, %vm1318
        %vm1351 = vmpackc.low %vm1319, %vm1319
        %vm1352 = vmpackc.low %vm1320, %vm1320
        %vm1353 = vmpackc.low %vm1321, %vm1321
        %vm1354 = vmpackc.low %vm1322, %vm1322
        %vm1355 = vmpackc.low %vm1323, %vm1323
        %vm1356 = vmpackc.low %vm1324, %vm1324
        %vm1357 = vmpackc.low %vm1325, %vm1325
        %vm1358 = vmpackc.low %vm1326, %vm1326
        %vm1359 = vmpackc.low %vm1327, %vm1327
        %vm1360 = vmpackc.low %vm1328, %vm1328
        %vm1361 = vmpackc.low %vm1329, %vm1329
        %vm1362 = vmpackc.low %vm1330, %vm1330
        %vm1363 = vmpackc.low %vm1331, %vm1331
        %vm1364 = vmpackc.low %vm1332, %vm1332
        %vm1365 = vmpackc.low %vm1333, %vm1333
        %vm1366 = vmpackc.low %vm1334, %vm1334
        %vm1367 = vmpackc.low %vm1335, %vm1335
        %vm1368 = vmpackc.low %vm1336, %vm1336
        %vm1369 = vmpackc.low %vm1337, %vm1337
        %vm1370 = vmpackc.low %vm1338, %vm1338
        %vm1371 = vmpackc.low %vm1339, %vm1339
        %vm1372 = vmpackc.low %vm1340, %vm1340
        %vm1373 = vmpackc.low %vm1341, %vm1341
        %v1374 = vsel %vm1342, 65537, 0
        %v1375 = vsel %vm1343, 65537, 0
        %v1376 = vsel %vm1344, 65537, 0
        %v1377 = vsel %vm1345, 65537, 0
        %v1378 = vsel %vm1346, 65537, 0
        %v1379 = vsel %vm1347, 65537, 0
        %v1380 = vsel %vm1348, 65537, 0
        %v1381 = vsel %vm1349, 65537, 0
        %v1382 = vsel %vm1350, 65537, 0
        %v1383 = vsel %vm1351, 65537, 0
        %v1384 = vsel %vm1352, 65537, 0
        %v1385 = vsel %vm1353, 65537, 0
        %v1386 = vsel %vm1354, 65537, 0
        %v1387 = vsel %vm1355, 65537, 0
        %v1388 = vsel %vm1356, 65537, 0
        %v1389 = vsel %vm1357, 65537, 0
        %v1390 = vsel %vm1358, 65537, 0
        %v1391 = vsel %vm1359, 65537, 0
        %v1392 = vsel %vm1360, 65537, 0
        %v1393 = vsel %vm1361, 65537, 0
        %v1394 = vsel %vm1362, 65537, 0
        %v1395 = vsel %vm1363, 65537, 0
        %v1396 = vsel %vm1364, 65537, 0
        %v1397 = vsel %vm1365, 65537, 0
        %v1398 = vsel %vm1366, 65537, 0
        %v1399 = vsel %vm1367, 65537, 0
        %v1400 = vsel %vm1368, 65537, 0
        %v1401 = vsel %vm1369, 65537, 0
        %v1402 = vsel %vm1370, 65537, 0
        %v1403 = vsel %vm1371, 65537, 0
        %v1404 = vsel %vm1372, 65537, 0
        %v1405 = vsel %vm1373, 65537, 0
        %vm1406 = vsmask.f32 3328
        %vm1407 = vsmask.f32 7440
        %vm1408 = vmor %vm1406, %vm1407
        %v1410 = vshll.u32 %v1374, 16
        %v1412 = vrot.slane %v1410, 5
        %v1413 = vshrl.u32 %v1374, 16
        %v1415 = vrot.slane %v1413, 4
        %v1416 = vor.u32 %v1415, %v1412
        %v1417 = vrot.slane %v1416, 4
        %v1419 = vshll.u32 %v1375, 16
        %v1421 = vrot.slane %v1419, 5
        %v1422 = vsel %vm1408, %v1417, %v1421
        %v1423 = vshrl.u32 %v1375, 16
        %v1425 = vrot.slane %v1423, 4
        %v1426 = vor.u32 %v1425, %v1421
        %v1427 = vrot.slane %v1426, 4
        %v1429 = vshll.u32 %v1376, 16
        %v1431 = vrot.slane %v1429, 5
        %v1432 = vsel %vm1408, %v1427, %v1431
        %v1433 = vshrl.u32 %v1376, 16
        %v1435 = vrot.slane %v1433, 4
        %v1436 = vor.u32 %v1435, %v1431
        %v1437 = vrot.slane %v1436, 4
        %v1439 = vshll.u32 %v1377, 16
        %v1441 = vrot.slane %v1439, 5
        %v1442 = vsel %vm1408, %v1437, %v1441
        %v1443 = vshrl.u32 %v1377, 16
        %v1445 = vrot.slane %v1443, 4
        %v1446 = vor.u32 %v1445, %v1441
        %v1447 = vrot.slane %v1446, 4
        %v1449 = vshll.u32 %v1378, 16
        %v1451 = vrot.slane %v1449, 5
        %v1452 = vsel %vm1408, %v1447, %v1451
        %v1453 = vshrl.u32 %v1378, 16
        %v1455 = vrot.slane %v1453, 4
        %v1456 = vor.u32 %v1455, %v1451
        %v1457 = vrot.slane %v1456, 4
        %v1459 = vshll.u32 %v1379, 16
        %v1461 = vrot.slane %v1459, 5
        %v1462 = vsel %vm1408, %v1457, %v1461
        %v1463 = vshrl.u32 %v1379, 16
        %v1465 = vrot.slane %v1463, 4
        %v1466 = vor.u32 %v1465, %v1461
        %v1467 = vrot.slane %v1466, 4
        %v1469 = vshll.u32 %v1380, 16
        %v1471 = vrot.slane %v1469, 5
        %v1472 = vsel %vm1408, %v1467, %v1471
        %v1473 = vshrl.u32 %v1380, 16
        %v1475 = vrot.slane %v1473, 4
        %v1476 = vor.u32 %v1475, %v1471
        %v1477 = vrot.slane %v1476, 4
        %v1479 = vshll.u32 %v1381, 16
        %v1481 = vrot.slane %v1479, 5
        %v1482 = vsel %vm1408, %v1477, %v1481
        %v1483 = vshrl.u32 %v1381, 16
        %v1485 = vrot.slane %v1483, 4
        %v1486 = vor.u32 %v1485, %v1481
        %v1487 = vrot.slane %v1486, 4
        %v1489 = vshll.u32 %v1382, 16
        %v1491 = vrot.slane %v1489, 5
        %v1492 = vsel %vm1408, %v1487, %v1491
        %v1493 = vshrl.u32 %v1382, 16
        %v1495 = vrot.slane %v1493, 4
        %v1496 = vor.u32 %v1495, %v1491
        %v1497 = vrot.slane %v1496, 4
        %v1499 = vshll.u32 %v1383, 16
        %v1501 = vrot.slane %v1499, 5
        %v1502 = vsel %vm1408, %v1497, %v1501
        %v1503 = vshrl.u32 %v1383, 16
        %v1505 = vrot.slane %v1503, 4
        %v1506 = vor.u32 %v1505, %v1501
        %v1507 = vrot.slane %v1506, 4
        %v1509 = vshll.u32 %v1384, 16
        %v1511 = vrot.slane %v1509, 5
        %v1512 = vsel %vm1408, %v1507, %v1511
        %v1513 = vshrl.u32 %v1384, 16
        %v1515 = vrot.slane %v1513, 4
        %v1516 = vor.u32 %v1515, %v1511
        %v1517 = vrot.slane %v1516, 4
        %v1519 = vshll.u32 %v1385, 16
        %v1521 = vrot.slane %v1519, 5
        %v1522 = vsel %vm1408, %v1517, %v1521
        %v1523 = vshrl.u32 %v1385, 16
        %v1525 = vrot.slane %v1523, 4
        %v1526 = vor.u32 %v1525, %v1521
        %v1527 = vrot.slane %v1526, 4
        %v1529 = vshll.u32 %v1386, 16
        %v1531 = vrot.slane %v1529, 5
        %v1532 = vsel %vm1408, %v1527, %v1531
        %v1533 = vshrl.u32 %v1386, 16
        %v1535 = vrot.slane %v1533, 4
        %v1536 = vor.u32 %v1535, %v1531
        %v1537 = vrot.slane %v1536, 4
        %v1539 = vshll.u32 %v1387, 16
        %v1541 = vrot.slane %v1539, 5
        %v1542 = vsel %vm1408, %v1537, %v1541
        %v1543 = vshrl.u32 %v1387, 16
        %v1545 = vrot.slane %v1543, 4
        %v1546 = vor.u32 %v1545, %v1541
        %v1547 = vrot.slane %v1546, 4
        %v1549 = vshll.u32 %v1388, 16
        %v1551 = vrot.slane %v1549, 5
        %v1552 = vsel %vm1408, %v1547, %v1551
        %v1553 = vshrl.u32 %v1388, 16
        %v1555 = vrot.slane %v1553, 4
        %v1556 = vor.u32 %v1555, %v1551
        %v1557 = vrot.slane %v1556, 4
        %v1559 = vshll.u32 %v1389, 16
        %v1561 = vrot.slane %v1559, 5
        %v1562 = vsel %vm1408, %v1557, %v1561
        %v1563 = vshrl.u32 %v1389, 16
        %v1565 = vrot.slane %v1563, 4
        %v1566 = vor.u32 %v1565, %v1561
        %v1567 = vrot.slane %v1566, 4
        %v1569 = vshll.u32 %v1390, 16
        %v1571 = vrot.slane %v1569, 5
        %v1572 = vsel %vm1408, %v1567, %v1571
        %v1573 = vshrl.u32 %v1390, 16
        %v1575 = vrot.slane %v1573, 4
        %v1576 = vor.u32 %v1575, %v1571
        %v1577 = vrot.slane %v1576, 4
        %v1579 = vshll.u32 %v1391, 16
        %v1581 = vrot.slane %v1579, 5
        %v1582 = vsel %vm1408, %v1577, %v1581
        %v1583 = vshrl.u32 %v1391, 16
        %v1585 = vrot.slane %v1583, 4
        %v1586 = vor.u32 %v1585, %v1581
        %v1587 = vrot.slane %v1586, 4
        %v1589 = vshll.u32 %v1392, 16
        %v1591 = vrot.slane %v1589, 5
        %v1592 = vsel %vm1408, %v1587, %v1591
        %v1593 = vshrl.u32 %v1392, 16
        %v1595 = vrot.slane %v1593, 4
        %v1596 = vor.u32 %v1595, %v1591
        %v1597 = vrot.slane %v1596, 4
        %v1599 = vshll.u32 %v1393, 16
        %v1601 = vrot.slane %v1599, 5
        %v1602 = vsel %vm1408, %v1597, %v1601
        %v1603 = vshrl.u32 %v1393, 16
        %v1605 = vrot.slane %v1603, 4
        %v1606 = vor.u32 %v1605, %v1601
        %v1607 = vrot.slane %v1606, 4
        %v1609 = vshll.u32 %v1394, 16
        %v1611 = vrot.slane %v1609, 5
        %v1612 = vsel %vm1408, %v1607, %v1611
        %v1613 = vshrl.u32 %v1394, 16
        %v1615 = vrot.slane %v1613, 4
        %v1616 = vor.u32 %v1615, %v1611
        %v1617 = vrot.slane %v1616, 4
        %v1619 = vshll.u32 %v1395, 16
        %v1621 = vrot.slane %v1619, 5
        %v1622 = vsel %vm1408, %v1617, %v1621
        %v1623 = vshrl.u32 %v1395, 16
        %v1625 = vrot.slane %v1623, 4
        %v1626 = vor.u32 %v1625, %v1621
        %v1627 = vrot.slane %v1626, 4
        %v1629 = vshll.u32 %v1396, 16
        %v1631 = vrot.slane %v1629, 5
        %v1632 = vsel %vm1408, %v1627, %v1631
        %v1633 = vshrl.u32 %v1396, 16
        %v1635 = vrot.slane %v1633, 4
        %v1636 = vor.u32 %v1635, %v1631
        %v1637 = vrot.slane %v1636, 4
        %v1639 = vshll.u32 %v1397, 16
        %v1641 = vrot.slane %v1639, 5
        %v1642 = vsel %vm1408, %v1637, %v1641
        %v1643 = vshrl.u32 %v1397, 16
        %v1645 = vrot.slane %v1643, 4
        %v1646 = vor.u32 %v1645, %v1641
        %v1647 = vrot.slane %v1646, 4
        %v1649 = vshll.u32 %v1398, 16
        %v1651 = vrot.slane %v1649, 5
        %v1652 = vsel %vm1408, %v1647, %v1651
        %v1653 = vshrl.u32 %v1398, 16
        %v1655 = vrot.slane %v1653, 4
        %v1656 = vor.u32 %v1655, %v1651
        %v1657 = vrot.slane %v1656, 4
        %v1659 = vshll.u32 %v1399, 16
        %v1661 = vrot.slane %v1659, 5
        %v1662 = vsel %vm1408, %v1657, %v1661
        %v1663 = vshrl.u32 %v1399, 16
        %v1665 = vrot.slane %v1663, 4
        %v1666 = vor.u32 %v1665, %v1661
        %v1667 = vrot.slane %v1666, 4
        %v1669 = vshll.u32 %v1400, 16
        %v1671 = vrot.slane %v1669, 5
        %v1672 = vsel %vm1408, %v1667, %v1671
        %v1673 = vshrl.u32 %v1400, 16
        %v1675 = vrot.slane %v1673, 4
        %v1676 = vor.u32 %v1675, %v1671
        %v1677 = vrot.slane %v1676, 4
        %v1679 = vshll.u32 %v1401, 16
        %v1681 = vrot.slane %v1679, 5
        %v1682 = vsel %vm1408, %v1677, %v1681
        %v1683 = vshrl.u32 %v1401, 16
        %v1685 = vrot.slane %v1683, 4
        %v1686 = vor.u32 %v1685, %v1681
        %v1687 = vrot.slane %v1686, 4
        %v1689 = vshll.u32 %v1402, 16
        %v1691 = vrot.slane %v1689, 5
        %v1692 = vsel %vm1408, %v1687, %v1691
        %v1693 = vshrl.u32 %v1402, 16
        %v1695 = vrot.slane %v1693, 4
        %v1696 = vor.u32 %v1695, %v1691
        %v1697 = vrot.slane %v1696, 4
        %v1699 = vshll.u32 %v1403, 16
        %v1701 = vrot.slane %v1699, 5
        %v1702 = vsel %vm1408, %v1697, %v1701
        %v1703 = vshrl.u32 %v1403, 16
        %v1705 = vrot.slane %v1703, 4
        %v1706 = vor.u32 %v1705, %v1701
        %v1707 = vrot.slane %v1706, 4
        %v1709 = vshll.u32 %v1404, 16
        %v1711 = vrot.slane %v1709, 5
        %v1712 = vsel %vm1408, %v1707, %v1711
        %v1713 = vshrl.u32 %v1404, 16
        %v1715 = vrot.slane %v1713, 4
        %v1716 = vor.u32 %v1715, %v1711
        %v1717 = vrot.slane %v1716, 4
        %v1719 = vshll.u32 %v1405, 16
        %v1721 = vrot.slane %v1719, 5
        %v1722 = vsel %vm1408, %v1717, %v1721
        %v1723 = vshrl.u32 %v1405, 16
        %v1725 = vrot.slane %v1723, 4
        %v1726 = vor.u32 %v1725, %v1721
        %v1727 = vrot.slane %v1726, 4
        %vm1728 = vcmp.ne.s16.totalorder %v1412, 0
        %vm1729 = vcmp.ne.s16.totalorder %v1422, 0
        %vm1730 = vcmp.ne.s16.totalorder %v1432, 0
        %vm1731 = vcmp.ne.s16.totalorder %v1442, 0
        %vm1732 = vcmp.ne.s16.totalorder %v1452, 0
        %vm1733 = vcmp.ne.s16.totalorder %v1462, 0
        %vm1734 = vcmp.ne.s16.totalorder %v1472, 0
        %vm1735 = vcmp.ne.s16.totalorder %v1482, 0
        %vm1736 = vcmp.ne.s16.totalorder %v1492, 0
        %vm1737 = vcmp.ne.s16.totalorder %v1502, 0
        %vm1738 = vcmp.ne.s16.totalorder %v1512, 0
        %vm1739 = vcmp.ne.s16.totalorder %v1522, 0
        %vm1740 = vcmp.ne.s16.totalorder %v1532, 0
        %vm1741 = vcmp.ne.s16.totalorder %v1542, 0
        %vm1742 = vcmp.ne.s16.totalorder %v1552, 0
        %vm1743 = vcmp.ne.s16.totalorder %v1562, 0
        %vm1744 = vcmp.ne.s16.totalorder %v1572, 0
        %vm1745 = vcmp.ne.s16.totalorder %v1582, 0
        %vm1746 = vcmp.ne.s16.totalorder %v1592, 0
        %vm1747 = vcmp.ne.s16.totalorder %v1602, 0
        %vm1748 = vcmp.ne.s16.totalorder %v1612, 0
        %vm1749 = vcmp.ne.s16.totalorder %v1622, 0
        %vm1750 = vcmp.ne.s16.totalorder %v1632, 0
        %vm1751 = vcmp.ne.s16.totalorder %v1642, 0
        %vm1752 = vcmp.ne.s16.totalorder %v1652, 0
        %vm1753 = vcmp.ne.s16.totalorder %v1662, 0
        %vm1754 = vcmp.ne.s16.totalorder %v1672, 0
        %vm1755 = vcmp.ne.s16.totalorder %v1682, 0
        %vm1756 = vcmp.ne.s16.totalorder %v1692, 0
        %vm1757 = vcmp.ne.s16.totalorder %v1702, 0
        %vm1758 = vcmp.ne.s16.totalorder %v1712, 0
        %vm1759 = vcmp.ne.s16.totalorder %v1722, 0
        %vm1760 = vcmp.ne.s16.totalorder %v1727, 0
        %v1761 = vsel %vm1728, %v1245, 0
        %v1762 = vsel %vm1729, %v1246, 0
        %v1763 = vsel %vm1730, %v1247, 0
        %v1764 = vsel %vm1731, %v1248, 0
        %v1765 = vsel %vm1732, %v1249, 0
        %v1766 = vsel %vm1733, %v1250, 0
        %v1767 = vsel %vm1734, %v1251, 0
        %v1768 = vsel %vm1735, %v1252, 0
        %v1769 = vsel %vm1736, %v1253, 0
        %v1770 = vsel %vm1737, %v1254, 0
        %v1771 = vsel %vm1738, %v1255, 0
        %v1772 = vsel %vm1739, %v1256, 0
        %v1773 = vsel %vm1740, %v1257, 0
        %v1774 = vsel %vm1741, %v1258, 0
        %v1775 = vsel %vm1742, %v1259, 0
        %v1776 = vsel %vm1743, %v1260, 0
        %v1777 = vsel %vm1744, %v1261, 0
        %v1778 = vsel %vm1745, %v1262, 0
        %v1779 = vsel %vm1746, %v1263, 0
        %v1780 = vsel %vm1747, %v1264, 0
        %v1781 = vsel %vm1748, %v1265, 0
        %v1782 = vsel %vm1749, %v1266, 0
        %v1783 = vsel %vm1750, %v1267, 0
        %v1784 = vsel %vm1751, %v1268, 0
        %v1785 = vsel %vm1752, %v1269, 0
        %v1786 = vsel %vm1753, %v1270, 0
        %v1787 = vsel %vm1754, %v1271, 0
        %v1788 = vsel %vm1755, %v1272, 0
        %v1789 = vsel %vm1756, %v1273, 0
        %v1790 = vsel %vm1757, %v1274, 0
        %v1791 = vsel %vm1758, %v1275, 0
        %v1792 = vsel %vm1759, %v1276, 0
        %v1793 = vsel %vm1760, %v1277, 0
        %v1794 = vld [vmem:[%s3] sm:$0xf]
        %v1795 = vld [vmem:[%s3 + $0x4] sm:$0xf]
        %v1796 = vld [vmem:[%s3 + $0x8] sm:$0xf]
        %v1797 = vld [vmem:[%s3 + $0xc] sm:$0xf]
        %v1798 = vld [vmem:[%s3 + $0x10] sm:$0xf]
        %v1799 = vld [vmem:[%s3 + $0x14] sm:$0xf]
        %v1800 = vld [vmem:[%s3 + $0x18] sm:$0xf]
        %v1801 = vld [vmem:[%s3 + $0x1c] sm:$0xf]
        %v1802 = vld [vmem:[%s3 + $0x20] sm:$0xf]
        %v1803 = vld [vmem:[%s3 + $0x24] sm:$0xf]
        %v1804 = vld [vmem:[%s3 + $0x28] sm:$0xf]
        %v1805 = vld [vmem:[%s3 + $0x2c] sm:$0xf]
        %v1806 = vld [vmem:[%s3 + $0x30] sm:$0xf]
        %v1807 = vld [vmem:[%s3 + $0x34] sm:$0xf]
        %v1808 = vld [vmem:[%s3 + $0x38] sm:$0xf]
        %v1809 = vld [vmem:[%s3 + $0x3c] sm:$0xf]
        %v1810 = vld [vmem:[%s3 + $0x40] sm:$0xf]
        %v1811 = vld [vmem:[%s3 + $0x44] sm:$0xf]
        %v1812 = vld [vmem:[%s3 + $0x48] sm:$0xf]
        %v1813 = vld [vmem:[%s3 + $0x4c] sm:$0xf]
        %v1814 = vld [vmem:[%s3 + $0x50] sm:$0xf]
        %v1815 = vld [vmem:[%s3 + $0x54] sm:$0xf]
        %v1816 = vld [vmem:[%s3 + $0x58] sm:$0xf]
        %v1817 = vld [vmem:[%s3 + $0x5c] sm:$0xf]
        %v1818 = vld [vmem:[%s3 + $0x60] sm:$0xf]
        %v1819 = vld [vmem:[%s3 + $0x64] sm:$0xf]
        %v1820 = vld [vmem:[%s3 + $0x68] sm:$0xf]
        %v1821 = vld [vmem:[%s3 + $0x6c] sm:$0xf]
        %v1822 = vld [vmem:[%s3 + $0x70] sm:$0xf]
        %v1823 = vld [vmem:[%s3 + $0x74] sm:$0xf]
        %v1824 = vld [vmem:[%s3 + $0x78] sm:$0xf]
        %v1825 = vld [vmem:[%s3 + $0x7c] sm:$0xf]
        %v1858 = vunpack.c.l.b16 %v1246
        %v1859 = vunpack.c.l.b16 %v1247
        %v1860 = vunpack.c.l.b16 %v1248
        %v1861 = vunpack.c.l.b16 %v1249
        %v1862 = vunpack.c.l.b16 %v1250
        %v1863 = vunpack.c.l.b16 %v1251
        %v1864 = vunpack.c.l.b16 %v1252
        %v1865 = vunpack.c.l.b16 %v1253
        %v1866 = vunpack.c.l.b16 %v1254
        %v1867 = vunpack.c.l.b16 %v1255
        %v1868 = vunpack.c.l.b16 %v1256
        %v1869 = vunpack.c.l.b16 %v1257
        %v1870 = vunpack.c.l.b16 %v1258
        %v1871 = vunpack.c.l.b16 %v1259
        %v1872 = vunpack.c.l.b16 %v1260
        %v1873 = vunpack.c.l.b16 %v1261
        %v1874 = vunpack.c.l.b16 %v1262
        %v1875 = vunpack.c.l.b16 %v1263
        %v1876 = vunpack.c.l.b16 %v1264
        %v1877 = vunpack.c.l.b16 %v1265
        %v1878 = vunpack.c.l.b16 %v1266
        %v1879 = vunpack.c.l.b16 %v1267
        %v1880 = vunpack.c.l.b16 %v1268
        %v1881 = vunpack.c.l.b16 %v1269
        %v1882 = vunpack.c.l.b16 %v1270
        %v1883 = vunpack.c.l.b16 %v1271
        %v1884 = vunpack.c.l.b16 %v1272
        %v1885 = vunpack.c.l.b16 %v1273
        %v1886 = vunpack.c.l.b16 %v1274
        %v1887 = vunpack.c.l.b16 %v1275
        %v1888 = vunpack.c.l.b16 %v1276
        %v1889 = vunpack.c.l.b16 %v1277
        %v1890 = vpack.c.b16 %v1859, %v1858
        %v1891 = vpack.c.b16 %v1861, %v1860
        %v1892 = vpack.c.b16 %v1863, %v1862
        %v1893 = vpack.c.b16 %v1865, %v1864
        %v1894 = vpack.c.b16 %v1867, %v1866
        %v1895 = vpack.c.b16 %v1869, %v1868
        %v1896 = vpack.c.b16 %v1871, %v1870
        %v1897 = vpack.c.b16 %v1873, %v1872
        %v1898 = vpack.c.b16 %v1875, %v1874
        %v1899 = vpack.c.b16 %v1877, %v1876
        %v1900 = vpack.c.b16 %v1879, %v1878
        %v1901 = vpack.c.b16 %v1881, %v1880
        %v1902 = vpack.c.b16 %v1883, %v1882
        %v1903 = vpack.c.b16 %v1885, %v1884
        %v1904 = vpack.c.b16 %v1887, %v1886
        %v1905 = vpack.c.b16 %v1889, %v1888
        %v1938 = vunpack.c.l.b16 %v1810
        %v1939 = vunpack.c.l.b16 %v1811
        %v1940 = vunpack.c.l.b16 %v1812
        %v1941 = vunpack.c.l.b16 %v1813
        %v1942 = vunpack.c.l.b16 %v1814
        %v1943 = vunpack.c.l.b16 %v1815
        %v1944 = vunpack.c.l.b16 %v1816
        %v1945 = vunpack.c.l.b16 %v1817
        %v1946 = vunpack.c.l.b16 %v1818
        %v1947 = vunpack.c.l.b16 %v1819
        %v1948 = vunpack.c.l.b16 %v1820
        %v1949 = vunpack.c.l.b16 %v1821
        %v1950 = vunpack.c.l.b16 %v1822
        %v1951 = vunpack.c.l.b16 %v1823
        %v1952 = vunpack.c.l.b16 %v1824
        %v1953 = vunpack.c.l.b16 %v1825
        %v1954 = vpack.c.b16 %v1939, %v1938
        %v1955 = vpack.c.b16 %v1941, %v1940
        %v1956 = vpack.c.b16 %v1943, %v1942
        %v1957 = vpack.c.b16 %v1945, %v1944
        %v1958 = vpack.c.b16 %v1947, %v1946
        %v1959 = vpack.c.b16 %v1949, %v1948
        %v1960 = vpack.c.b16 %v1951, %v1950
        %v1961 = vpack.c.b16 %v1953, %v1952
        %1970 = vmatprep.subr.bf16.mxu0 0
        %1971 = vmatpush1.bf16.msra.mxu0 %v1961
        %1972 = vmatprep.subr.bf16.mxu0 0
        %1973 = vmatpush1.bf16.msra.mxu0 %v1960
        %1974 = vmatprep.subr.bf16.mxu0 0
        %1975 = vmatpush1.bf16.msra.mxu0 %v1959
        %1976 = vmatprep.subr.bf16.mxu0 0
        %1977 = vmatpush1.bf16.msra.mxu0 %v1958
        %1978 = vmatprep.subr.bf16.mxu0 0
        %1979 = vmatpush1.bf16.msra.mxu0 %v1957
        %1980 = vmatprep.subr.bf16.mxu0 0
        %1981 = vmatpush1.bf16.msra.mxu0 %v1956
        %1982 = vmatprep.subr.bf16.mxu0 0
        %1983 = vmatpush1.bf16.msra.mxu0 %v1955
        %1984 = vmatprep.subr.bf16.mxu0 0
        %1985 = vmatpush1.bf16.msra.mxu0 %v1954
        %1986 = vmatprep.subr.bf16.mxu0 0
        %1987 = vmatpush2.bf16.msra.mxu0 0
        %1988 = vmatprep.subr.bf16.mxu0 0
        %1989 = vmatpush2.bf16.msra.mxu0 0
        %1990 = vmatprep.subr.bf16.mxu0 0
        %1991 = vmatpush2.bf16.msra.mxu0 0
        %1992 = vmatprep.subr.bf16.mxu0 0
        %1993 = vmatpush2.bf16.msra.mxu0 0
        %1994 = vmatprep.subr.bf16.mxu0 0
        %1995 = vmatpush2.bf16.msra.mxu0 0
        %1996 = vmatprep.subr.bf16.mxu0 0
        %1997 = vmatpush2.bf16.msra.mxu0 0
        %1998 = vmatprep.subr.bf16.mxu0 0
        %1999 = vmatpush2.bf16.msra.mxu0 0
        %2000 = vmatprep.subr.bf16.mxu0 0
        %2001 = vmatpush2.bf16.msra.mxu0 0
        %2002 = vmatprep.mubr.bf16.mxu0 0
        %2003 = vmatmul.mubr.bf16.gmra.mxu0 %v1890
        %v2004 = vpop.f32.mrf.mxu0
        %v2005 = vadd.f32 0.0, %v2004
        %v2006 = vpop.f32.mrf.mxu0
        %v2007 = vpop.f32.mrf.mxu0
        %v2008 = vadd.f32 0.0, %v2007
        %v2009 = vpop.f32.mrf.mxu0
        %2010 = vmatprep.mubr.bf16.mxu0 0
        %2011 = vmatmul.mubr.bf16.gmra.mxu0 %v1891
        %v2012 = vpop.f32.mrf.mxu0
        %v2013 = vadd.f32 0.0, %v2012
        %v2014 = vpop.f32.mrf.mxu0
        %v2015 = vpop.f32.mrf.mxu0
        %v2016 = vadd.f32 0.0, %v2015
        %v2017 = vpop.f32.mrf.mxu0
        %2018 = vmatprep.mubr.bf16.mxu0 0
        %2019 = vmatmul.mubr.bf16.gmra.mxu0 %v1892
        %v2020 = vpop.f32.mrf.mxu0
        %v2021 = vadd.f32 0.0, %v2020
        %v2022 = vpop.f32.mrf.mxu0
        %v2023 = vpop.f32.mrf.mxu0
        %v2024 = vadd.f32 0.0, %v2023
        %v2025 = vpop.f32.mrf.mxu0
        %2026 = vmatprep.mubr.bf16.mxu0 0
        %2027 = vmatmul.mubr.bf16.gmra.mxu0 %v1893
        %v2028 = vpop.f32.mrf.mxu0
        %v2029 = vadd.f32 0.0, %v2028
        %v2030 = vpop.f32.mrf.mxu0
        %v2031 = vpop.f32.mrf.mxu0
        %v2032 = vadd.f32 0.0, %v2031
        %v2033 = vpop.f32.mrf.mxu0
        %2034 = vmatprep.mubr.bf16.mxu0 0
        %2035 = vmatmul.mubr.bf16.gmra.mxu0 %v1894
        %v2036 = vpop.f32.mrf.mxu0
        %v2037 = vadd.f32 0.0, %v2036
        %v2038 = vpop.f32.mrf.mxu0
        %v2039 = vpop.f32.mrf.mxu0
        %v2040 = vadd.f32 0.0, %v2039
        %v2041 = vpop.f32.mrf.mxu0
        %2042 = vmatprep.mubr.bf16.mxu0 0
        %2043 = vmatmul.mubr.bf16.gmra.mxu0 %v1895
        %v2044 = vpop.f32.mrf.mxu0
        %v2045 = vadd.f32 0.0, %v2044
        %v2046 = vpop.f32.mrf.mxu0
        %v2047 = vpop.f32.mrf.mxu0
        %v2048 = vadd.f32 0.0, %v2047
        %v2049 = vpop.f32.mrf.mxu0
        %2050 = vmatprep.mubr.bf16.mxu0 0
        %2051 = vmatmul.mubr.bf16.gmra.mxu0 %v1896
        %v2052 = vpop.f32.mrf.mxu0
        %v2053 = vadd.f32 0.0, %v2052
        %v2054 = vpop.f32.mrf.mxu0
        %v2055 = vpop.f32.mrf.mxu0
        %v2056 = vadd.f32 0.0, %v2055
        %v2057 = vpop.f32.mrf.mxu0
        %2058 = vmatprep.mubr.bf16.mxu0 0
        %2059 = vmatmul.mubr.bf16.gmra.mxu0 %v1897
        %v2060 = vpop.f32.mrf.mxu0
        %v2061 = vadd.f32 0.0, %v2060
        %v2062 = vpop.f32.mrf.mxu0
        %v2063 = vpop.f32.mrf.mxu0
        %v2064 = vadd.f32 0.0, %v2063
        %v2065 = vpop.f32.mrf.mxu0
        %2066 = vmatprep.mubr.bf16.mxu0 0
        %2067 = vmatmul.mubr.bf16.gmra.mxu0 %v1898
        %v2068 = vpop.f32.mrf.mxu0
        %v2069 = vadd.f32 0.0, %v2068
        %v2070 = vpop.f32.mrf.mxu0
        %v2071 = vpop.f32.mrf.mxu0
        %v2072 = vadd.f32 0.0, %v2071
        %v2073 = vpop.f32.mrf.mxu0
        %2074 = vmatprep.mubr.bf16.mxu0 0
        %2075 = vmatmul.mubr.bf16.gmra.mxu0 %v1899
        %v2076 = vpop.f32.mrf.mxu0
        %v2077 = vadd.f32 0.0, %v2076
        %v2078 = vpop.f32.mrf.mxu0
        %v2079 = vpop.f32.mrf.mxu0
        %v2080 = vadd.f32 0.0, %v2079
        %v2081 = vpop.f32.mrf.mxu0
        %2082 = vmatprep.mubr.bf16.mxu0 0
        %2083 = vmatmul.mubr.bf16.gmra.mxu0 %v1900
        %v2084 = vpop.f32.mrf.mxu0
        %v2085 = vadd.f32 0.0, %v2084
        %v2086 = vpop.f32.mrf.mxu0
        %v2087 = vpop.f32.mrf.mxu0
        %v2088 = vadd.f32 0.0, %v2087
        %v2089 = vpop.f32.mrf.mxu0
        %2090 = vmatprep.mubr.bf16.mxu0 0
        %2091 = vmatmul.mubr.bf16.gmra.mxu0 %v1901
        %v2092 = vpop.f32.mrf.mxu0
        %v2093 = vadd.f32 0.0, %v2092
        %v2094 = vpop.f32.mrf.mxu0
        %v2095 = vpop.f32.mrf.mxu0
        %v2096 = vadd.f32 0.0, %v2095
        %v2097 = vpop.f32.mrf.mxu0
        %2098 = vmatprep.mubr.bf16.mxu0 0
        %2099 = vmatmul.mubr.bf16.gmra.mxu0 %v1902
        %v2100 = vpop.f32.mrf.mxu0
        %v2101 = vadd.f32 0.0, %v2100
        %v2102 = vpop.f32.mrf.mxu0
        %v2103 = vpop.f32.mrf.mxu0
        %v2104 = vadd.f32 0.0, %v2103
        %v2105 = vpop.f32.mrf.mxu0
        %2106 = vmatprep.mubr.bf16.mxu0 0
        %2107 = vmatmul.mubr.bf16.gmra.mxu0 %v1903
        %v2108 = vpop.f32.mrf.mxu0
        %v2109 = vadd.f32 0.0, %v2108
        %v2110 = vpop.f32.mrf.mxu0
        %v2111 = vpop.f32.mrf.mxu0
        %v2112 = vadd.f32 0.0, %v2111
        %v2113 = vpop.f32.mrf.mxu0
        %2114 = vmatprep.mubr.bf16.mxu0 0
        %2115 = vmatmul.mubr.bf16.gmra.mxu0 %v1904
        %v2116 = vpop.f32.mrf.mxu0
        %v2117 = vadd.f32 0.0, %v2116
        %v2118 = vpop.f32.mrf.mxu0
        %v2119 = vpop.f32.mrf.mxu0
        %v2120 = vadd.f32 0.0, %v2119
        %v2121 = vpop.f32.mrf.mxu0
        %2122 = vmatprep.mubr.bf16.mxu0 0
        %2123 = vmatmul.mubr.bf16.gmra.mxu0 %v1905
        %v2124 = vpop.f32.mrf.mxu0
        %v2125 = vadd.f32 0.0, %v2124
        %v2126 = vpop.f32.mrf.mxu0
        %v2127 = vpop.f32.mrf.mxu0
        %v2128 = vadd.f32 0.0, %v2127
        %v2129 = vpop.f32.mrf.mxu0
        %2130 = vdwg.mxu0
        %v2164 = vunpack.c.l.b16 %v1761
        %v2165 = vunpack.c.l.b16 %v1762
        %v2166 = vunpack.c.l.b16 %v1763
        %v2167 = vunpack.c.l.b16 %v1764
        %v2168 = vunpack.c.l.b16 %v1765
        %v2169 = vunpack.c.l.b16 %v1766
        %v2170 = vunpack.c.l.b16 %v1767
        %v2171 = vunpack.c.l.b16 %v1768
        %v2172 = vunpack.c.l.b16 %v1769
        %v2173 = vunpack.c.l.b16 %v1770
        %v2174 = vunpack.c.l.b16 %v1771
        %v2175 = vunpack.c.l.b16 %v1772
        %v2176 = vunpack.c.l.b16 %v1773
        %v2177 = vunpack.c.l.b16 %v1774
        %v2178 = vunpack.c.l.b16 %v1775
        %v2179 = vunpack.c.l.b16 %v1776
        %v2180 = vunpack.c.l.b16 %v1777
        %v2181 = vunpack.c.l.b16 %v1778
        %v2182 = vunpack.c.l.b16 %v1779
        %v2183 = vunpack.c.l.b16 %v1780
        %v2184 = vunpack.c.l.b16 %v1781
        %v2185 = vunpack.c.l.b16 %v1782
        %v2186 = vunpack.c.l.b16 %v1783
        %v2187 = vunpack.c.l.b16 %v1784
        %v2188 = vunpack.c.l.b16 %v1785
        %v2189 = vunpack.c.l.b16 %v1786
        %v2190 = vunpack.c.l.b16 %v1787
        %v2191 = vunpack.c.l.b16 %v1788
        %v2192 = vunpack.c.l.b16 %v1789
        %v2193 = vunpack.c.l.b16 %v1790
        %v2194 = vunpack.c.l.b16 %v1791
        %v2195 = vunpack.c.l.b16 %v1792
        %v2196 = vunpack.c.l.b16 %v1793
        %v2197 = vpack.c.b16 %v2165, %v2164
        %v2198 = vpack.c.b16 %v2167, %v2166
        %v2199 = vpack.c.b16 %v2169, %v2168
        %v2200 = vpack.c.b16 %v2171, %v2170
        %v2201 = vpack.c.b16 %v2173, %v2172
        %v2202 = vpack.c.b16 %v2175, %v2174
        %v2203 = vpack.c.b16 %v2177, %v2176
        %v2204 = vpack.c.b16 %v2179, %v2178
        %v2205 = vpack.c.b16 %v2181, %v2180
        %v2206 = vpack.c.b16 %v2183, %v2182
        %v2207 = vpack.c.b16 %v2185, %v2184
        %v2208 = vpack.c.b16 %v2187, %v2186
        %v2209 = vpack.c.b16 %v2189, %v2188
        %v2210 = vpack.c.b16 %v2191, %v2190
        %v2211 = vpack.c.b16 %v2193, %v2192
        %v2212 = vpack.c.b16 %v2195, %v2194
        %v2213 = vpack.c.b16 %v2196, %v2196
        %vm2214 = vsmask.f32 4352
        %v2216 = vshrl.u32 %v2197, 16
        %v2218 = vrot.slane %v2216, 3
        %v2219 = vshll.u32 %v2197, 16
        %v2221 = vrot.slane %v2219, 4
        %v2222 = vor.u32 %v2218, %v2221
        %v2224 = vshrl.u32 %v2198, 16
        %v2226 = vrot.slane %v2224, 3
        %v2227 = vshll.u32 %v2198, 16
        %v2229 = vrot.slane %v2227, 4
        %v2230 = vor.u32 %v2226, %v2229
        %v2231 = vsel %vm2214, %v2222, %v2230
        %v2233 = vshrl.u32 %v2199, 16
        %v2235 = vrot.slane %v2233, 3
        %v2236 = vshll.u32 %v2199, 16
        %v2238 = vrot.slane %v2236, 4
        %v2239 = vor.u32 %v2235, %v2238
        %v2240 = vsel %vm2214, %v2230, %v2239
        %v2242 = vshrl.u32 %v2200, 16
        %v2244 = vrot.slane %v2242, 3
        %v2245 = vshll.u32 %v2200, 16
        %v2247 = vrot.slane %v2245, 4
        %v2248 = vor.u32 %v2244, %v2247
        %v2249 = vsel %vm2214, %v2239, %v2248
        %v2251 = vshrl.u32 %v2201, 16
        %v2253 = vrot.slane %v2251, 3
        %v2254 = vshll.u32 %v2201, 16
        %v2256 = vrot.slane %v2254, 4
        %v2257 = vor.u32 %v2253, %v2256
        %v2258 = vsel %vm2214, %v2248, %v2257
        %v2260 = vshrl.u32 %v2202, 16
        %v2262 = vrot.slane %v2260, 3
        %v2263 = vshll.u32 %v2202, 16
        %v2265 = vrot.slane %v2263, 4
        %v2266 = vor.u32 %v2262, %v2265
        %v2267 = vsel %vm2214, %v2257, %v2266
        %v2269 = vshrl.u32 %v2203, 16
        %v2271 = vrot.slane %v2269, 3
        %v2272 = vshll.u32 %v2203, 16
        %v2274 = vrot.slane %v2272, 4
        %v2275 = vor.u32 %v2271, %v2274
        %v2276 = vsel %vm2214, %v2266, %v2275
        %v2278 = vshrl.u32 %v2204, 16
        %v2280 = vrot.slane %v2278, 3
        %v2281 = vshll.u32 %v2204, 16
        %v2283 = vrot.slane %v2281, 4
        %v2284 = vor.u32 %v2280, %v2283
        %v2285 = vsel %vm2214, %v2275, %v2284
        %v2287 = vshrl.u32 %v2205, 16
        %v2289 = vrot.slane %v2287, 3
        %v2290 = vshll.u32 %v2205, 16
        %v2292 = vrot.slane %v2290, 4
        %v2293 = vor.u32 %v2289, %v2292
        %v2294 = vsel %vm2214, %v2284, %v2293
        %v2296 = vshrl.u32 %v2206, 16
        %v2298 = vrot.slane %v2296, 3
        %v2299 = vshll.u32 %v2206, 16
        %v2301 = vrot.slane %v2299, 4
        %v2302 = vor.u32 %v2298, %v2301
        %v2303 = vsel %vm2214, %v2293, %v2302
        %v2305 = vshrl.u32 %v2207, 16
        %v2307 = vrot.slane %v2305, 3
        %v2308 = vshll.u32 %v2207, 16
        %v2310 = vrot.slane %v2308, 4
        %v2311 = vor.u32 %v2307, %v2310
        %v2312 = vsel %vm2214, %v2302, %v2311
        %v2314 = vshrl.u32 %v2208, 16
        %v2316 = vrot.slane %v2314, 3
        %v2317 = vshll.u32 %v2208, 16
        %v2319 = vrot.slane %v2317, 4
        %v2320 = vor.u32 %v2316, %v2319
        %v2321 = vsel %vm2214, %v2311, %v2320
        %v2323 = vshrl.u32 %v2209, 16
        %v2325 = vrot.slane %v2323, 3
        %v2326 = vshll.u32 %v2209, 16
        %v2328 = vrot.slane %v2326, 4
        %v2329 = vor.u32 %v2325, %v2328
        %v2330 = vsel %vm2214, %v2320, %v2329
        %v2332 = vshrl.u32 %v2210, 16
        %v2334 = vrot.slane %v2332, 3
        %v2335 = vshll.u32 %v2210, 16
        %v2337 = vrot.slane %v2335, 4
        %v2338 = vor.u32 %v2334, %v2337
        %v2339 = vsel %vm2214, %v2329, %v2338
        %v2341 = vshrl.u32 %v2211, 16
        %v2343 = vrot.slane %v2341, 3
        %v2344 = vshll.u32 %v2211, 16
        %v2346 = vrot.slane %v2344, 4
        %v2347 = vor.u32 %v2343, %v2346
        %v2348 = vsel %vm2214, %v2338, %v2347
        %v2350 = vshrl.u32 %v2212, 16
        %v2352 = vrot.slane %v2350, 3
        %v2353 = vshll.u32 %v2212, 16
        %v2355 = vrot.slane %v2353, 4
        %v2356 = vor.u32 %v2352, %v2355
        %v2357 = vsel %vm2214, %v2347, %v2356
        %v2359 = vshrl.u32 %v2213, 16
        %v2361 = vrot.slane %v2359, 3
        %v2362 = vshll.u32 %v2213, 16
        %v2364 = vrot.slane %v2362, 4
        %v2365 = vor.u32 %v2361, %v2364
        %v2366 = vsel %vm2214, %v2356, %v2365
        %v2399 = vunpack.c.l.b16 %v1794
        %v2400 = vunpack.c.l.b16 %v1795
        %v2401 = vunpack.c.l.b16 %v1796
        %v2402 = vunpack.c.l.b16 %v1797
        %v2403 = vunpack.c.l.b16 %v1798
        %v2404 = vunpack.c.l.b16 %v1799
        %v2405 = vunpack.c.l.b16 %v1800
        %v2406 = vunpack.c.l.b16 %v1801
        %v2407 = vunpack.c.l.b16 %v1802
        %v2408 = vunpack.c.l.b16 %v1803
        %v2409 = vunpack.c.l.b16 %v1804
        %v2410 = vunpack.c.l.b16 %v1805
        %v2411 = vunpack.c.l.b16 %v1806
        %v2412 = vunpack.c.l.b16 %v1807
        %v2413 = vunpack.c.l.b16 %v1808
        %v2414 = vunpack.c.l.b16 %v1809
        %v2415 = vpack.c.b16 %v2400, %v2399
        %v2416 = vpack.c.b16 %v2402, %v2401
        %v2417 = vpack.c.b16 %v2404, %v2403
        %v2418 = vpack.c.b16 %v2406, %v2405
        %v2419 = vpack.c.b16 %v2408, %v2407
        %v2420 = vpack.c.b16 %v2410, %v2409
        %v2421 = vpack.c.b16 %v2412, %v2411
        %v2422 = vpack.c.b16 %v2414, %v2413
        %2431 = vmatprep.subr.bf16.mxu0 0
        %2432 = vmatpush1.bf16.msra.mxu0 %v2422
        %2433 = vmatprep.subr.bf16.mxu0 0
        %2434 = vmatpush1.bf16.msra.mxu0 %v2421
        %2435 = vmatprep.subr.bf16.mxu0 0
        %2436 = vmatpush1.bf16.msra.mxu0 %v2420
        %2437 = vmatprep.subr.bf16.mxu0 0
        %2438 = vmatpush1.bf16.msra.mxu0 %v2419
        %2439 = vmatprep.subr.bf16.mxu0 0
        %2440 = vmatpush1.bf16.msra.mxu0 %v2418
        %2441 = vmatprep.subr.bf16.mxu0 0
        %2442 = vmatpush1.bf16.msra.mxu0 %v2417
        %2443 = vmatprep.subr.bf16.mxu0 0
        %2444 = vmatpush1.bf16.msra.mxu0 %v2416
        %2445 = vmatprep.subr.bf16.mxu0 0
        %2446 = vmatpush1.bf16.msra.mxu0 %v2415
        %2447 = vmatprep.subr.bf16.mxu0 0
        %2448 = vmatpush2.bf16.msra.mxu0 0
        %2449 = vmatprep.subr.bf16.mxu0 0
        %2450 = vmatpush2.bf16.msra.mxu0 0
        %2451 = vmatprep.subr.bf16.mxu0 0
        %2452 = vmatpush2.bf16.msra.mxu0 0
        %2453 = vmatprep.subr.bf16.mxu0 0
        %2454 = vmatpush2.bf16.msra.mxu0 0
        %2455 = vmatprep.subr.bf16.mxu0 0
        %2456 = vmatpush2.bf16.msra.mxu0 0
        %2457 = vmatprep.subr.bf16.mxu0 0
        %2458 = vmatpush2.bf16.msra.mxu0 0
        %2459 = vmatprep.subr.bf16.mxu0 0
        %2460 = vmatpush2.bf16.msra.mxu0 0
        %2461 = vmatprep.subr.bf16.mxu0 0
        %2462 = vmatpush2.bf16.msra.mxu0 0
        %2463 = vmatprep.mubr.bf16.mxu0 0
        %2464 = vmatmul.mubr.bf16.gmra.mxu0 %v2231
        %v2465 = vpop.f32.mrf.mxu0
        %v2466 = vadd.f32 %v2005, %v2465
        %v2467 = vpop.f32.mrf.mxu0
        %v2468 = vpop.f32.mrf.mxu0
        %v2469 = vadd.f32 %v2008, %v2468
        %v2470 = vpop.f32.mrf.mxu0
        %2471 = vmatprep.mubr.bf16.mxu0 0
        %2472 = vmatmul.mubr.bf16.gmra.mxu0 %v2240
        %v2473 = vpop.f32.mrf.mxu0
        %v2474 = vadd.f32 %v2013, %v2473
        %v2475 = vpop.f32.mrf.mxu0
        %v2476 = vpop.f32.mrf.mxu0
        %v2477 = vadd.f32 %v2016, %v2476
        %v2478 = vpop.f32.mrf.mxu0
        %2479 = vmatprep.mubr.bf16.mxu0 0
        %2480 = vmatmul.mubr.bf16.gmra.mxu0 %v2249
        %v2481 = vpop.f32.mrf.mxu0
        %v2482 = vadd.f32 %v2021, %v2481
        %v2483 = vpop.f32.mrf.mxu0
        %v2484 = vpop.f32.mrf.mxu0
        %v2485 = vadd.f32 %v2024, %v2484
        %v2486 = vpop.f32.mrf.mxu0
        %2487 = vmatprep.mubr.bf16.mxu0 0
        %2488 = vmatmul.mubr.bf16.gmra.mxu0 %v2258
        %v2489 = vpop.f32.mrf.mxu0
        %v2490 = vadd.f32 %v2029, %v2489
        %v2491 = vpop.f32.mrf.mxu0
        %v2492 = vpop.f32.mrf.mxu0
        %v2493 = vadd.f32 %v2032, %v2492
        %v2494 = vpop.f32.mrf.mxu0
        %2495 = vmatprep.mubr.bf16.mxu0 0
        %2496 = vmatmul.mubr.bf16.gmra.mxu0 %v2267
        %v2497 = vpop.f32.mrf.mxu0
        %v2498 = vadd.f32 %v2037, %v2497
        %v2499 = vpop.f32.mrf.mxu0
        %v2500 = vpop.f32.mrf.mxu0
        %v2501 = vadd.f32 %v2040, %v2500
        %v2502 = vpop.f32.mrf.mxu0
        %2503 = vmatprep.mubr.bf16.mxu0 0
        %2504 = vmatmul.mubr.bf16.gmra.mxu0 %v2276
        %v2505 = vpop.f32.mrf.mxu0
        %v2506 = vadd.f32 %v2045, %v2505
        %v2507 = vpop.f32.mrf.mxu0
        %v2508 = vpop.f32.mrf.mxu0
        %v2509 = vadd.f32 %v2048, %v2508
        %v2510 = vpop.f32.mrf.mxu0
        %2511 = vmatprep.mubr.bf16.mxu0 0
        %2512 = vmatmul.mubr.bf16.gmra.mxu0 %v2285
        %v2513 = vpop.f32.mrf.mxu0
        %v2514 = vadd.f32 %v2053, %v2513
        %v2515 = vpop.f32.mrf.mxu0
        %v2516 = vpop.f32.mrf.mxu0
        %v2517 = vadd.f32 %v2056, %v2516
        %v2518 = vpop.f32.mrf.mxu0
        %2519 = vmatprep.mubr.bf16.mxu0 0
        %2520 = vmatmul.mubr.bf16.gmra.mxu0 %v2294
        %v2521 = vpop.f32.mrf.mxu0
        %v2522 = vadd.f32 %v2061, %v2521
        %v2523 = vpop.f32.mrf.mxu0
        %v2524 = vpop.f32.mrf.mxu0
        %v2525 = vadd.f32 %v2064, %v2524
        %v2526 = vpop.f32.mrf.mxu0
        %2527 = vmatprep.mubr.bf16.mxu0 0
        %2528 = vmatmul.mubr.bf16.gmra.mxu0 %v2303
        %v2529 = vpop.f32.mrf.mxu0
        %v2530 = vadd.f32 %v2069, %v2529
        %v2531 = vpop.f32.mrf.mxu0
        %v2532 = vpop.f32.mrf.mxu0
        %v2533 = vadd.f32 %v2072, %v2532
        %v2534 = vpop.f32.mrf.mxu0
        %2535 = vmatprep.mubr.bf16.mxu0 0
        %2536 = vmatmul.mubr.bf16.gmra.mxu0 %v2312
        %v2537 = vpop.f32.mrf.mxu0
        %v2538 = vadd.f32 %v2077, %v2537
        %v2539 = vpop.f32.mrf.mxu0
        %v2540 = vpop.f32.mrf.mxu0
        %v2541 = vadd.f32 %v2080, %v2540
        %v2542 = vpop.f32.mrf.mxu0
        %2543 = vmatprep.mubr.bf16.mxu0 0
        %2544 = vmatmul.mubr.bf16.gmra.mxu0 %v2321
        %v2545 = vpop.f32.mrf.mxu0
        %v2546 = vadd.f32 %v2085, %v2545
        %v2547 = vpop.f32.mrf.mxu0
        %v2548 = vpop.f32.mrf.mxu0
        %v2549 = vadd.f32 %v2088, %v2548
        %v2550 = vpop.f32.mrf.mxu0
        %2551 = vmatprep.mubr.bf16.mxu0 0
        %2552 = vmatmul.mubr.bf16.gmra.mxu0 %v2330
        %v2553 = vpop.f32.mrf.mxu0
        %v2554 = vadd.f32 %v2093, %v2553
        %v2555 = vpop.f32.mrf.mxu0
        %v2556 = vpop.f32.mrf.mxu0
        %v2557 = vadd.f32 %v2096, %v2556
        %v2558 = vpop.f32.mrf.mxu0
        %2559 = vmatprep.mubr.bf16.mxu0 0
        %2560 = vmatmul.mubr.bf16.gmra.mxu0 %v2339
        %v2561 = vpop.f32.mrf.mxu0
        %v2562 = vadd.f32 %v2101, %v2561
        %v2563 = vpop.f32.mrf.mxu0
        %v2564 = vpop.f32.mrf.mxu0
        %v2565 = vadd.f32 %v2104, %v2564
        %v2566 = vpop.f32.mrf.mxu0
        %2567 = vmatprep.mubr.bf16.mxu0 0
        %2568 = vmatmul.mubr.bf16.gmra.mxu0 %v2348
        %v2569 = vpop.f32.mrf.mxu0
        %v2570 = vadd.f32 %v2109, %v2569
        %v2571 = vpop.f32.mrf.mxu0
        %v2572 = vpop.f32.mrf.mxu0
        %v2573 = vadd.f32 %v2112, %v2572
        %v2574 = vpop.f32.mrf.mxu0
        %2575 = vmatprep.mubr.bf16.mxu0 0
        %2576 = vmatmul.mubr.bf16.gmra.mxu0 %v2357
        %v2577 = vpop.f32.mrf.mxu0
        %v2578 = vadd.f32 %v2117, %v2577
        %v2579 = vpop.f32.mrf.mxu0
        %v2580 = vpop.f32.mrf.mxu0
        %v2581 = vadd.f32 %v2120, %v2580
        %v2582 = vpop.f32.mrf.mxu0
        %2583 = vmatprep.mubr.bf16.mxu0 0
        %2584 = vmatmul.mubr.bf16.gmra.mxu0 %v2366
        %v2585 = vpop.f32.mrf.mxu0
        %v2586 = vadd.f32 %v2125, %v2585
        %v2587 = vpop.f32.mrf.mxu0
        %v2588 = vpop.f32.mrf.mxu0
        %v2589 = vadd.f32 %v2128, %v2588
        %v2590 = vpop.f32.mrf.mxu0
        %2591 = vdwg.mxu0
        %v2592 = vld [vmem:[#allocation2 + $0x8] sm:$0xf]
        %v2593 = vld [vmem:[#allocation2 + $0xc] sm:$0xf]
        %v2594 = vld [vmem:[#allocation2 + $0x10] sm:$0xf]
        %v2595 = vld [vmem:[#allocation2 + $0x14] sm:$0xf]
        %v2596 = vld [vmem:[#allocation2 + $0x18] sm:$0xf]
        %v2597 = vld [vmem:[#allocation2 + $0x1c] sm:$0xf]
        %v2598 = vld [vmem:[#allocation2 + $0x20] sm:$0xf]
        %v2599 = vld [vmem:[#allocation2 + $0x24] sm:$0xf]
        %v2600 = vld [vmem:[#allocation2 + $0x28] sm:$0xf]
        %v2601 = vld [vmem:[#allocation2 + $0x2c] sm:$0xf]
        %v2602 = vld [vmem:[#allocation2 + $0x30] sm:$0xf]
        %v2603 = vld [vmem:[#allocation2 + $0x34] sm:$0xf]
        %v2604 = vld [vmem:[#allocation2 + $0x38] sm:$0xf]
        %v2605 = vld [vmem:[#allocation2 + $0x3c] sm:$0xf]
        %v2606 = vld [vmem:[#allocation2 + $0x40] sm:$0xf]
        %v2607 = vld [vmem:[#allocation2 + $0x44] sm:$0xf]
        %v2608 = vld [vmem:[#allocation2 + $0x48] sm:$0xf]
        %v2609 = vld [vmem:[#allocation2 + $0x4c] sm:$0xf]
        %v2610 = vld [vmem:[#allocation2 + $0x50] sm:$0xf]
        %v2611 = vld [vmem:[#allocation2 + $0x54] sm:$0xf]
        %v2612 = vld [vmem:[#allocation2 + $0x58] sm:$0xf]
        %v2613 = vld [vmem:[#allocation2 + $0x5c] sm:$0xf]
        %v2614 = vld [vmem:[#allocation2 + $0x60] sm:$0xf]
        %v2615 = vld [vmem:[#allocation2 + $0x64] sm:$0xf]
        %v2616 = vld [vmem:[#allocation2 + $0x68] sm:$0xf]
        %v2617 = vld [vmem:[#allocation2 + $0x6c] sm:$0xf]
        %v2618 = vld [vmem:[#allocation2 + $0x70] sm:$0xf]
        %v2619 = vld [vmem:[#allocation2 + $0x74] sm:$0xf]
        %v2620 = vld [vmem:[#allocation2 + $0x78] sm:$0xf]
        %v2621 = vld [vmem:[#allocation2 + $0x7c] sm:$0xf]
        %v2622 = vld [vmem:[#allocation2 + $0x80] sm:$0xf]
        %v2623 = vld [vmem:[#allocation2 + $0x84] sm:$0xf]
        %v2624 = vld [vmem:[#allocation2 + $0x88] sm:$0x1]
        %v2625 = vsel %vm1213, 1, 0
        %v2626 = vsel %vm1214, 1, 0
        %v2627 = vsel %vm1215, 1, 0
        %v2628 = vsel %vm1216, 1, 0
        %v2629 = vsel %vm1217, 1, 0
        %v2630 = vsel %vm1218, 1, 0
        %v2631 = vsel %vm1219, 1, 0
        %v2632 = vsel %vm1220, 1, 0
        %v2633 = vsel %vm1221, 1, 0
        %v2634 = vsel %vm1222, 1, 0
        %v2635 = vsel %vm1223, 1, 0
        %v2636 = vsel %vm1224, 1, 0
        %v2637 = vsel %vm1225, 1, 0
        %v2638 = vsel %vm1226, 1, 0
        %v2639 = vsel %vm1227, 1, 0
        %v2640 = vsel %vm1228, 1, 0
        %v2641 = vsel %vm1229, 1, 0
        %v2642 = vsel %vm1230, 1, 0
        %v2643 = vsel %vm1231, 1, 0
        %v2644 = vsel %vm1232, 1, 0
        %v2645 = vsel %vm1233, 1, 0
        %v2646 = vsel %vm1234, 1, 0
        %v2647 = vsel %vm1235, 1, 0
        %v2648 = vsel %vm1236, 1, 0
        %v2649 = vsel %vm1237, 1, 0
        %v2650 = vsel %vm1238, 1, 0
        %v2651 = vsel %vm1239, 1, 0
        %v2652 = vsel %vm1240, 1, 0
        %v2653 = vsel %vm1241, 1, 0
        %v2654 = vsel %vm1242, 1, 0
        %v2655 = vsel %vm1243, 1, 0
        %v2656 = vsel %vm1244, 1, 0
        %vm2657 = vcmp.eq.s32.totalorder %v2625, 1
        %vm2658 = vcmp.eq.s32.totalorder %v2626, 1
        %vm2659 = vcmp.eq.s32.totalorder %v2627, 1
        %vm2660 = vcmp.eq.s32.totalorder %v2628, 1
        %vm2661 = vcmp.eq.s32.totalorder %v2629, 1
        %vm2662 = vcmp.eq.s32.totalorder %v2630, 1
        %vm2663 = vcmp.eq.s32.totalorder %v2631, 1
        %vm2664 = vcmp.eq.s32.totalorder %v2632, 1
        %vm2665 = vcmp.eq.s32.totalorder %v2633, 1
        %vm2666 = vcmp.eq.s32.totalorder %v2634, 1
        %vm2667 = vcmp.eq.s32.totalorder %v2635, 1
        %vm2668 = vcmp.eq.s32.totalorder %v2636, 1
        %vm2669 = vcmp.eq.s32.totalorder %v2637, 1
        %vm2670 = vcmp.eq.s32.totalorder %v2638, 1
        %vm2671 = vcmp.eq.s32.totalorder %v2639, 1
        %vm2672 = vcmp.eq.s32.totalorder %v2640, 1
        %vm2673 = vcmp.eq.s32.totalorder %v2641, 1
        %vm2674 = vcmp.eq.s32.totalorder %v2642, 1
        %vm2675 = vcmp.eq.s32.totalorder %v2643, 1
        %vm2676 = vcmp.eq.s32.totalorder %v2644, 1
        %vm2677 = vcmp.eq.s32.totalorder %v2645, 1
        %vm2678 = vcmp.eq.s32.totalorder %v2646, 1
        %vm2679 = vcmp.eq.s32.totalorder %v2647, 1
        %vm2680 = vcmp.eq.s32.totalorder %v2648, 1
        %vm2681 = vcmp.eq.s32.totalorder %v2649, 1
        %vm2682 = vcmp.eq.s32.totalorder %v2650, 1
        %vm2683 = vcmp.eq.s32.totalorder %v2651, 1
        %vm2684 = vcmp.eq.s32.totalorder %v2652, 1
        %vm2685 = vcmp.eq.s32.totalorder %v2653, 1
        %vm2686 = vcmp.eq.s32.totalorder %v2654, 1
        %vm2687 = vcmp.eq.s32.totalorder %v2655, 1
        %vm2688 = vcmp.eq.s32.totalorder %v2656, 1
        %vm2689 = vmpackc.low %vm2657, %vm2657
        %vm2690 = vmpackc.low %vm2658, %vm2658
        %vm2691 = vmpackc.low %vm2659, %vm2659
        %vm2692 = vmpackc.low %vm2660, %vm2660
        %vm2693 = vmpackc.low %vm2661, %vm2661
        %vm2694 = vmpackc.low %vm2662, %vm2662
        %vm2695 = vmpackc.low %vm2663, %vm2663
        %vm2696 = vmpackc.low %vm2664, %vm2664
        %vm2697 = vmpackc.low %vm2665, %vm2665
        %vm2698 = vmpackc.low %vm2666, %vm2666
        %vm2699 = vmpackc.low %vm2667, %vm2667
        %vm2700 = vmpackc.low %vm2668, %vm2668
        %vm2701 = vmpackc.low %vm2669, %vm2669
        %vm2702 = vmpackc.low %vm2670, %vm2670
        %vm2703 = vmpackc.low %vm2671, %vm2671
        %vm2704 = vmpackc.low %vm2672, %vm2672
        %vm2705 = vmpackc.low %vm2673, %vm2673
        %vm2706 = vmpackc.low %vm2674, %vm2674
        %vm2707 = vmpackc.low %vm2675, %vm2675
        %vm2708 = vmpackc.low %vm2676, %vm2676
        %vm2709 = vmpackc.low %vm2677, %vm2677
        %vm2710 = vmpackc.low %vm2678, %vm2678
        %vm2711 = vmpackc.low %vm2679, %vm2679
        %vm2712 = vmpackc.low %vm2680, %vm2680
        %vm2713 = vmpackc.low %vm2681, %vm2681
        %vm2714 = vmpackc.low %vm2682, %vm2682
        %vm2715 = vmpackc.low %vm2683, %vm2683
        %vm2716 = vmpackc.low %vm2684, %vm2684
        %vm2717 = vmpackc.low %vm2685, %vm2685
        %vm2718 = vmpackc.low %vm2686, %vm2686
        %vm2719 = vmpackc.low %vm2687, %vm2687
        %vm2720 = vmpackc.low %vm2688, %vm2688
        %v2721 = vsel %vm2689, 65537, 0
        %v2722 = vsel %vm2690, 65537, 0
        %v2723 = vsel %vm2691, 65537, 0
        %v2724 = vsel %vm2692, 65537, 0
        %v2725 = vsel %vm2693, 65537, 0
        %v2726 = vsel %vm2694, 65537, 0
        %v2727 = vsel %vm2695, 65537, 0
        %v2728 = vsel %vm2696, 65537, 0
        %v2729 = vsel %vm2697, 65537, 0
        %v2730 = vsel %vm2698, 65537, 0
        %v2731 = vsel %vm2699, 65537, 0
        %v2732 = vsel %vm2700, 65537, 0
        %v2733 = vsel %vm2701, 65537, 0
        %v2734 = vsel %vm2702, 65537, 0
        %v2735 = vsel %vm2703, 65537, 0
        %v2736 = vsel %vm2704, 65537, 0
        %v2737 = vsel %vm2705, 65537, 0
        %v2738 = vsel %vm2706, 65537, 0
        %v2739 = vsel %vm2707, 65537, 0
        %v2740 = vsel %vm2708, 65537, 0
        %v2741 = vsel %vm2709, 65537, 0
        %v2742 = vsel %vm2710, 65537, 0
        %v2743 = vsel %vm2711, 65537, 0
        %v2744 = vsel %vm2712, 65537, 0
        %v2745 = vsel %vm2713, 65537, 0
        %v2746 = vsel %vm2714, 65537, 0
        %v2747 = vsel %vm2715, 65537, 0
        %v2748 = vsel %vm2716, 65537, 0
        %v2749 = vsel %vm2717, 65537, 0
        %v2750 = vsel %vm2718, 65537, 0
        %v2751 = vsel %vm2719, 65537, 0
        %v2752 = vsel %vm2720, 65537, 0
        %vm2753 = vsmask.f32 4368
        %vm2754 = vmor %vm615, %vm2753
        %v2756 = vshrl.u32 %v2721, 16
        %v2758 = vrot.slane %v2756, 7
        %v2759 = vshll.u32 %v2721, 16
        %v2761 = vor.u32 %v2758, %v2759
        %v2762 = vrot.slane %v2758, 4
        %v2764 = vshrl.u32 %v2722, 16
        %v2766 = vrot.slane %v2764, 7
        %v2767 = vshll.u32 %v2722, 16
        %v2769 = vor.u32 %v2766, %v2767
        %v2770 = vsel %vm2754, %v2762, %v2769
        %v2771 = vrot.slane %v2766, 4
        %v2773 = vshrl.u32 %v2723, 16
        %v2775 = vrot.slane %v2773, 7
        %v2776 = vshll.u32 %v2723, 16
        %v2778 = vor.u32 %v2775, %v2776
        %v2779 = vsel %vm2754, %v2771, %v2778
        %v2780 = vrot.slane %v2775, 4
        %v2782 = vshrl.u32 %v2724, 16
        %v2784 = vrot.slane %v2782, 7
        %v2785 = vshll.u32 %v2724, 16
        %v2787 = vor.u32 %v2784, %v2785
        %v2788 = vsel %vm2754, %v2780, %v2787
        %v2789 = vrot.slane %v2784, 4
        %v2791 = vshrl.u32 %v2725, 16
        %v2793 = vrot.slane %v2791, 7
        %v2794 = vshll.u32 %v2725, 16
        %v2796 = vor.u32 %v2793, %v2794
        %v2797 = vsel %vm2754, %v2789, %v2796
        %v2798 = vrot.slane %v2793, 4
        %v2800 = vshrl.u32 %v2726, 16
        %v2802 = vrot.slane %v2800, 7
        %v2803 = vshll.u32 %v2726, 16
        %v2805 = vor.u32 %v2802, %v2803
        %v2806 = vsel %vm2754, %v2798, %v2805
        %v2807 = vrot.slane %v2802, 4
        %v2809 = vshrl.u32 %v2727, 16
        %v2811 = vrot.slane %v2809, 7
        %v2812 = vshll.u32 %v2727, 16
        %v2814 = vor.u32 %v2811, %v2812
        %v2815 = vsel %vm2754, %v2807, %v2814
        %v2816 = vrot.slane %v2811, 4
        %v2818 = vshrl.u32 %v2728, 16
        %v2820 = vrot.slane %v2818, 7
        %v2821 = vshll.u32 %v2728, 16
        %v2823 = vor.u32 %v2820, %v2821
        %v2824 = vsel %vm2754, %v2816, %v2823
        %v2825 = vrot.slane %v2820, 4
        %v2827 = vshrl.u32 %v2729, 16
        %v2829 = vrot.slane %v2827, 7
        %v2830 = vshll.u32 %v2729, 16
        %v2832 = vor.u32 %v2829, %v2830
        %v2833 = vsel %vm2754, %v2825, %v2832
        %v2834 = vrot.slane %v2829, 4
        %v2836 = vshrl.u32 %v2730, 16
        %v2838 = vrot.slane %v2836, 7
        %v2839 = vshll.u32 %v2730, 16
        %v2841 = vor.u32 %v2838, %v2839
        %v2842 = vsel %vm2754, %v2834, %v2841
        %v2843 = vrot.slane %v2838, 4
        %v2845 = vshrl.u32 %v2731, 16
        %v2847 = vrot.slane %v2845, 7
        %v2848 = vshll.u32 %v2731, 16
        %v2850 = vor.u32 %v2847, %v2848
        %v2851 = vsel %vm2754, %v2843, %v2850
        %v2852 = vrot.slane %v2847, 4
        %v2854 = vshrl.u32 %v2732, 16
        %v2856 = vrot.slane %v2854, 7
        %v2857 = vshll.u32 %v2732, 16
        %v2859 = vor.u32 %v2856, %v2857
        %v2860 = vsel %vm2754, %v2852, %v2859
        %v2861 = vrot.slane %v2856, 4
        %v2863 = vshrl.u32 %v2733, 16
        %v2865 = vrot.slane %v2863, 7
        %v2866 = vshll.u32 %v2733, 16
        %v2868 = vor.u32 %v2865, %v2866
        %v2869 = vsel %vm2754, %v2861, %v2868
        %v2870 = vrot.slane %v2865, 4
        %v2872 = vshrl.u32 %v2734, 16
        %v2874 = vrot.slane %v2872, 7
        %v2875 = vshll.u32 %v2734, 16
        %v2877 = vor.u32 %v2874, %v2875
        %v2878 = vsel %vm2754, %v2870, %v2877
        %v2879 = vrot.slane %v2874, 4
        %v2881 = vshrl.u32 %v2735, 16
        %v2883 = vrot.slane %v2881, 7
        %v2884 = vshll.u32 %v2735, 16
        %v2886 = vor.u32 %v2883, %v2884
        %v2887 = vsel %vm2754, %v2879, %v2886
        %v2888 = vrot.slane %v2883, 4
        %v2890 = vshrl.u32 %v2736, 16
        %v2892 = vrot.slane %v2890, 7
        %v2893 = vshll.u32 %v2736, 16
        %v2895 = vor.u32 %v2892, %v2893
        %v2896 = vsel %vm2754, %v2888, %v2895
        %v2897 = vrot.slane %v2892, 4
        %v2899 = vshrl.u32 %v2737, 16
        %v2901 = vrot.slane %v2899, 7
        %v2902 = vshll.u32 %v2737, 16
        %v2904 = vor.u32 %v2901, %v2902
        %v2905 = vsel %vm2754, %v2897, %v2904
        %v2906 = vrot.slane %v2901, 4
        %v2908 = vshrl.u32 %v2738, 16
        %v2910 = vrot.slane %v2908, 7
        %v2911 = vshll.u32 %v2738, 16
        %v2913 = vor.u32 %v2910, %v2911
        %v2914 = vsel %vm2754, %v2906, %v2913
        %v2915 = vrot.slane %v2910, 4
        %v2917 = vshrl.u32 %v2739, 16
        %v2919 = vrot.slane %v2917, 7
        %v2920 = vshll.u32 %v2739, 16
        %v2922 = vor.u32 %v2919, %v2920
        %v2923 = vsel %vm2754, %v2915, %v2922
        %v2924 = vrot.slane %v2919, 4
        %v2926 = vshrl.u32 %v2740, 16
        %v2928 = vrot.slane %v2926, 7
        %v2929 = vshll.u32 %v2740, 16
        %v2931 = vor.u32 %v2928, %v2929
        %v2932 = vsel %vm2754, %v2924, %v2931
        %v2933 = vrot.slane %v2928, 4
        %v2935 = vshrl.u32 %v2741, 16
        %v2937 = vrot.slane %v2935, 7
        %v2938 = vshll.u32 %v2741, 16
        %v2940 = vor.u32 %v2937, %v2938
        %v2941 = vsel %vm2754, %v2933, %v2940
        %v2942 = vrot.slane %v2937, 4
        %v2944 = vshrl.u32 %v2742, 16
        %v2946 = vrot.slane %v2944, 7
        %v2947 = vshll.u32 %v2742, 16
        %v2949 = vor.u32 %v2946, %v2947
        %v2950 = vsel %vm2754, %v2942, %v2949
        %v2951 = vrot.slane %v2946, 4
        %v2953 = vshrl.u32 %v2743, 16
        %v2955 = vrot.slane %v2953, 7
        %v2956 = vshll.u32 %v2743, 16
        %v2958 = vor.u32 %v2955, %v2956
        %v2959 = vsel %vm2754, %v2951, %v2958
        %v2960 = vrot.slane %v2955, 4
        %v2962 = vshrl.u32 %v2744, 16
        %v2964 = vrot.slane %v2962, 7
        %v2965 = vshll.u32 %v2744, 16
        %v2967 = vor.u32 %v2964, %v2965
        %v2968 = vsel %vm2754, %v2960, %v2967
        %v2969 = vrot.slane %v2964, 4
        %v2971 = vshrl.u32 %v2745, 16
        %v2973 = vrot.slane %v2971, 7
        %v2974 = vshll.u32 %v2745, 16
        %v2976 = vor.u32 %v2973, %v2974
        %v2977 = vsel %vm2754, %v2969, %v2976
        %v2978 = vrot.slane %v2973, 4
        %v2980 = vshrl.u32 %v2746, 16
        %v2982 = vrot.slane %v2980, 7
        %v2983 = vshll.u32 %v2746, 16
        %v2985 = vor.u32 %v2982, %v2983
        %v2986 = vsel %vm2754, %v2978, %v2985
        %v2987 = vrot.slane %v2982, 4
        %v2989 = vshrl.u32 %v2747, 16
        %v2991 = vrot.slane %v2989, 7
        %v2992 = vshll.u32 %v2747, 16
        %v2994 = vor.u32 %v2991, %v2992
        %v2995 = vsel %vm2754, %v2987, %v2994
        %v2996 = vrot.slane %v2991, 4
        %v2998 = vshrl.u32 %v2748, 16
        %v3000 = vrot.slane %v2998, 7
        %v3001 = vshll.u32 %v2748, 16
        %v3003 = vor.u32 %v3000, %v3001
        %v3004 = vsel %vm2754, %v2996, %v3003
        %v3005 = vrot.slane %v3000, 4
        %v3007 = vshrl.u32 %v2749, 16
        %v3009 = vrot.slane %v3007, 7
        %v3010 = vshll.u32 %v2749, 16
        %v3012 = vor.u32 %v3009, %v3010
        %v3013 = vsel %vm2754, %v3005, %v3012
        %v3014 = vrot.slane %v3009, 4
        %v3016 = vshrl.u32 %v2750, 16
        %v3018 = vrot.slane %v3016, 7
        %v3019 = vshll.u32 %v2750, 16
        %v3021 = vor.u32 %v3018, %v3019
        %v3022 = vsel %vm2754, %v3014, %v3021
        %v3023 = vrot.slane %v3018, 4
        %v3025 = vshrl.u32 %v2751, 16
        %v3027 = vrot.slane %v3025, 7
        %v3028 = vshll.u32 %v2751, 16
        %v3030 = vor.u32 %v3027, %v3028
        %v3031 = vsel %vm2754, %v3023, %v3030
        %v3032 = vrot.slane %v3027, 4
        %v3034 = vshrl.u32 %v2752, 16
        %v3036 = vrot.slane %v3034, 7
        %v3037 = vshll.u32 %v2752, 16
        %v3039 = vor.u32 %v3036, %v3037
        %v3040 = vsel %vm2754, %v3032, %v3039
        %v3041 = vrot.slane %v3036, 4
        %vm3042 = vcmp.ne.s16.totalorder %v2761, 0
        %vm3043 = vcmp.ne.s16.totalorder %v2770, 0
        %vm3044 = vcmp.ne.s16.totalorder %v2779, 0
        %vm3045 = vcmp.ne.s16.totalorder %v2788, 0
        %vm3046 = vcmp.ne.s16.totalorder %v2797, 0
        %vm3047 = vcmp.ne.s16.totalorder %v2806, 0
        %vm3048 = vcmp.ne.s16.totalorder %v2815, 0
        %vm3049 = vcmp.ne.s16.totalorder %v2824, 0
        %vm3050 = vcmp.ne.s16.totalorder %v2833, 0
        %vm3051 = vcmp.ne.s16.totalorder %v2842, 0
        %vm3052 = vcmp.ne.s16.totalorder %v2851, 0
        %vm3053 = vcmp.ne.s16.totalorder %v2860, 0
        %vm3054 = vcmp.ne.s16.totalorder %v2869, 0
        %vm3055 = vcmp.ne.s16.totalorder %v2878, 0
        %vm3056 = vcmp.ne.s16.totalorder %v2887, 0
        %vm3057 = vcmp.ne.s16.totalorder %v2896, 0
        %vm3058 = vcmp.ne.s16.totalorder %v2905, 0
        %vm3059 = vcmp.ne.s16.totalorder %v2914, 0
        %vm3060 = vcmp.ne.s16.totalorder %v2923, 0
        %vm3061 = vcmp.ne.s16.totalorder %v2932, 0
        %vm3062 = vcmp.ne.s16.totalorder %v2941, 0
        %vm3063 = vcmp.ne.s16.totalorder %v2950, 0
        %vm3064 = vcmp.ne.s16.totalorder %v2959, 0
        %vm3065 = vcmp.ne.s16.totalorder %v2968, 0
        %vm3066 = vcmp.ne.s16.totalorder %v2977, 0
        %vm3067 = vcmp.ne.s16.totalorder %v2986, 0
        %vm3068 = vcmp.ne.s16.totalorder %v2995, 0
        %vm3069 = vcmp.ne.s16.totalorder %v3004, 0
        %vm3070 = vcmp.ne.s16.totalorder %v3013, 0
        %vm3071 = vcmp.ne.s16.totalorder %v3022, 0
        %vm3072 = vcmp.ne.s16.totalorder %v3031, 0
        %vm3073 = vcmp.ne.s16.totalorder %v3040, 0
        %vm3074 = vcmp.ne.s16.totalorder %v3041, 0
        %v3075 = vsel %vm3042, %v2592, 0
        %v3076 = vsel %vm3043, %v2593, 0
        %v3077 = vsel %vm3044, %v2594, 0
        %v3078 = vsel %vm3045, %v2595, 0
        %v3079 = vsel %vm3046, %v2596, 0
        %v3080 = vsel %vm3047, %v2597, 0
        %v3081 = vsel %vm3048, %v2598, 0
        %v3082 = vsel %vm3049, %v2599, 0
        %v3083 = vsel %vm3050, %v2600, 0
        %v3084 = vsel %vm3051, %v2601, 0
        %v3085 = vsel %vm3052, %v2602, 0
        %v3086 = vsel %vm3053, %v2603, 0
        %v3087 = vsel %vm3054, %v2604, 0
        %v3088 = vsel %vm3055, %v2605, 0
        %v3089 = vsel %vm3056, %v2606, 0
        %v3090 = vsel %vm3057, %v2607, 0
        %v3091 = vsel %vm3058, %v2608, 0
        %v3092 = vsel %vm3059, %v2609, 0
        %v3093 = vsel %vm3060, %v2610, 0
        %v3094 = vsel %vm3061, %v2611, 0
        %v3095 = vsel %vm3062, %v2612, 0
        %v3096 = vsel %vm3063, %v2613, 0
        %v3097 = vsel %vm3064, %v2614, 0
        %v3098 = vsel %vm3065, %v2615, 0
        %v3099 = vsel %vm3066, %v2616, 0
        %v3100 = vsel %vm3067, %v2617, 0
        %v3101 = vsel %vm3068, %v2618, 0
        %v3102 = vsel %vm3069, %v2619, 0
        %v3103 = vsel %vm3070, %v2620, 0
        %v3104 = vsel %vm3071, %v2621, 0
        %v3105 = vsel %vm3072, %v2622, 0
        %v3106 = vsel %vm3073, %v2623, 0
        %v3107 = vsel %vm3074, %v2624, 0
        %v3108 = vld [vmem:[%s3 + $0x80] sm:$0xf]
        %v3109 = vld [vmem:[%s3 + $0x84] sm:$0xf]
        %v3110 = vld [vmem:[%s3 + $0x88] sm:$0xf]
        %v3111 = vld [vmem:[%s3 + $0x8c] sm:$0xf]
        %v3112 = vld [vmem:[%s3 + $0x90] sm:$0xf]
        %v3113 = vld [vmem:[%s3 + $0x94] sm:$0xf]
        %v3114 = vld [vmem:[%s3 + $0x98] sm:$0xf]
        %v3115 = vld [vmem:[%s3 + $0x9c] sm:$0xf]
        %v3116 = vld [vmem:[%s3 + $0xa0] sm:$0xf]
        %v3117 = vld [vmem:[%s3 + $0xa4] sm:$0xf]
        %v3118 = vld [vmem:[%s3 + $0xa8] sm:$0xf]
        %v3119 = vld [vmem:[%s3 + $0xac] sm:$0xf]
        %v3120 = vld [vmem:[%s3 + $0xb0] sm:$0xf]
        %v3121 = vld [vmem:[%s3 + $0xb4] sm:$0xf]
        %v3122 = vld [vmem:[%s3 + $0xb8] sm:$0xf]
        %v3123 = vld [vmem:[%s3 + $0xbc] sm:$0xf]
        %v3157 = vunpack.c.l.b16 %v3075
        %v3158 = vunpack.c.l.b16 %v3076
        %v3159 = vunpack.c.l.b16 %v3077
        %v3160 = vunpack.c.l.b16 %v3078
        %v3161 = vunpack.c.l.b16 %v3079
        %v3162 = vunpack.c.l.b16 %v3080
        %v3163 = vunpack.c.l.b16 %v3081
        %v3164 = vunpack.c.l.b16 %v3082
        %v3165 = vunpack.c.l.b16 %v3083
        %v3166 = vunpack.c.l.b16 %v3084
        %v3167 = vunpack.c.l.b16 %v3085
        %v3168 = vunpack.c.l.b16 %v3086
        %v3169 = vunpack.c.l.b16 %v3087
        %v3170 = vunpack.c.l.b16 %v3088
        %v3171 = vunpack.c.l.b16 %v3089
        %v3172 = vunpack.c.l.b16 %v3090
        %v3173 = vunpack.c.l.b16 %v3091
        %v3174 = vunpack.c.l.b16 %v3092
        %v3175 = vunpack.c.l.b16 %v3093
        %v3176 = vunpack.c.l.b16 %v3094
        %v3177 = vunpack.c.l.b16 %v3095
        %v3178 = vunpack.c.l.b16 %v3096
        %v3179 = vunpack.c.l.b16 %v3097
        %v3180 = vunpack.c.l.b16 %v3098
        %v3181 = vunpack.c.l.b16 %v3099
        %v3182 = vunpack.c.l.b16 %v3100
        %v3183 = vunpack.c.l.b16 %v3101
        %v3184 = vunpack.c.l.b16 %v3102
        %v3185 = vunpack.c.l.b16 %v3103
        %v3186 = vunpack.c.l.b16 %v3104
        %v3187 = vunpack.c.l.b16 %v3105
        %v3188 = vunpack.c.l.b16 %v3106
        %v3189 = vunpack.c.l.b16 %v3107
        %v3190 = vpack.c.b16 %v3158, %v3157
        %v3191 = vpack.c.b16 %v3160, %v3159
        %v3192 = vpack.c.b16 %v3162, %v3161
        %v3193 = vpack.c.b16 %v3164, %v3163
        %v3194 = vpack.c.b16 %v3166, %v3165
        %v3195 = vpack.c.b16 %v3168, %v3167
        %v3196 = vpack.c.b16 %v3170, %v3169
        %v3197 = vpack.c.b16 %v3172, %v3171
        %v3198 = vpack.c.b16 %v3174, %v3173
        %v3199 = vpack.c.b16 %v3176, %v3175
        %v3200 = vpack.c.b16 %v3178, %v3177
        %v3201 = vpack.c.b16 %v3180, %v3179
        %v3202 = vpack.c.b16 %v3182, %v3181
        %v3203 = vpack.c.b16 %v3184, %v3183
        %v3204 = vpack.c.b16 %v3186, %v3185
        %v3205 = vpack.c.b16 %v3188, %v3187
        %v3206 = vpack.c.b16 %v3189, %v3189
        %vm3207 = vsmask.f32 7424
        %v3209 = vshrl.u32 %v3190, 16
        %v3211 = vshll.u32 %v3190, 16
        %v3213 = vrot.slane %v3211, 1
        %v3214 = vor.u32 %v3209, %v3213
        %v3216 = vshll.u32 %v3191, 16
        %v3218 = vrot.slane %v3216, 1
        %v3219 = vsel %vm3207, %v3214, %v3218
        %v3220 = vshrl.u32 %v3191, 16
        %v3222 = vor.u32 %v3220, %v3218
        %v3224 = vshll.u32 %v3192, 16
        %v3226 = vrot.slane %v3224, 1
        %v3227 = vsel %vm3207, %v3222, %v3226
        %v3228 = vshrl.u32 %v3192, 16
        %v3230 = vor.u32 %v3228, %v3226
        %v3232 = vshll.u32 %v3193, 16
        %v3234 = vrot.slane %v3232, 1
        %v3235 = vsel %vm3207, %v3230, %v3234
        %v3236 = vshrl.u32 %v3193, 16
        %v3238 = vor.u32 %v3236, %v3234
        %v3240 = vshll.u32 %v3194, 16
        %v3242 = vrot.slane %v3240, 1
        %v3243 = vsel %vm3207, %v3238, %v3242
        %v3244 = vshrl.u32 %v3194, 16
        %v3246 = vor.u32 %v3244, %v3242
        %v3248 = vshll.u32 %v3195, 16
        %v3250 = vrot.slane %v3248, 1
        %v3251 = vsel %vm3207, %v3246, %v3250
        %v3252 = vshrl.u32 %v3195, 16
        %v3254 = vor.u32 %v3252, %v3250
        %v3256 = vshll.u32 %v3196, 16
        %v3258 = vrot.slane %v3256, 1
        %v3259 = vsel %vm3207, %v3254, %v3258
        %v3260 = vshrl.u32 %v3196, 16
        %v3262 = vor.u32 %v3260, %v3258
        %v3264 = vshll.u32 %v3197, 16
        %v3266 = vrot.slane %v3264, 1
        %v3267 = vsel %vm3207, %v3262, %v3266
        %v3268 = vshrl.u32 %v3197, 16
        %v3270 = vor.u32 %v3268, %v3266
        %v3272 = vshll.u32 %v3198, 16
        %v3274 = vrot.slane %v3272, 1
        %v3275 = vsel %vm3207, %v3270, %v3274
        %v3276 = vshrl.u32 %v3198, 16
        %v3278 = vor.u32 %v3276, %v3274
        %v3280 = vshll.u32 %v3199, 16
        %v3282 = vrot.slane %v3280, 1
        %v3283 = vsel %vm3207, %v3278, %v3282
        %v3284 = vshrl.u32 %v3199, 16
        %v3286 = vor.u32 %v3284, %v3282
        %v3288 = vshll.u32 %v3200, 16
        %v3290 = vrot.slane %v3288, 1
        %v3291 = vsel %vm3207, %v3286, %v3290
        %v3292 = vshrl.u32 %v3200, 16
        %v3294 = vor.u32 %v3292, %v3290
        %v3296 = vshll.u32 %v3201, 16
        %v3298 = vrot.slane %v3296, 1
        %v3299 = vsel %vm3207, %v3294, %v3298
        %v3300 = vshrl.u32 %v3201, 16
        %v3302 = vor.u32 %v3300, %v3298
        %v3304 = vshll.u32 %v3202, 16
        %v3306 = vrot.slane %v3304, 1
        %v3307 = vsel %vm3207, %v3302, %v3306
        %v3308 = vshrl.u32 %v3202, 16
        %v3310 = vor.u32 %v3308, %v3306
        %v3312 = vshll.u32 %v3203, 16
        %v3314 = vrot.slane %v3312, 1
        %v3315 = vsel %vm3207, %v3310, %v3314
        %v3316 = vshrl.u32 %v3203, 16
        %v3318 = vor.u32 %v3316, %v3314
        %v3320 = vshll.u32 %v3204, 16
        %v3322 = vrot.slane %v3320, 1
        %v3323 = vsel %vm3207, %v3318, %v3322
        %v3324 = vshrl.u32 %v3204, 16
        %v3326 = vor.u32 %v3324, %v3322
        %v3328 = vshll.u32 %v3205, 16
        %v3330 = vrot.slane %v3328, 1
        %v3331 = vsel %vm3207, %v3326, %v3330
        %v3332 = vshrl.u32 %v3205, 16
        %v3334 = vor.u32 %v3332, %v3330
        %v3336 = vshll.u32 %v3206, 16
        %v3338 = vrot.slane %v3336, 1
        %v3339 = vsel %vm3207, %v3334, %v3338
        %v3372 = vunpack.c.l.b16 %v3108
        %v3373 = vunpack.c.l.b16 %v3109
        %v3374 = vunpack.c.l.b16 %v3110
        %v3375 = vunpack.c.l.b16 %v3111
        %v3376 = vunpack.c.l.b16 %v3112
        %v3377 = vunpack.c.l.b16 %v3113
        %v3378 = vunpack.c.l.b16 %v3114
        %v3379 = vunpack.c.l.b16 %v3115
        %v3380 = vunpack.c.l.b16 %v3116
        %v3381 = vunpack.c.l.b16 %v3117
        %v3382 = vunpack.c.l.b16 %v3118
        %v3383 = vunpack.c.l.b16 %v3119
        %v3384 = vunpack.c.l.b16 %v3120
        %v3385 = vunpack.c.l.b16 %v3121
        %v3386 = vunpack.c.l.b16 %v3122
        %v3387 = vunpack.c.l.b16 %v3123
        %v3388 = vpack.c.b16 %v3373, %v3372
        %v3389 = vpack.c.b16 %v3375, %v3374
        %v3390 = vpack.c.b16 %v3377, %v3376
        %v3391 = vpack.c.b16 %v3379, %v3378
        %v3392 = vpack.c.b16 %v3381, %v3380
        %v3393 = vpack.c.b16 %v3383, %v3382
        %v3394 = vpack.c.b16 %v3385, %v3384
        %v3395 = vpack.c.b16 %v3387, %v3386
        %3404 = vmatprep.subr.bf16.mxu0 0
        %3405 = vmatpush1.bf16.msra.mxu0 %v3395
        %3406 = vmatprep.subr.bf16.mxu0 0
        %3407 = vmatpush1.bf16.msra.mxu0 %v3394
        %3408 = vmatprep.subr.bf16.mxu0 0
        %3409 = vmatpush1.bf16.msra.mxu0 %v3393
        %3410 = vmatprep.subr.bf16.mxu0 0
        %3411 = vmatpush1.bf16.msra.mxu0 %v3392
        %3412 = vmatprep.subr.bf16.mxu0 0
        %3413 = vmatpush1.bf16.msra.mxu0 %v3391
        %3414 = vmatprep.subr.bf16.mxu0 0
        %3415 = vmatpush1.bf16.msra.mxu0 %v3390
        %3416 = vmatprep.subr.bf16.mxu0 0
        %3417 = vmatpush1.bf16.msra.mxu0 %v3389
        %3418 = vmatprep.subr.bf16.mxu0 0
        %3419 = vmatpush1.bf16.msra.mxu0 %v3388
        %3420 = vmatprep.subr.bf16.mxu0 0
        %3421 = vmatpush2.bf16.msra.mxu0 0
        %3422 = vmatprep.subr.bf16.mxu0 0
        %3423 = vmatpush2.bf16.msra.mxu0 0
        %3424 = vmatprep.subr.bf16.mxu0 0
        %3425 = vmatpush2.bf16.msra.mxu0 0
        %3426 = vmatprep.subr.bf16.mxu0 0
        %3427 = vmatpush2.bf16.msra.mxu0 0
        %3428 = vmatprep.subr.bf16.mxu0 0
        %3429 = vmatpush2.bf16.msra.mxu0 0
        %3430 = vmatprep.subr.bf16.mxu0 0
        %3431 = vmatpush2.bf16.msra.mxu0 0
        %3432 = vmatprep.subr.bf16.mxu0 0
        %3433 = vmatpush2.bf16.msra.mxu0 0
        %3434 = vmatprep.subr.bf16.mxu0 0
        %3435 = vmatpush2.bf16.msra.mxu0 0
        %3436 = vmatprep.mubr.bf16.mxu0 0
        %3437 = vmatmul.mubr.bf16.gmra.mxu0 %v3219
        %v3438 = vpop.f32.mrf.mxu0
        %v3439 = vadd.f32 0.0, %v3438
        %v3440 = vpop.f32.mrf.mxu0
        %v3441 = vpop.f32.mrf.mxu0
        %v3442 = vadd.f32 0.0, %v3441
        %v3443 = vpop.f32.mrf.mxu0
        %3444 = vmatprep.mubr.bf16.mxu0 0
        %3445 = vmatmul.mubr.bf16.gmra.mxu0 %v3227
        %v3446 = vpop.f32.mrf.mxu0
        %v3447 = vadd.f32 0.0, %v3446
        %v3448 = vpop.f32.mrf.mxu0
        %v3449 = vpop.f32.mrf.mxu0
        %v3450 = vadd.f32 0.0, %v3449
        %v3451 = vpop.f32.mrf.mxu0
        %3452 = vmatprep.mubr.bf16.mxu0 0
        %3453 = vmatmul.mubr.bf16.gmra.mxu0 %v3235
        %v3454 = vpop.f32.mrf.mxu0
        %v3455 = vadd.f32 0.0, %v3454
        %v3456 = vpop.f32.mrf.mxu0
        %v3457 = vpop.f32.mrf.mxu0
        %v3458 = vadd.f32 0.0, %v3457
        %v3459 = vpop.f32.mrf.mxu0
        %3460 = vmatprep.mubr.bf16.mxu0 0
        %3461 = vmatmul.mubr.bf16.gmra.mxu0 %v3243
        %v3462 = vpop.f32.mrf.mxu0
        %v3463 = vadd.f32 0.0, %v3462
        %v3464 = vpop.f32.mrf.mxu0
        %v3465 = vpop.f32.mrf.mxu0
        %v3466 = vadd.f32 0.0, %v3465
        %v3467 = vpop.f32.mrf.mxu0
        %3468 = vmatprep.mubr.bf16.mxu0 0
        %3469 = vmatmul.mubr.bf16.gmra.mxu0 %v3251
        %v3470 = vpop.f32.mrf.mxu0
        %v3471 = vadd.f32 0.0, %v3470
        %v3472 = vpop.f32.mrf.mxu0
        %v3473 = vpop.f32.mrf.mxu0
        %v3474 = vadd.f32 0.0, %v3473
        %v3475 = vpop.f32.mrf.mxu0
        %3476 = vmatprep.mubr.bf16.mxu0 0
        %3477 = vmatmul.mubr.bf16.gmra.mxu0 %v3259
        %v3478 = vpop.f32.mrf.mxu0
        %v3479 = vadd.f32 0.0, %v3478
        %v3480 = vpop.f32.mrf.mxu0
        %v3481 = vpop.f32.mrf.mxu0
        %v3482 = vadd.f32 0.0, %v3481
        %v3483 = vpop.f32.mrf.mxu0
        %3484 = vmatprep.mubr.bf16.mxu0 0
        %3485 = vmatmul.mubr.bf16.gmra.mxu0 %v3267
        %v3486 = vpop.f32.mrf.mxu0
        %v3487 = vadd.f32 0.0, %v3486
        %v3488 = vpop.f32.mrf.mxu0
        %v3489 = vpop.f32.mrf.mxu0
        %v3490 = vadd.f32 0.0, %v3489
        %v3491 = vpop.f32.mrf.mxu0
        %3492 = vmatprep.mubr.bf16.mxu0 0
        %3493 = vmatmul.mubr.bf16.gmra.mxu0 %v3275
        %v3494 = vpop.f32.mrf.mxu0
        %v3495 = vadd.f32 0.0, %v3494
        %v3496 = vpop.f32.mrf.mxu0
        %v3497 = vpop.f32.mrf.mxu0
        %v3498 = vadd.f32 0.0, %v3497
        %v3499 = vpop.f32.mrf.mxu0
        %3500 = vmatprep.mubr.bf16.mxu0 0
        %3501 = vmatmul.mubr.bf16.gmra.mxu0 %v3283
        %v3502 = vpop.f32.mrf.mxu0
        %v3503 = vadd.f32 0.0, %v3502
        %v3504 = vpop.f32.mrf.mxu0
        %v3505 = vpop.f32.mrf.mxu0
        %v3506 = vadd.f32 0.0, %v3505
        %v3507 = vpop.f32.mrf.mxu0
        %3508 = vmatprep.mubr.bf16.mxu0 0
        %3509 = vmatmul.mubr.bf16.gmra.mxu0 %v3291
        %v3510 = vpop.f32.mrf.mxu0
        %v3511 = vadd.f32 0.0, %v3510
        %v3512 = vpop.f32.mrf.mxu0
        %v3513 = vpop.f32.mrf.mxu0
        %v3514 = vadd.f32 0.0, %v3513
        %v3515 = vpop.f32.mrf.mxu0
        %3516 = vmatprep.mubr.bf16.mxu0 0
        %3517 = vmatmul.mubr.bf16.gmra.mxu0 %v3299
        %v3518 = vpop.f32.mrf.mxu0
        %v3519 = vadd.f32 0.0, %v3518
        %v3520 = vpop.f32.mrf.mxu0
        %v3521 = vpop.f32.mrf.mxu0
        %v3522 = vadd.f32 0.0, %v3521
        %v3523 = vpop.f32.mrf.mxu0
        %3524 = vmatprep.mubr.bf16.mxu0 0
        %3525 = vmatmul.mubr.bf16.gmra.mxu0 %v3307
        %v3526 = vpop.f32.mrf.mxu0
        %v3527 = vadd.f32 0.0, %v3526
        %v3528 = vpop.f32.mrf.mxu0
        %v3529 = vpop.f32.mrf.mxu0
        %v3530 = vadd.f32 0.0, %v3529
        %v3531 = vpop.f32.mrf.mxu0
        %3532 = vmatprep.mubr.bf16.mxu0 0
        %3533 = vmatmul.mubr.bf16.gmra.mxu0 %v3315
        %v3534 = vpop.f32.mrf.mxu0
        %v3535 = vadd.f32 0.0, %v3534
        %v3536 = vpop.f32.mrf.mxu0
        %v3537 = vpop.f32.mrf.mxu0
        %v3538 = vadd.f32 0.0, %v3537
        %v3539 = vpop.f32.mrf.mxu0
        %3540 = vmatprep.mubr.bf16.mxu0 0
        %3541 = vmatmul.mubr.bf16.gmra.mxu0 %v3323
        %v3542 = vpop.f32.mrf.mxu0
        %v3543 = vadd.f32 0.0, %v3542
        %v3544 = vpop.f32.mrf.mxu0
        %v3545 = vpop.f32.mrf.mxu0
        %v3546 = vadd.f32 0.0, %v3545
        %v3547 = vpop.f32.mrf.mxu0
        %3548 = vmatprep.mubr.bf16.mxu0 0
        %3549 = vmatmul.mubr.bf16.gmra.mxu0 %v3331
        %v3550 = vpop.f32.mrf.mxu0
        %v3551 = vadd.f32 0.0, %v3550
        %v3552 = vpop.f32.mrf.mxu0
        %v3553 = vpop.f32.mrf.mxu0
        %v3554 = vadd.f32 0.0, %v3553
        %v3555 = vpop.f32.mrf.mxu0
        %3556 = vmatprep.mubr.bf16.mxu0 0
        %3557 = vmatmul.mubr.bf16.gmra.mxu0 %v3339
        %v3558 = vpop.f32.mrf.mxu0
        %v3559 = vadd.f32 0.0, %v3558
        %v3560 = vpop.f32.mrf.mxu0
        %v3561 = vpop.f32.mrf.mxu0
        %v3562 = vadd.f32 0.0, %v3561
        %v3563 = vpop.f32.mrf.mxu0
        %3564 = vdwg.mxu0
        %v3565 = vadd.f32 %v2466, %v3439
        %v3566 = vadd.f32 %v2469, %v3442
        %v3567 = vadd.f32 %v2474, %v3447
        %v3568 = vadd.f32 %v2477, %v3450
        %v3569 = vadd.f32 %v2482, %v3455
        %v3570 = vadd.f32 %v2485, %v3458
        %v3571 = vadd.f32 %v2490, %v3463
        %v3572 = vadd.f32 %v2493, %v3466
        %v3573 = vadd.f32 %v2498, %v3471
        %v3574 = vadd.f32 %v2501, %v3474
        %v3575 = vadd.f32 %v2506, %v3479
        %v3576 = vadd.f32 %v2509, %v3482
        %v3577 = vadd.f32 %v2514, %v3487
        %v3578 = vadd.f32 %v2517, %v3490
        %v3579 = vadd.f32 %v2522, %v3495
        %v3580 = vadd.f32 %v2525, %v3498
        %v3581 = vadd.f32 %v2530, %v3503
        %v3582 = vadd.f32 %v2533, %v3506
        %v3583 = vadd.f32 %v2538, %v3511
        %v3584 = vadd.f32 %v2541, %v3514
        %v3585 = vadd.f32 %v2546, %v3519
        %v3586 = vadd.f32 %v2549, %v3522
        %v3587 = vadd.f32 %v2554, %v3527
        %v3588 = vadd.f32 %v2557, %v3530
        %v3589 = vadd.f32 %v2562, %v3535
        %v3590 = vadd.f32 %v2565, %v3538
        %v3591 = vadd.f32 %v2570, %v3543
        %v3592 = vadd.f32 %v2573, %v3546
        %v3593 = vadd.f32 %v2578, %v3551
        %v3594 = vadd.f32 %v2581, %v3554
        %v3595 = vadd.f32 %v2586, %v3559
        %v3596 = vadd.f32 %v2589, %v3562
        %v3597 = vld [vmem:[#allocation2 + $0xc] sm:$0x8]
        %v3598 = vld [vmem:[#allocation2 + $0x10] sm:$0xf]
        %v3599 = vld [vmem:[#allocation2 + $0x14] sm:$0xf]
        %v3600 = vld [vmem:[#allocation2 + $0x18] sm:$0xf]
        %v3601 = vld [vmem:[#allocation2 + $0x1c] sm:$0xf]
        %v3602 = vld [vmem:[#allocation2 + $0x20] sm:$0xf]
        %v3603 = vld [vmem:[#allocation2 + $0x24] sm:$0xf]
        %v3604 = vld [vmem:[#allocation2 + $0x28] sm:$0xf]
        %v3605 = vld [vmem:[#allocation2 + $0x2c] sm:$0xf]
        %v3606 = vld [vmem:[#allocation2 + $0x30] sm:$0xf]
        %v3607 = vld [vmem:[#allocation2 + $0x34] sm:$0xf]
        %v3608 = vld [vmem:[#allocation2 + $0x38] sm:$0xf]
        %v3609 = vld [vmem:[#allocation2 + $0x3c] sm:$0xf]
        %v3610 = vld [vmem:[#allocation2 + $0x40] sm:$0xf]
        %v3611 = vld [vmem:[#allocation2 + $0x44] sm:$0xf]
        %v3612 = vld [vmem:[#allocation2 + $0x48] sm:$0xf]
        %v3613 = vld [vmem:[#allocation2 + $0x4c] sm:$0xf]
        %v3614 = vld [vmem:[#allocation2 + $0x50] sm:$0xf]
        %v3615 = vld [vmem:[#allocation2 + $0x54] sm:$0xf]
        %v3616 = vld [vmem:[#allocation2 + $0x58] sm:$0xf]
        %v3617 = vld [vmem:[#allocation2 + $0x5c] sm:$0xf]
        %v3618 = vld [vmem:[#allocation2 + $0x60] sm:$0xf]
        %v3619 = vld [vmem:[#allocation2 + $0x64] sm:$0xf]
        %v3620 = vld [vmem:[#allocation2 + $0x68] sm:$0xf]
        %v3621 = vld [vmem:[#allocation2 + $0x6c] sm:$0xf]
        %v3622 = vld [vmem:[#allocation2 + $0x70] sm:$0xf]
        %v3623 = vld [vmem:[#allocation2 + $0x74] sm:$0xf]
        %v3624 = vld [vmem:[#allocation2 + $0x78] sm:$0xf]
        %v3625 = vld [vmem:[#allocation2 + $0x7c] sm:$0xf]
        %v3626 = vld [vmem:[#allocation2 + $0x80] sm:$0xf]
        %v3627 = vld [vmem:[#allocation2 + $0x84] sm:$0xf]
        %v3628 = vld [vmem:[#allocation2 + $0x88] sm:$0xf]
        %v3629 = vld [vmem:[#allocation2 + $0x8c] sm:$0xf]
        %v3630 = vsel %vm1728, %v3597, 0
        %v3631 = vsel %vm1729, %v3598, 0
        %v3632 = vsel %vm1730, %v3599, 0
        %v3633 = vsel %vm1731, %v3600, 0
        %v3634 = vsel %vm1732, %v3601, 0
        %v3635 = vsel %vm1733, %v3602, 0
        %v3636 = vsel %vm1734, %v3603, 0
        %v3637 = vsel %vm1735, %v3604, 0
        %v3638 = vsel %vm1736, %v3605, 0
        %v3639 = vsel %vm1737, %v3606, 0
        %v3640 = vsel %vm1738, %v3607, 0
        %v3641 = vsel %vm1739, %v3608, 0
        %v3642 = vsel %vm1740, %v3609, 0
        %v3643 = vsel %vm1741, %v3610, 0
        %v3644 = vsel %vm1742, %v3611, 0
        %v3645 = vsel %vm1743, %v3612, 0
        %v3646 = vsel %vm1744, %v3613, 0
        %v3647 = vsel %vm1745, %v3614, 0
        %v3648 = vsel %vm1746, %v3615, 0
        %v3649 = vsel %vm1747, %v3616, 0
        %v3650 = vsel %vm1748, %v3617, 0
        %v3651 = vsel %vm1749, %v3618, 0
        %v3652 = vsel %vm1750, %v3619, 0
        %v3653 = vsel %vm1751, %v3620, 0
        %v3654 = vsel %vm1752, %v3621, 0
        %v3655 = vsel %vm1753, %v3622, 0
        %v3656 = vsel %vm1754, %v3623, 0
        %v3657 = vsel %vm1755, %v3624, 0
        %v3658 = vsel %vm1756, %v3625, 0
        %v3659 = vsel %vm1757, %v3626, 0
        %v3660 = vsel %vm1758, %v3627, 0
        %v3661 = vsel %vm1759, %v3628, 0
        %v3662 = vsel %vm1760, %v3629, 0
        %v3663 = vld [vmem:[%s3 + $0xc0] sm:$0xf]
        %v3664 = vld [vmem:[%s3 + $0xc4] sm:$0xf]
        %v3665 = vld [vmem:[%s3 + $0xc8] sm:$0xf]
        %v3666 = vld [vmem:[%s3 + $0xcc] sm:$0xf]
        %v3667 = vld [vmem:[%s3 + $0xd0] sm:$0xf]
        %v3668 = vld [vmem:[%s3 + $0xd4] sm:$0xf]
        %v3669 = vld [vmem:[%s3 + $0xd8] sm:$0xf]
        %v3670 = vld [vmem:[%s3 + $0xdc] sm:$0xf]
        %v3671 = vld [vmem:[%s3 + $0xe0] sm:$0xf]
        %v3672 = vld [vmem:[%s3 + $0xe4] sm:$0xf]
        %v3673 = vld [vmem:[%s3 + $0xe8] sm:$0xf]
        %v3674 = vld [vmem:[%s3 + $0xec] sm:$0xf]
        %v3675 = vld [vmem:[%s3 + $0xf0] sm:$0xf]
        %v3676 = vld [vmem:[%s3 + $0xf4] sm:$0xf]
        %v3677 = vld [vmem:[%s3 + $0xf8] sm:$0xf]
        %v3678 = vld [vmem:[%s3 + $0xfc] sm:$0xf]
        %v3712 = vunpack.c.l.b16 %v3630
        %v3713 = vunpack.c.l.b16 %v3631
        %v3714 = vunpack.c.l.b16 %v3632
        %v3715 = vunpack.c.l.b16 %v3633
        %v3716 = vunpack.c.l.b16 %v3634
        %v3717 = vunpack.c.l.b16 %v3635
        %v3718 = vunpack.c.l.b16 %v3636
        %v3719 = vunpack.c.l.b16 %v3637
        %v3720 = vunpack.c.l.b16 %v3638
        %v3721 = vunpack.c.l.b16 %v3639
        %v3722 = vunpack.c.l.b16 %v3640
        %v3723 = vunpack.c.l.b16 %v3641
        %v3724 = vunpack.c.l.b16 %v3642
        %v3725 = vunpack.c.l.b16 %v3643
        %v3726 = vunpack.c.l.b16 %v3644
        %v3727 = vunpack.c.l.b16 %v3645
        %v3728 = vunpack.c.l.b16 %v3646
        %v3729 = vunpack.c.l.b16 %v3647
        %v3730 = vunpack.c.l.b16 %v3648
        %v3731 = vunpack.c.l.b16 %v3649
        %v3732 = vunpack.c.l.b16 %v3650
        %v3733 = vunpack.c.l.b16 %v3651
        %v3734 = vunpack.c.l.b16 %v3652
        %v3735 = vunpack.c.l.b16 %v3653
        %v3736 = vunpack.c.l.b16 %v3654
        %v3737 = vunpack.c.l.b16 %v3655
        %v3738 = vunpack.c.l.b16 %v3656
        %v3739 = vunpack.c.l.b16 %v3657
        %v3740 = vunpack.c.l.b16 %v3658
        %v3741 = vunpack.c.l.b16 %v3659
        %v3742 = vunpack.c.l.b16 %v3660
        %v3743 = vunpack.c.l.b16 %v3661
        %v3744 = vunpack.c.l.b16 %v3662
        %v3745 = vpack.c.b16 %v3713, %v3712
        %v3746 = vpack.c.b16 %v3715, %v3714
        %v3747 = vpack.c.b16 %v3717, %v3716
        %v3748 = vpack.c.b16 %v3719, %v3718
        %v3749 = vpack.c.b16 %v3721, %v3720
        %v3750 = vpack.c.b16 %v3723, %v3722
        %v3751 = vpack.c.b16 %v3725, %v3724
        %v3752 = vpack.c.b16 %v3727, %v3726
        %v3753 = vpack.c.b16 %v3729, %v3728
        %v3754 = vpack.c.b16 %v3731, %v3730
        %v3755 = vpack.c.b16 %v3733, %v3732
        %v3756 = vpack.c.b16 %v3735, %v3734
        %v3757 = vpack.c.b16 %v3737, %v3736
        %v3758 = vpack.c.b16 %v3739, %v3738
        %v3759 = vpack.c.b16 %v3741, %v3740
        %v3760 = vpack.c.b16 %v3743, %v3742
        %v3761 = vpack.c.b16 %v3744, %v3744
        %v3763 = vshrl.u32 %v3745, 16
        %v3765 = vrot.slane %v3763, 3
        %v3766 = vshll.u32 %v3745, 16
        %v3768 = vrot.slane %v3766, 4
        %v3769 = vor.u32 %v3765, %v3768
        %v3771 = vshrl.u32 %v3746, 16
        %v3773 = vrot.slane %v3771, 3
        %v3774 = vshll.u32 %v3746, 16
        %v3776 = vrot.slane %v3774, 4
        %v3777 = vor.u32 %v3773, %v3776
        %v3778 = vsel %vm2214, %v3769, %v3777
        %v3780 = vshrl.u32 %v3747, 16
        %v3782 = vrot.slane %v3780, 3
        %v3783 = vshll.u32 %v3747, 16
        %v3785 = vrot.slane %v3783, 4
        %v3786 = vor.u32 %v3782, %v3785
        %v3787 = vsel %vm2214, %v3777, %v3786
        %v3789 = vshrl.u32 %v3748, 16
        %v3791 = vrot.slane %v3789, 3
        %v3792 = vshll.u32 %v3748, 16
        %v3794 = vrot.slane %v3792, 4
        %v3795 = vor.u32 %v3791, %v3794
        %v3796 = vsel %vm2214, %v3786, %v3795
        %v3798 = vshrl.u32 %v3749, 16
        %v3800 = vrot.slane %v3798, 3
        %v3801 = vshll.u32 %v3749, 16
        %v3803 = vrot.slane %v3801, 4
        %v3804 = vor.u32 %v3800, %v3803
        %v3805 = vsel %vm2214, %v3795, %v3804
        %v3807 = vshrl.u32 %v3750, 16
        %v3809 = vrot.slane %v3807, 3
        %v3810 = vshll.u32 %v3750, 16
        %v3812 = vrot.slane %v3810, 4
        %v3813 = vor.u32 %v3809, %v3812
        %v3814 = vsel %vm2214, %v3804, %v3813
        %v3816 = vshrl.u32 %v3751, 16
        %v3818 = vrot.slane %v3816, 3
        %v3819 = vshll.u32 %v3751, 16
        %v3821 = vrot.slane %v3819, 4
        %v3822 = vor.u32 %v3818, %v3821
        %v3823 = vsel %vm2214, %v3813, %v3822
        %v3825 = vshrl.u32 %v3752, 16
        %v3827 = vrot.slane %v3825, 3
        %v3828 = vshll.u32 %v3752, 16
        %v3830 = vrot.slane %v3828, 4
        %v3831 = vor.u32 %v3827, %v3830
        %v3832 = vsel %vm2214, %v3822, %v3831
        %v3834 = vshrl.u32 %v3753, 16
        %v3836 = vrot.slane %v3834, 3
        %v3837 = vshll.u32 %v3753, 16
        %v3839 = vrot.slane %v3837, 4
        %v3840 = vor.u32 %v3836, %v3839
        %v3841 = vsel %vm2214, %v3831, %v3840
        %v3843 = vshrl.u32 %v3754, 16
        %v3845 = vrot.slane %v3843, 3
        %v3846 = vshll.u32 %v3754, 16
        %v3848 = vrot.slane %v3846, 4
        %v3849 = vor.u32 %v3845, %v3848
        %v3850 = vsel %vm2214, %v3840, %v3849
        %v3852 = vshrl.u32 %v3755, 16
        %v3854 = vrot.slane %v3852, 3
        %v3855 = vshll.u32 %v3755, 16
        %v3857 = vrot.slane %v3855, 4
        %v3858 = vor.u32 %v3854, %v3857
        %v3859 = vsel %vm2214, %v3849, %v3858
        %v3861 = vshrl.u32 %v3756, 16
        %v3863 = vrot.slane %v3861, 3
        %v3864 = vshll.u32 %v3756, 16
        %v3866 = vrot.slane %v3864, 4
        %v3867 = vor.u32 %v3863, %v3866
        %v3868 = vsel %vm2214, %v3858, %v3867
        %v3870 = vshrl.u32 %v3757, 16
        %v3872 = vrot.slane %v3870, 3
        %v3873 = vshll.u32 %v3757, 16
        %v3875 = vrot.slane %v3873, 4
        %v3876 = vor.u32 %v3872, %v3875
        %v3877 = vsel %vm2214, %v3867, %v3876
        %v3879 = vshrl.u32 %v3758, 16
        %v3881 = vrot.slane %v3879, 3
        %v3882 = vshll.u32 %v3758, 16
        %v3884 = vrot.slane %v3882, 4
        %v3885 = vor.u32 %v3881, %v3884
        %v3886 = vsel %vm2214, %v3876, %v3885
        %v3888 = vshrl.u32 %v3759, 16
        %v3890 = vrot.slane %v3888, 3
        %v3891 = vshll.u32 %v3759, 16
        %v3893 = vrot.slane %v3891, 4
        %v3894 = vor.u32 %v3890, %v3893
        %v3895 = vsel %vm2214, %v3885, %v3894
        %v3897 = vshrl.u32 %v3760, 16
        %v3899 = vrot.slane %v3897, 3
        %v3900 = vshll.u32 %v3760, 16
        %v3902 = vrot.slane %v3900, 4
        %v3903 = vor.u32 %v3899, %v3902
        %v3904 = vsel %vm2214, %v3894, %v3903
        %v3906 = vshrl.u32 %v3761, 16
        %v3908 = vrot.slane %v3906, 3
        %v3909 = vshll.u32 %v3761, 16
        %v3911 = vrot.slane %v3909, 4
        %v3912 = vor.u32 %v3908, %v3911
        %v3913 = vsel %vm2214, %v3903, %v3912
        %v3946 = vunpack.c.l.b16 %v3663
        %v3947 = vunpack.c.l.b16 %v3664
        %v3948 = vunpack.c.l.b16 %v3665
        %v3949 = vunpack.c.l.b16 %v3666
        %v3950 = vunpack.c.l.b16 %v3667
        %v3951 = vunpack.c.l.b16 %v3668
        %v3952 = vunpack.c.l.b16 %v3669
        %v3953 = vunpack.c.l.b16 %v3670
        %v3954 = vunpack.c.l.b16 %v3671
        %v3955 = vunpack.c.l.b16 %v3672
        %v3956 = vunpack.c.l.b16 %v3673
        %v3957 = vunpack.c.l.b16 %v3674
        %v3958 = vunpack.c.l.b16 %v3675
        %v3959 = vunpack.c.l.b16 %v3676
        %v3960 = vunpack.c.l.b16 %v3677
        %v3961 = vunpack.c.l.b16 %v3678
        %v3962 = vpack.c.b16 %v3947, %v3946
        %v3963 = vpack.c.b16 %v3949, %v3948
        %v3964 = vpack.c.b16 %v3951, %v3950
        %v3965 = vpack.c.b16 %v3953, %v3952
        %v3966 = vpack.c.b16 %v3955, %v3954
        %v3967 = vpack.c.b16 %v3957, %v3956
        %v3968 = vpack.c.b16 %v3959, %v3958
        %v3969 = vpack.c.b16 %v3961, %v3960
        %3978 = vmatprep.subr.bf16.mxu0 0
        %3979 = vmatpush1.bf16.msra.mxu0 %v3969
        %3980 = vmatprep.subr.bf16.mxu0 0
        %3981 = vmatpush1.bf16.msra.mxu0 %v3968
        %3982 = vmatprep.subr.bf16.mxu0 0
        %3983 = vmatpush1.bf16.msra.mxu0 %v3967
        %3984 = vmatprep.subr.bf16.mxu0 0
        %3985 = vmatpush1.bf16.msra.mxu0 %v3966
        %3986 = vmatprep.subr.bf16.mxu0 0
        %3987 = vmatpush1.bf16.msra.mxu0 %v3965
        %3988 = vmatprep.subr.bf16.mxu0 0
        %3989 = vmatpush1.bf16.msra.mxu0 %v3964
        %3990 = vmatprep.subr.bf16.mxu0 0
        %3991 = vmatpush1.bf16.msra.mxu0 %v3963
        %3992 = vmatprep.subr.bf16.mxu0 0
        %3993 = vmatpush1.bf16.msra.mxu0 %v3962
        %3994 = vmatprep.subr.bf16.mxu0 0
        %3995 = vmatpush2.bf16.msra.mxu0 0
        %3996 = vmatprep.subr.bf16.mxu0 0
        %3997 = vmatpush2.bf16.msra.mxu0 0
        %3998 = vmatprep.subr.bf16.mxu0 0
        %3999 = vmatpush2.bf16.msra.mxu0 0
        %4000 = vmatprep.subr.bf16.mxu0 0
        %4001 = vmatpush2.bf16.msra.mxu0 0
        %4002 = vmatprep.subr.bf16.mxu0 0
        %4003 = vmatpush2.bf16.msra.mxu0 0
        %4004 = vmatprep.subr.bf16.mxu0 0
        %4005 = vmatpush2.bf16.msra.mxu0 0
        %4006 = vmatprep.subr.bf16.mxu0 0
        %4007 = vmatpush2.bf16.msra.mxu0 0
        %4008 = vmatprep.subr.bf16.mxu0 0
        %4009 = vmatpush2.bf16.msra.mxu0 0
        %4010 = vmatprep.mubr.bf16.mxu0 0
        %4011 = vmatmul.mubr.bf16.gmra.mxu0 %v3778
        %v4012 = vpop.f32.mrf.mxu0
        %v4013 = vadd.f32 0.0, %v4012
        %v4014 = vpop.f32.mrf.mxu0
        %v4015 = vpop.f32.mrf.mxu0
        %v4016 = vadd.f32 0.0, %v4015
        %v4017 = vpop.f32.mrf.mxu0
        %4018 = vmatprep.mubr.bf16.mxu0 0
        %4019 = vmatmul.mubr.bf16.gmra.mxu0 %v3787
        %v4020 = vpop.f32.mrf.mxu0
        %v4021 = vadd.f32 0.0, %v4020
        %v4022 = vpop.f32.mrf.mxu0
        %v4023 = vpop.f32.mrf.mxu0
        %v4024 = vadd.f32 0.0, %v4023
        %v4025 = vpop.f32.mrf.mxu0
        %4026 = vmatprep.mubr.bf16.mxu0 0
        %4027 = vmatmul.mubr.bf16.gmra.mxu0 %v3796
        %v4028 = vpop.f32.mrf.mxu0
        %v4029 = vadd.f32 0.0, %v4028
        %v4030 = vpop.f32.mrf.mxu0
        %v4031 = vpop.f32.mrf.mxu0
        %v4032 = vadd.f32 0.0, %v4031
        %v4033 = vpop.f32.mrf.mxu0
        %4034 = vmatprep.mubr.bf16.mxu0 0
        %4035 = vmatmul.mubr.bf16.gmra.mxu0 %v3805
        %v4036 = vpop.f32.mrf.mxu0
        %v4037 = vadd.f32 0.0, %v4036
        %v4038 = vpop.f32.mrf.mxu0
        %v4039 = vpop.f32.mrf.mxu0
        %v4040 = vadd.f32 0.0, %v4039
        %v4041 = vpop.f32.mrf.mxu0
        %4042 = vmatprep.mubr.bf16.mxu0 0
        %4043 = vmatmul.mubr.bf16.gmra.mxu0 %v3814
        %v4044 = vpop.f32.mrf.mxu0
        %v4045 = vadd.f32 0.0, %v4044
        %v4046 = vpop.f32.mrf.mxu0
        %v4047 = vpop.f32.mrf.mxu0
        %v4048 = vadd.f32 0.0, %v4047
        %v4049 = vpop.f32.mrf.mxu0
        %4050 = vmatprep.mubr.bf16.mxu0 0
        %4051 = vmatmul.mubr.bf16.gmra.mxu0 %v3823
        %v4052 = vpop.f32.mrf.mxu0
        %v4053 = vadd.f32 0.0, %v4052
        %v4054 = vpop.f32.mrf.mxu0
        %v4055 = vpop.f32.mrf.mxu0
        %v4056 = vadd.f32 0.0, %v4055
        %v4057 = vpop.f32.mrf.mxu0
        %4058 = vmatprep.mubr.bf16.mxu0 0
        %4059 = vmatmul.mubr.bf16.gmra.mxu0 %v3832
        %v4060 = vpop.f32.mrf.mxu0
        %v4061 = vadd.f32 0.0, %v4060
        %v4062 = vpop.f32.mrf.mxu0
        %v4063 = vpop.f32.mrf.mxu0
        %v4064 = vadd.f32 0.0, %v4063
        %v4065 = vpop.f32.mrf.mxu0
        %4066 = vmatprep.mubr.bf16.mxu0 0
        %4067 = vmatmul.mubr.bf16.gmra.mxu0 %v3841
        %v4068 = vpop.f32.mrf.mxu0
        %v4069 = vadd.f32 0.0, %v4068
        %v4070 = vpop.f32.mrf.mxu0
        %v4071 = vpop.f32.mrf.mxu0
        %v4072 = vadd.f32 0.0, %v4071
        %v4073 = vpop.f32.mrf.mxu0
        %4074 = vmatprep.mubr.bf16.mxu0 0
        %4075 = vmatmul.mubr.bf16.gmra.mxu0 %v3850
        %v4076 = vpop.f32.mrf.mxu0
        %v4077 = vadd.f32 0.0, %v4076
        %v4078 = vpop.f32.mrf.mxu0
        %v4079 = vpop.f32.mrf.mxu0
        %v4080 = vadd.f32 0.0, %v4079
        %v4081 = vpop.f32.mrf.mxu0
        %4082 = vmatprep.mubr.bf16.mxu0 0
        %4083 = vmatmul.mubr.bf16.gmra.mxu0 %v3859
        %v4084 = vpop.f32.mrf.mxu0
        %v4085 = vadd.f32 0.0, %v4084
        %v4086 = vpop.f32.mrf.mxu0
        %v4087 = vpop.f32.mrf.mxu0
        %v4088 = vadd.f32 0.0, %v4087
        %v4089 = vpop.f32.mrf.mxu0
        %4090 = vmatprep.mubr.bf16.mxu0 0
        %4091 = vmatmul.mubr.bf16.gmra.mxu0 %v3868
        %v4092 = vpop.f32.mrf.mxu0
        %v4093 = vadd.f32 0.0, %v4092
        %v4094 = vpop.f32.mrf.mxu0
        %v4095 = vpop.f32.mrf.mxu0
        %v4096 = vadd.f32 0.0, %v4095
        %v4097 = vpop.f32.mrf.mxu0
        %4098 = vmatprep.mubr.bf16.mxu0 0
        %4099 = vmatmul.mubr.bf16.gmra.mxu0 %v3877
        %v4100 = vpop.f32.mrf.mxu0
        %v4101 = vadd.f32 0.0, %v4100
        %v4102 = vpop.f32.mrf.mxu0
        %v4103 = vpop.f32.mrf.mxu0
        %v4104 = vadd.f32 0.0, %v4103
        %v4105 = vpop.f32.mrf.mxu0
        %4106 = vmatprep.mubr.bf16.mxu0 0
        %4107 = vmatmul.mubr.bf16.gmra.mxu0 %v3886
        %v4108 = vpop.f32.mrf.mxu0
        %v4109 = vadd.f32 0.0, %v4108
        %v4110 = vpop.f32.mrf.mxu0
        %v4111 = vpop.f32.mrf.mxu0
        %v4112 = vadd.f32 0.0, %v4111
        %v4113 = vpop.f32.mrf.mxu0
        %4114 = vmatprep.mubr.bf16.mxu0 0
        %4115 = vmatmul.mubr.bf16.gmra.mxu0 %v3895
        %v4116 = vpop.f32.mrf.mxu0
        %v4117 = vadd.f32 0.0, %v4116
        %v4118 = vpop.f32.mrf.mxu0
        %v4119 = vpop.f32.mrf.mxu0
        %v4120 = vadd.f32 0.0, %v4119
        %v4121 = vpop.f32.mrf.mxu0
        %4122 = vmatprep.mubr.bf16.mxu0 0
        %4123 = vmatmul.mubr.bf16.gmra.mxu0 %v3904
        %v4124 = vpop.f32.mrf.mxu0
        %v4125 = vadd.f32 0.0, %v4124
        %v4126 = vpop.f32.mrf.mxu0
        %v4127 = vpop.f32.mrf.mxu0
        %v4128 = vadd.f32 0.0, %v4127
        %v4129 = vpop.f32.mrf.mxu0
        %4130 = vmatprep.mubr.bf16.mxu0 0
        %4131 = vmatmul.mubr.bf16.gmra.mxu0 %v3913
        %v4132 = vpop.f32.mrf.mxu0
        %v4133 = vadd.f32 0.0, %v4132
        %v4134 = vpop.f32.mrf.mxu0
        %v4135 = vpop.f32.mrf.mxu0
        %v4136 = vadd.f32 0.0, %v4135
        %v4137 = vpop.f32.mrf.mxu0
        %4138 = vdwg.mxu0
        %v4139 = vadd.f32 %v3565, %v4013
        %v4140 = vadd.f32 %v3566, %v4016
        %v4141 = vadd.f32 %v3567, %v4021
        %v4142 = vadd.f32 %v3568, %v4024
        %v4143 = vadd.f32 %v3569, %v4029
        %v4144 = vadd.f32 %v3570, %v4032
        %v4145 = vadd.f32 %v3571, %v4037
        %v4146 = vadd.f32 %v3572, %v4040
        %v4147 = vadd.f32 %v3573, %v4045
        %v4148 = vadd.f32 %v3574, %v4048
        %v4149 = vadd.f32 %v3575, %v4053
        %v4150 = vadd.f32 %v3576, %v4056
        %v4151 = vadd.f32 %v3577, %v4061
        %v4152 = vadd.f32 %v3578, %v4064
        %v4153 = vadd.f32 %v3579, %v4069
        %v4154 = vadd.f32 %v3580, %v4072
        %v4155 = vadd.f32 %v3581, %v4077
        %v4156 = vadd.f32 %v3582, %v4080
        %v4157 = vadd.f32 %v3583, %v4085
        %v4158 = vadd.f32 %v3584, %v4088
        %v4159 = vadd.f32 %v3585, %v4093
        %v4160 = vadd.f32 %v3586, %v4096
        %v4161 = vadd.f32 %v3587, %v4101
        %v4162 = vadd.f32 %v3588, %v4104
        %v4163 = vadd.f32 %v3589, %v4109
        %v4164 = vadd.f32 %v3590, %v4112
        %v4165 = vadd.f32 %v3591, %v4117
        %v4166 = vadd.f32 %v3592, %v4120
        %v4167 = vadd.f32 %v3593, %v4125
        %v4168 = vadd.f32 %v3594, %v4128
        %v4169 = vadd.f32 %v3595, %v4133
        %v4170 = vadd.f32 %v3596, %v4136
        %v4171 = vld [vmem:[%s3 + $0x100] sm:$0xf]
        %v4172 = vld [vmem:[%s3 + $0x104] sm:$0xf]
        %v4173 = vld [vmem:[%s3 + $0x108] sm:$0xf]
        %v4174 = vld [vmem:[%s3 + $0x10c] sm:$0xf]
        %v4175 = vld [vmem:[%s3 + $0x110] sm:$0xf]
        %v4176 = vld [vmem:[%s3 + $0x114] sm:$0xf]
        %v4177 = vld [vmem:[%s3 + $0x118] sm:$0xf]
        %v4178 = vld [vmem:[%s3 + $0x11c] sm:$0xf]
        %v4179 = vld [vmem:[%s3 + $0x120] sm:$0xf]
        %v4180 = vld [vmem:[%s3 + $0x124] sm:$0xf]
        %v4181 = vld [vmem:[%s3 + $0x128] sm:$0xf]
        %v4182 = vld [vmem:[%s3 + $0x12c] sm:$0xf]
        %v4183 = vld [vmem:[%s3 + $0x130] sm:$0xf]
        %v4184 = vld [vmem:[%s3 + $0x134] sm:$0xf]
        %v4185 = vld [vmem:[%s3 + $0x138] sm:$0xf]
        %v4186 = vld [vmem:[%s3 + $0x13c] sm:$0xf]
        %v4219 = vunpack.c.l.b16 %v3598
        %v4220 = vunpack.c.l.b16 %v3599
        %v4221 = vunpack.c.l.b16 %v3600
        %v4222 = vunpack.c.l.b16 %v3601
        %v4223 = vunpack.c.l.b16 %v3602
        %v4224 = vunpack.c.l.b16 %v3603
        %v4225 = vunpack.c.l.b16 %v3604
        %v4226 = vunpack.c.l.b16 %v3605
        %v4227 = vunpack.c.l.b16 %v3606
        %v4228 = vunpack.c.l.b16 %v3607
        %v4229 = vunpack.c.l.b16 %v3608
        %v4230 = vunpack.c.l.b16 %v3609
        %v4231 = vunpack.c.l.b16 %v3610
        %v4232 = vunpack.c.l.b16 %v3611
        %v4233 = vunpack.c.l.b16 %v3612
        %v4234 = vunpack.c.l.b16 %v3613
        %v4235 = vunpack.c.l.b16 %v3614
        %v4236 = vunpack.c.l.b16 %v3615
        %v4237 = vunpack.c.l.b16 %v3616
        %v4238 = vunpack.c.l.b16 %v3617
        %v4239 = vunpack.c.l.b16 %v3618
        %v4240 = vunpack.c.l.b16 %v3619
        %v4241 = vunpack.c.l.b16 %v3620
        %v4242 = vunpack.c.l.b16 %v3621
        %v4243 = vunpack.c.l.b16 %v3622
        %v4244 = vunpack.c.l.b16 %v3623
        %v4245 = vunpack.c.l.b16 %v3624
        %v4246 = vunpack.c.l.b16 %v3625
        %v4247 = vunpack.c.l.b16 %v3626
        %v4248 = vunpack.c.l.b16 %v3627
        %v4249 = vunpack.c.l.b16 %v3628
        %v4250 = vunpack.c.l.b16 %v3629
        %v4251 = vpack.c.b16 %v4220, %v4219
        %v4252 = vpack.c.b16 %v4222, %v4221
        %v4253 = vpack.c.b16 %v4224, %v4223
        %v4254 = vpack.c.b16 %v4226, %v4225
        %v4255 = vpack.c.b16 %v4228, %v4227
        %v4256 = vpack.c.b16 %v4230, %v4229
        %v4257 = vpack.c.b16 %v4232, %v4231
        %v4258 = vpack.c.b16 %v4234, %v4233
        %v4259 = vpack.c.b16 %v4236, %v4235
        %v4260 = vpack.c.b16 %v4238, %v4237
        %v4261 = vpack.c.b16 %v4240, %v4239
        %v4262 = vpack.c.b16 %v4242, %v4241
        %v4263 = vpack.c.b16 %v4244, %v4243
        %v4264 = vpack.c.b16 %v4246, %v4245
        %v4265 = vpack.c.b16 %v4248, %v4247
        %v4266 = vpack.c.b16 %v4250, %v4249
        %v4299 = vunpack.c.l.b16 %v4171
        %v4300 = vunpack.c.l.b16 %v4172
        %v4301 = vunpack.c.l.b16 %v4173
        %v4302 = vunpack.c.l.b16 %v4174
        %v4303 = vunpack.c.l.b16 %v4175
        %v4304 = vunpack.c.l.b16 %v4176
        %v4305 = vunpack.c.l.b16 %v4177
        %v4306 = vunpack.c.l.b16 %v4178
        %v4307 = vunpack.c.l.b16 %v4179
        %v4308 = vunpack.c.l.b16 %v4180
        %v4309 = vunpack.c.l.b16 %v4181
        %v4310 = vunpack.c.l.b16 %v4182
        %v4311 = vunpack.c.l.b16 %v4183
        %v4312 = vunpack.c.l.b16 %v4184
        %v4313 = vunpack.c.l.b16 %v4185
        %v4314 = vunpack.c.l.b16 %v4186
        %v4315 = vpack.c.b16 %v4300, %v4299
        %v4316 = vpack.c.b16 %v4302, %v4301
        %v4317 = vpack.c.b16 %v4304, %v4303
        %v4318 = vpack.c.b16 %v4306, %v4305
        %v4319 = vpack.c.b16 %v4308, %v4307
        %v4320 = vpack.c.b16 %v4310, %v4309
        %v4321 = vpack.c.b16 %v4312, %v4311
        %v4322 = vpack.c.b16 %v4314, %v4313
        %4331 = vmatprep.subr.bf16.mxu0 0
        %4332 = vmatpush1.bf16.msra.mxu0 %v4322
        %4333 = vmatprep.subr.bf16.mxu0 0
        %4334 = vmatpush1.bf16.msra.mxu0 %v4321
        %4335 = vmatprep.subr.bf16.mxu0 0
        %4336 = vmatpush1.bf16.msra.mxu0 %v4320
        %4337 = vmatprep.subr.bf16.mxu0 0
        %4338 = vmatpush1.bf16.msra.mxu0 %v4319
        %4339 = vmatprep.subr.bf16.mxu0 0
        %4340 = vmatpush1.bf16.msra.mxu0 %v4318
        %4341 = vmatprep.subr.bf16.mxu0 0
        %4342 = vmatpush1.bf16.msra.mxu0 %v4317
        %4343 = vmatprep.subr.bf16.mxu0 0
        %4344 = vmatpush1.bf16.msra.mxu0 %v4316
        %4345 = vmatprep.subr.bf16.mxu0 0
        %4346 = vmatpush1.bf16.msra.mxu0 %v4315
        %4347 = vmatprep.subr.bf16.mxu0 0
        %4348 = vmatpush2.bf16.msra.mxu0 0
        %4349 = vmatprep.subr.bf16.mxu0 0
        %4350 = vmatpush2.bf16.msra.mxu0 0
        %4351 = vmatprep.subr.bf16.mxu0 0
        %4352 = vmatpush2.bf16.msra.mxu0 0
        %4353 = vmatprep.subr.bf16.mxu0 0
        %4354 = vmatpush2.bf16.msra.mxu0 0
        %4355 = vmatprep.subr.bf16.mxu0 0
        %4356 = vmatpush2.bf16.msra.mxu0 0
        %4357 = vmatprep.subr.bf16.mxu0 0
        %4358 = vmatpush2.bf16.msra.mxu0 0
        %4359 = vmatprep.subr.bf16.mxu0 0
        %4360 = vmatpush2.bf16.msra.mxu0 0
        %4361 = vmatprep.subr.bf16.mxu0 0
        %4362 = vmatpush2.bf16.msra.mxu0 0
        %4363 = vmatprep.mubr.bf16.mxu0 0
        %4364 = vmatmul.mubr.bf16.gmra.mxu0 %v4251
        %v4365 = vpop.f32.mrf.mxu0
        %v4366 = vadd.f32 0.0, %v4365
        %v4367 = vpop.f32.mrf.mxu0
        %v4368 = vpop.f32.mrf.mxu0
        %v4369 = vadd.f32 0.0, %v4368
        %v4370 = vpop.f32.mrf.mxu0
        %4371 = vmatprep.mubr.bf16.mxu0 0
        %4372 = vmatmul.mubr.bf16.gmra.mxu0 %v4252
        %v4373 = vpop.f32.mrf.mxu0
        %v4374 = vadd.f32 0.0, %v4373
        %v4375 = vpop.f32.mrf.mxu0
        %v4376 = vpop.f32.mrf.mxu0
        %v4377 = vadd.f32 0.0, %v4376
        %v4378 = vpop.f32.mrf.mxu0
        %4379 = vmatprep.mubr.bf16.mxu0 0
        %4380 = vmatmul.mubr.bf16.gmra.mxu0 %v4253
        %v4381 = vpop.f32.mrf.mxu0
        %v4382 = vadd.f32 0.0, %v4381
        %v4383 = vpop.f32.mrf.mxu0
        %v4384 = vpop.f32.mrf.mxu0
        %v4385 = vadd.f32 0.0, %v4384
        %v4386 = vpop.f32.mrf.mxu0
        %4387 = vmatprep.mubr.bf16.mxu0 0
        %4388 = vmatmul.mubr.bf16.gmra.mxu0 %v4254
        %v4389 = vpop.f32.mrf.mxu0
        %v4390 = vadd.f32 0.0, %v4389
        %v4391 = vpop.f32.mrf.mxu0
        %v4392 = vpop.f32.mrf.mxu0
        %v4393 = vadd.f32 0.0, %v4392
        %v4394 = vpop.f32.mrf.mxu0
        %4395 = vmatprep.mubr.bf16.mxu0 0
        %4396 = vmatmul.mubr.bf16.gmra.mxu0 %v4255
        %v4397 = vpop.f32.mrf.mxu0
        %v4398 = vadd.f32 0.0, %v4397
        %v4399 = vpop.f32.mrf.mxu0
        %v4400 = vpop.f32.mrf.mxu0
        %v4401 = vadd.f32 0.0, %v4400
        %v4402 = vpop.f32.mrf.mxu0
        %4403 = vmatprep.mubr.bf16.mxu0 0
        %4404 = vmatmul.mubr.bf16.gmra.mxu0 %v4256
        %v4405 = vpop.f32.mrf.mxu0
        %v4406 = vadd.f32 0.0, %v4405
        %v4407 = vpop.f32.mrf.mxu0
        %v4408 = vpop.f32.mrf.mxu0
        %v4409 = vadd.f32 0.0, %v4408
        %v4410 = vpop.f32.mrf.mxu0
        %4411 = vmatprep.mubr.bf16.mxu0 0
        %4412 = vmatmul.mubr.bf16.gmra.mxu0 %v4257
        %v4413 = vpop.f32.mrf.mxu0
        %v4414 = vadd.f32 0.0, %v4413
        %v4415 = vpop.f32.mrf.mxu0
        %v4416 = vpop.f32.mrf.mxu0
        %v4417 = vadd.f32 0.0, %v4416
        %v4418 = vpop.f32.mrf.mxu0
        %4419 = vmatprep.mubr.bf16.mxu0 0
        %4420 = vmatmul.mubr.bf16.gmra.mxu0 %v4258
        %v4421 = vpop.f32.mrf.mxu0
        %v4422 = vadd.f32 0.0, %v4421
        %v4423 = vpop.f32.mrf.mxu0
        %v4424 = vpop.f32.mrf.mxu0
        %v4425 = vadd.f32 0.0, %v4424
        %v4426 = vpop.f32.mrf.mxu0
        %4427 = vmatprep.mubr.bf16.mxu0 0
        %4428 = vmatmul.mubr.bf16.gmra.mxu0 %v4259
        %v4429 = vpop.f32.mrf.mxu0
        %v4430 = vadd.f32 0.0, %v4429
        %v4431 = vpop.f32.mrf.mxu0
        %v4432 = vpop.f32.mrf.mxu0
        %v4433 = vadd.f32 0.0, %v4432
        %v4434 = vpop.f32.mrf.mxu0
        %4435 = vmatprep.mubr.bf16.mxu0 0
        %4436 = vmatmul.mubr.bf16.gmra.mxu0 %v4260
        %v4437 = vpop.f32.mrf.mxu0
        %v4438 = vadd.f32 0.0, %v4437
        %v4439 = vpop.f32.mrf.mxu0
        %v4440 = vpop.f32.mrf.mxu0
        %v4441 = vadd.f32 0.0, %v4440
        %v4442 = vpop.f32.mrf.mxu0
        %4443 = vmatprep.mubr.bf16.mxu0 0
        %4444 = vmatmul.mubr.bf16.gmra.mxu0 %v4261
        %v4445 = vpop.f32.mrf.mxu0
        %v4446 = vadd.f32 0.0, %v4445
        %v4447 = vpop.f32.mrf.mxu0
        %v4448 = vpop.f32.mrf.mxu0
        %v4449 = vadd.f32 0.0, %v4448
        %v4450 = vpop.f32.mrf.mxu0
        %4451 = vmatprep.mubr.bf16.mxu0 0
        %4452 = vmatmul.mubr.bf16.gmra.mxu0 %v4262
        %v4453 = vpop.f32.mrf.mxu0
        %v4454 = vadd.f32 0.0, %v4453
        %v4455 = vpop.f32.mrf.mxu0
        %v4456 = vpop.f32.mrf.mxu0
        %v4457 = vadd.f32 0.0, %v4456
        %v4458 = vpop.f32.mrf.mxu0
        %4459 = vmatprep.mubr.bf16.mxu0 0
        %4460 = vmatmul.mubr.bf16.gmra.mxu0 %v4263
        %v4461 = vpop.f32.mrf.mxu0
        %v4462 = vadd.f32 0.0, %v4461
        %v4463 = vpop.f32.mrf.mxu0
        %v4464 = vpop.f32.mrf.mxu0
        %v4465 = vadd.f32 0.0, %v4464
        %v4466 = vpop.f32.mrf.mxu0
        %4467 = vmatprep.mubr.bf16.mxu0 0
        %4468 = vmatmul.mubr.bf16.gmra.mxu0 %v4264
        %v4469 = vpop.f32.mrf.mxu0
        %v4470 = vadd.f32 0.0, %v4469
        %v4471 = vpop.f32.mrf.mxu0
        %v4472 = vpop.f32.mrf.mxu0
        %v4473 = vadd.f32 0.0, %v4472
        %v4474 = vpop.f32.mrf.mxu0
        %4475 = vmatprep.mubr.bf16.mxu0 0
        %4476 = vmatmul.mubr.bf16.gmra.mxu0 %v4265
        %v4477 = vpop.f32.mrf.mxu0
        %v4478 = vadd.f32 0.0, %v4477
        %v4479 = vpop.f32.mrf.mxu0
        %v4480 = vpop.f32.mrf.mxu0
        %v4481 = vadd.f32 0.0, %v4480
        %v4482 = vpop.f32.mrf.mxu0
        %4483 = vmatprep.mubr.bf16.mxu0 0
        %4484 = vmatmul.mubr.bf16.gmra.mxu0 %v4266
        %v4485 = vpop.f32.mrf.mxu0
        %v4486 = vadd.f32 0.0, %v4485
        %v4487 = vpop.f32.mrf.mxu0
        %v4488 = vpop.f32.mrf.mxu0
        %v4489 = vadd.f32 0.0, %v4488
        %v4490 = vpop.f32.mrf.mxu0
        %4491 = vdwg.mxu0
        %v4492 = vadd.f32 %v4139, %v4366
        %v4493 = vadd.f32 %v4140, %v4369
        %v4494 = vadd.f32 %v4141, %v4374
        %v4495 = vadd.f32 %v4142, %v4377
        %v4496 = vadd.f32 %v4143, %v4382
        %v4497 = vadd.f32 %v4144, %v4385
        %v4498 = vadd.f32 %v4145, %v4390
        %v4499 = vadd.f32 %v4146, %v4393
        %v4500 = vadd.f32 %v4147, %v4398
        %v4501 = vadd.f32 %v4148, %v4401
        %v4502 = vadd.f32 %v4149, %v4406
        %v4503 = vadd.f32 %v4150, %v4409
        %v4504 = vadd.f32 %v4151, %v4414
        %v4505 = vadd.f32 %v4152, %v4417
        %v4506 = vadd.f32 %v4153, %v4422
        %v4507 = vadd.f32 %v4154, %v4425
        %v4508 = vadd.f32 %v4155, %v4430
        %v4509 = vadd.f32 %v4156, %v4433
        %v4510 = vadd.f32 %v4157, %v4438
        %v4511 = vadd.f32 %v4158, %v4441
        %v4512 = vadd.f32 %v4159, %v4446
        %v4513 = vadd.f32 %v4160, %v4449
        %v4514 = vadd.f32 %v4161, %v4454
        %v4515 = vadd.f32 %v4162, %v4457
        %v4516 = vadd.f32 %v4163, %v4462
        %v4517 = vadd.f32 %v4164, %v4465
        %v4518 = vadd.f32 %v4165, %v4470
        %v4519 = vadd.f32 %v4166, %v4473
        %v4520 = vadd.f32 %v4167, %v4478
        %v4521 = vadd.f32 %v4168, %v4481
        %v4522 = vadd.f32 %v4169, %v4486
        %v4523 = vadd.f32 %v4170, %v4489
        %v4524 = vld [vmem:[#allocation2 + $0x10] sm:$0xf]
        %v4525 = vld [vmem:[#allocation2 + $0x14] sm:$0xf]
        %v4526 = vld [vmem:[#allocation2 + $0x18] sm:$0xf]
        %v4527 = vld [vmem:[#allocation2 + $0x1c] sm:$0xf]
        %v4528 = vld [vmem:[#allocation2 + $0x20] sm:$0xf]
        %v4529 = vld [vmem:[#allocation2 + $0x24] sm:$0xf]
        %v4530 = vld [vmem:[#allocation2 + $0x28] sm:$0xf]
        %v4531 = vld [vmem:[#allocation2 + $0x2c] sm:$0xf]
        %v4532 = vld [vmem:[#allocation2 + $0x30] sm:$0xf]
        %v4533 = vld [vmem:[#allocation2 + $0x34] sm:$0xf]
        %v4534 = vld [vmem:[#allocation2 + $0x38] sm:$0xf]
        %v4535 = vld [vmem:[#allocation2 + $0x3c] sm:$0xf]
        %v4536 = vld [vmem:[#allocation2 + $0x40] sm:$0xf]
        %v4537 = vld [vmem:[#allocation2 + $0x44] sm:$0xf]
        %v4538 = vld [vmem:[#allocation2 + $0x48] sm:$0xf]
        %v4539 = vld [vmem:[#allocation2 + $0x4c] sm:$0xf]
        %v4540 = vld [vmem:[#allocation2 + $0x50] sm:$0xf]
        %v4541 = vld [vmem:[#allocation2 + $0x54] sm:$0xf]
        %v4542 = vld [vmem:[#allocation2 + $0x58] sm:$0xf]
        %v4543 = vld [vmem:[#allocation2 + $0x5c] sm:$0xf]
        %v4544 = vld [vmem:[#allocation2 + $0x60] sm:$0xf]
        %v4545 = vld [vmem:[#allocation2 + $0x64] sm:$0xf]
        %v4546 = vld [vmem:[#allocation2 + $0x68] sm:$0xf]
        %v4547 = vld [vmem:[#allocation2 + $0x6c] sm:$0xf]
        %v4548 = vld [vmem:[#allocation2 + $0x70] sm:$0xf]
        %v4549 = vld [vmem:[#allocation2 + $0x74] sm:$0xf]
        %v4550 = vld [vmem:[#allocation2 + $0x78] sm:$0xf]
        %v4551 = vld [vmem:[#allocation2 + $0x7c] sm:$0xf]
        %v4552 = vld [vmem:[#allocation2 + $0x80] sm:$0xf]
        %v4553 = vld [vmem:[#allocation2 + $0x84] sm:$0xf]
        %v4554 = vld [vmem:[#allocation2 + $0x88] sm:$0xf]
        %v4555 = vld [vmem:[#allocation2 + $0x8c] sm:$0xf]
        %v4556 = vld [vmem:[#allocation2 + $0x90] sm:$0x1]
        %v4557 = vsel %vm3042, %v4524, 0
        %v4558 = vsel %vm3043, %v4525, 0
        %v4559 = vsel %vm3044, %v4526, 0
        %v4560 = vsel %vm3045, %v4527, 0
        %v4561 = vsel %vm3046, %v4528, 0
        %v4562 = vsel %vm3047, %v4529, 0
        %v4563 = vsel %vm3048, %v4530, 0
        %v4564 = vsel %vm3049, %v4531, 0
        %v4565 = vsel %vm3050, %v4532, 0
        %v4566 = vsel %vm3051, %v4533, 0
        %v4567 = vsel %vm3052, %v4534, 0
        %v4568 = vsel %vm3053, %v4535, 0
        %v4569 = vsel %vm3054, %v4536, 0
        %v4570 = vsel %vm3055, %v4537, 0
        %v4571 = vsel %vm3056, %v4538, 0
        %v4572 = vsel %vm3057, %v4539, 0
        %v4573 = vsel %vm3058, %v4540, 0
        %v4574 = vsel %vm3059, %v4541, 0
        %v4575 = vsel %vm3060, %v4542, 0
        %v4576 = vsel %vm3061, %v4543, 0
        %v4577 = vsel %vm3062, %v4544, 0
        %v4578 = vsel %vm3063, %v4545, 0
        %v4579 = vsel %vm3064, %v4546, 0
        %v4580 = vsel %vm3065, %v4547, 0
        %v4581 = vsel %vm3066, %v4548, 0
        %v4582 = vsel %vm3067, %v4549, 0
        %v4583 = vsel %vm3068, %v4550, 0
        %v4584 = vsel %vm3069, %v4551, 0
        %v4585 = vsel %vm3070, %v4552, 0
        %v4586 = vsel %vm3071, %v4553, 0
        %v4587 = vsel %vm3072, %v4554, 0
        %v4588 = vsel %vm3073, %v4555, 0
        %v4589 = vsel %vm3074, %v4556, 0
        %v4590 = vld [vmem:[%s3 + $0x140] sm:$0xf]
        %v4591 = vld [vmem:[%s3 + $0x144] sm:$0xf]
        %v4592 = vld [vmem:[%s3 + $0x148] sm:$0xf]
        %v4593 = vld [vmem:[%s3 + $0x14c] sm:$0xf]
        %v4594 = vld [vmem:[%s3 + $0x150] sm:$0xf]
        %v4595 = vld [vmem:[%s3 + $0x154] sm:$0xf]
        %v4596 = vld [vmem:[%s3 + $0x158] sm:$0xf]
        %v4597 = vld [vmem:[%s3 + $0x15c] sm:$0xf]
        %v4598 = vld [vmem:[%s3 + $0x160] sm:$0xf]
        %v4599 = vld [vmem:[%s3 + $0x164] sm:$0xf]
        %v4600 = vld [vmem:[%s3 + $0x168] sm:$0xf]
        %v4601 = vld [vmem:[%s3 + $0x16c] sm:$0xf]
        %v4602 = vld [vmem:[%s3 + $0x170] sm:$0xf]
        %v4603 = vld [vmem:[%s3 + $0x174] sm:$0xf]
        %v4604 = vld [vmem:[%s3 + $0x178] sm:$0xf]
        %v4605 = vld [vmem:[%s3 + $0x17c] sm:$0xf]
        %v4639 = vunpack.c.l.b16 %v4557
        %v4640 = vunpack.c.l.b16 %v4558
        %v4641 = vunpack.c.l.b16 %v4559
        %v4642 = vunpack.c.l.b16 %v4560
        %v4643 = vunpack.c.l.b16 %v4561
        %v4644 = vunpack.c.l.b16 %v4562
        %v4645 = vunpack.c.l.b16 %v4563
        %v4646 = vunpack.c.l.b16 %v4564
        %v4647 = vunpack.c.l.b16 %v4565
        %v4648 = vunpack.c.l.b16 %v4566
        %v4649 = vunpack.c.l.b16 %v4567
        %v4650 = vunpack.c.l.b16 %v4568
        %v4651 = vunpack.c.l.b16 %v4569
        %v4652 = vunpack.c.l.b16 %v4570
        %v4653 = vunpack.c.l.b16 %v4571
        %v4654 = vunpack.c.l.b16 %v4572
        %v4655 = vunpack.c.l.b16 %v4573
        %v4656 = vunpack.c.l.b16 %v4574
        %v4657 = vunpack.c.l.b16 %v4575
        %v4658 = vunpack.c.l.b16 %v4576
        %v4659 = vunpack.c.l.b16 %v4577
        %v4660 = vunpack.c.l.b16 %v4578
        %v4661 = vunpack.c.l.b16 %v4579
        %v4662 = vunpack.c.l.b16 %v4580
        %v4663 = vunpack.c.l.b16 %v4581
        %v4664 = vunpack.c.l.b16 %v4582
        %v4665 = vunpack.c.l.b16 %v4583
        %v4666 = vunpack.c.l.b16 %v4584
        %v4667 = vunpack.c.l.b16 %v4585
        %v4668 = vunpack.c.l.b16 %v4586
        %v4669 = vunpack.c.l.b16 %v4587
        %v4670 = vunpack.c.l.b16 %v4588
        %v4671 = vunpack.c.l.b16 %v4589
        %v4672 = vpack.c.b16 %v4640, %v4639
        %v4673 = vpack.c.b16 %v4642, %v4641
        %v4674 = vpack.c.b16 %v4644, %v4643
        %v4675 = vpack.c.b16 %v4646, %v4645
        %v4676 = vpack.c.b16 %v4648, %v4647
        %v4677 = vpack.c.b16 %v4650, %v4649
        %v4678 = vpack.c.b16 %v4652, %v4651
        %v4679 = vpack.c.b16 %v4654, %v4653
        %v4680 = vpack.c.b16 %v4656, %v4655
        %v4681 = vpack.c.b16 %v4658, %v4657
        %v4682 = vpack.c.b16 %v4660, %v4659
        %v4683 = vpack.c.b16 %v4662, %v4661
        %v4684 = vpack.c.b16 %v4664, %v4663
        %v4685 = vpack.c.b16 %v4666, %v4665
        %v4686 = vpack.c.b16 %v4668, %v4667
        %v4687 = vpack.c.b16 %v4670, %v4669
        %v4688 = vpack.c.b16 %v4671, %v4671
        %v4690 = vshrl.u32 %v4672, 16
        %v4692 = vshll.u32 %v4672, 16
        %v4694 = vrot.slane %v4692, 1
        %v4695 = vor.u32 %v4690, %v4694
        %v4697 = vshll.u32 %v4673, 16
        %v4699 = vrot.slane %v4697, 1
        %v4700 = vsel %vm3207, %v4695, %v4699
        %v4701 = vshrl.u32 %v4673, 16
        %v4703 = vor.u32 %v4701, %v4699
        %v4705 = vshll.u32 %v4674, 16
        %v4707 = vrot.slane %v4705, 1
        %v4708 = vsel %vm3207, %v4703, %v4707
        %v4709 = vshrl.u32 %v4674, 16
        %v4711 = vor.u32 %v4709, %v4707
        %v4713 = vshll.u32 %v4675, 16
        %v4715 = vrot.slane %v4713, 1
        %v4716 = vsel %vm3207, %v4711, %v4715
        %v4717 = vshrl.u32 %v4675, 16
        %v4719 = vor.u32 %v4717, %v4715
        %v4721 = vshll.u32 %v4676, 16
        %v4723 = vrot.slane %v4721, 1
        %v4724 = vsel %vm3207, %v4719, %v4723
        %v4725 = vshrl.u32 %v4676, 16
        %v4727 = vor.u32 %v4725, %v4723
        %v4729 = vshll.u32 %v4677, 16
        %v4731 = vrot.slane %v4729, 1
        %v4732 = vsel %vm3207, %v4727, %v4731
        %v4733 = vshrl.u32 %v4677, 16
        %v4735 = vor.u32 %v4733, %v4731
        %v4737 = vshll.u32 %v4678, 16
        %v4739 = vrot.slane %v4737, 1
        %v4740 = vsel %vm3207, %v4735, %v4739
        %v4741 = vshrl.u32 %v4678, 16
        %v4743 = vor.u32 %v4741, %v4739
        %v4745 = vshll.u32 %v4679, 16
        %v4747 = vrot.slane %v4745, 1
        %v4748 = vsel %vm3207, %v4743, %v4747
        %v4749 = vshrl.u32 %v4679, 16
        %v4751 = vor.u32 %v4749, %v4747
        %v4753 = vshll.u32 %v4680, 16
        %v4755 = vrot.slane %v4753, 1
        %v4756 = vsel %vm3207, %v4751, %v4755
        %v4757 = vshrl.u32 %v4680, 16
        %v4759 = vor.u32 %v4757, %v4755
        %v4761 = vshll.u32 %v4681, 16
        %v4763 = vrot.slane %v4761, 1
        %v4764 = vsel %vm3207, %v4759, %v4763
        %v4765 = vshrl.u32 %v4681, 16
        %v4767 = vor.u32 %v4765, %v4763
        %v4769 = vshll.u32 %v4682, 16
        %v4771 = vrot.slane %v4769, 1
        %v4772 = vsel %vm3207, %v4767, %v4771
        %v4773 = vshrl.u32 %v4682, 16
        %v4775 = vor.u32 %v4773, %v4771
        %v4777 = vshll.u32 %v4683, 16
        %v4779 = vrot.slane %v4777, 1
        %v4780 = vsel %vm3207, %v4775, %v4779
        %v4781 = vshrl.u32 %v4683, 16
        %v4783 = vor.u32 %v4781, %v4779
        %v4785 = vshll.u32 %v4684, 16
        %v4787 = vrot.slane %v4785, 1
        %v4788 = vsel %vm3207, %v4783, %v4787
        %v4789 = vshrl.u32 %v4684, 16
        %v4791 = vor.u32 %v4789, %v4787
        %v4793 = vshll.u32 %v4685, 16
        %v4795 = vrot.slane %v4793, 1
        %v4796 = vsel %vm3207, %v4791, %v4795
        %v4797 = vshrl.u32 %v4685, 16
        %v4799 = vor.u32 %v4797, %v4795
        %v4801 = vshll.u32 %v4686, 16
        %v4803 = vrot.slane %v4801, 1
        %v4804 = vsel %vm3207, %v4799, %v4803
        %v4805 = vshrl.u32 %v4686, 16
        %v4807 = vor.u32 %v4805, %v4803
        %v4809 = vshll.u32 %v4687, 16
        %v4811 = vrot.slane %v4809, 1
        %v4812 = vsel %vm3207, %v4807, %v4811
        %v4813 = vshrl.u32 %v4687, 16
        %v4815 = vor.u32 %v4813, %v4811
        %v4817 = vshll.u32 %v4688, 16
        %v4819 = vrot.slane %v4817, 1
        %v4820 = vsel %vm3207, %v4815, %v4819
        %v4853 = vunpack.c.l.b16 %v4590
        %v4854 = vunpack.c.l.b16 %v4591
        %v4855 = vunpack.c.l.b16 %v4592
        %v4856 = vunpack.c.l.b16 %v4593
        %v4857 = vunpack.c.l.b16 %v4594
        %v4858 = vunpack.c.l.b16 %v4595
        %v4859 = vunpack.c.l.b16 %v4596
        %v4860 = vunpack.c.l.b16 %v4597
        %v4861 = vunpack.c.l.b16 %v4598
        %v4862 = vunpack.c.l.b16 %v4599
        %v4863 = vunpack.c.l.b16 %v4600
        %v4864 = vunpack.c.l.b16 %v4601
        %v4865 = vunpack.c.l.b16 %v4602
        %v4866 = vunpack.c.l.b16 %v4603
        %v4867 = vunpack.c.l.b16 %v4604
        %v4868 = vunpack.c.l.b16 %v4605
        %v4869 = vpack.c.b16 %v4854, %v4853
        %v4870 = vpack.c.b16 %v4856, %v4855
        %v4871 = vpack.c.b16 %v4858, %v4857
        %v4872 = vpack.c.b16 %v4860, %v4859
        %v4873 = vpack.c.b16 %v4862, %v4861
        %v4874 = vpack.c.b16 %v4864, %v4863
        %v4875 = vpack.c.b16 %v4866, %v4865
        %v4876 = vpack.c.b16 %v4868, %v4867
        %4885 = vmatprep.subr.bf16.mxu0 0
        %4886 = vmatpush1.bf16.msra.mxu0 %v4876
        %4887 = vmatprep.subr.bf16.mxu0 0
        %4888 = vmatpush1.bf16.msra.mxu0 %v4875
        %4889 = vmatprep.subr.bf16.mxu0 0
        %4890 = vmatpush1.bf16.msra.mxu0 %v4874
        %4891 = vmatprep.subr.bf16.mxu0 0
        %4892 = vmatpush1.bf16.msra.mxu0 %v4873
        %4893 = vmatprep.subr.bf16.mxu0 0
        %4894 = vmatpush1.bf16.msra.mxu0 %v4872
        %4895 = vmatprep.subr.bf16.mxu0 0
        %4896 = vmatpush1.bf16.msra.mxu0 %v4871
        %4897 = vmatprep.subr.bf16.mxu0 0
        %4898 = vmatpush1.bf16.msra.mxu0 %v4870
        %4899 = vmatprep.subr.bf16.mxu0 0
        %4900 = vmatpush1.bf16.msra.mxu0 %v4869
        %4901 = vmatprep.subr.bf16.mxu0 0
        %4902 = vmatpush2.bf16.msra.mxu0 0
        %4903 = vmatprep.subr.bf16.mxu0 0
        %4904 = vmatpush2.bf16.msra.mxu0 0
        %4905 = vmatprep.subr.bf16.mxu0 0
        %4906 = vmatpush2.bf16.msra.mxu0 0
        %4907 = vmatprep.subr.bf16.mxu0 0
        %4908 = vmatpush2.bf16.msra.mxu0 0
        %4909 = vmatprep.subr.bf16.mxu0 0
        %4910 = vmatpush2.bf16.msra.mxu0 0
        %4911 = vmatprep.subr.bf16.mxu0 0
        %4912 = vmatpush2.bf16.msra.mxu0 0
        %4913 = vmatprep.subr.bf16.mxu0 0
        %4914 = vmatpush2.bf16.msra.mxu0 0
        %4915 = vmatprep.subr.bf16.mxu0 0
        %4916 = vmatpush2.bf16.msra.mxu0 0
        %4917 = vmatprep.mubr.bf16.mxu0 0
        %4918 = vmatmul.mubr.bf16.gmra.mxu0 %v4700
        %v4919 = vpop.f32.mrf.mxu0
        %v4920 = vadd.f32 0.0, %v4919
        %v4921 = vpop.f32.mrf.mxu0
        %v4922 = vpop.f32.mrf.mxu0
        %v4923 = vadd.f32 0.0, %v4922
        %v4924 = vpop.f32.mrf.mxu0
        %4925 = vmatprep.mubr.bf16.mxu0 0
        %4926 = vmatmul.mubr.bf16.gmra.mxu0 %v4708
        %v4927 = vpop.f32.mrf.mxu0
        %v4928 = vadd.f32 0.0, %v4927
        %v4929 = vpop.f32.mrf.mxu0
        %v4930 = vpop.f32.mrf.mxu0
        %v4931 = vadd.f32 0.0, %v4930
        %v4932 = vpop.f32.mrf.mxu0
        %4933 = vmatprep.mubr.bf16.mxu0 0
        %4934 = vmatmul.mubr.bf16.gmra.mxu0 %v4716
        %v4935 = vpop.f32.mrf.mxu0
        %v4936 = vadd.f32 0.0, %v4935
        %v4937 = vpop.f32.mrf.mxu0
        %v4938 = vpop.f32.mrf.mxu0
        %v4939 = vadd.f32 0.0, %v4938
        %v4940 = vpop.f32.mrf.mxu0
        %4941 = vmatprep.mubr.bf16.mxu0 0
        %4942 = vmatmul.mubr.bf16.gmra.mxu0 %v4724
        %v4943 = vpop.f32.mrf.mxu0
        %v4944 = vadd.f32 0.0, %v4943
        %v4945 = vpop.f32.mrf.mxu0
        %v4946 = vpop.f32.mrf.mxu0
        %v4947 = vadd.f32 0.0, %v4946
        %v4948 = vpop.f32.mrf.mxu0
        %4949 = vmatprep.mubr.bf16.mxu0 0
        %4950 = vmatmul.mubr.bf16.gmra.mxu0 %v4732
        %v4951 = vpop.f32.mrf.mxu0
        %v4952 = vadd.f32 0.0, %v4951
        %v4953 = vpop.f32.mrf.mxu0
        %v4954 = vpop.f32.mrf.mxu0
        %v4955 = vadd.f32 0.0, %v4954
        %v4956 = vpop.f32.mrf.mxu0
        %4957 = vmatprep.mubr.bf16.mxu0 0
        %4958 = vmatmul.mubr.bf16.gmra.mxu0 %v4740
        %v4959 = vpop.f32.mrf.mxu0
        %v4960 = vadd.f32 0.0, %v4959
        %v4961 = vpop.f32.mrf.mxu0
        %v4962 = vpop.f32.mrf.mxu0
        %v4963 = vadd.f32 0.0, %v4962
        %v4964 = vpop.f32.mrf.mxu0
        %4965 = vmatprep.mubr.bf16.mxu0 0
        %4966 = vmatmul.mubr.bf16.gmra.mxu0 %v4748
        %v4967 = vpop.f32.mrf.mxu0
        %v4968 = vadd.f32 0.0, %v4967
        %v4969 = vpop.f32.mrf.mxu0
        %v4970 = vpop.f32.mrf.mxu0
        %v4971 = vadd.f32 0.0, %v4970
        %v4972 = vpop.f32.mrf.mxu0
        %4973 = vmatprep.mubr.bf16.mxu0 0
        %4974 = vmatmul.mubr.bf16.gmra.mxu0 %v4756
        %v4975 = vpop.f32.mrf.mxu0
        %v4976 = vadd.f32 0.0, %v4975
        %v4977 = vpop.f32.mrf.mxu0
        %v4978 = vpop.f32.mrf.mxu0
        %v4979 = vadd.f32 0.0, %v4978
        %v4980 = vpop.f32.mrf.mxu0
        %4981 = vmatprep.mubr.bf16.mxu0 0
        %4982 = vmatmul.mubr.bf16.gmra.mxu0 %v4764
        %v4983 = vpop.f32.mrf.mxu0
        %v4984 = vadd.f32 0.0, %v4983
        %v4985 = vpop.f32.mrf.mxu0
        %v4986 = vpop.f32.mrf.mxu0
        %v4987 = vadd.f32 0.0, %v4986
        %v4988 = vpop.f32.mrf.mxu0
        %4989 = vmatprep.mubr.bf16.mxu0 0
        %4990 = vmatmul.mubr.bf16.gmra.mxu0 %v4772
        %v4991 = vpop.f32.mrf.mxu0
        %v4992 = vadd.f32 0.0, %v4991
        %v4993 = vpop.f32.mrf.mxu0
        %v4994 = vpop.f32.mrf.mxu0
        %v4995 = vadd.f32 0.0, %v4994
        %v4996 = vpop.f32.mrf.mxu0
        %4997 = vmatprep.mubr.bf16.mxu0 0
        %4998 = vmatmul.mubr.bf16.gmra.mxu0 %v4780
        %v4999 = vpop.f32.mrf.mxu0
        %v5000 = vadd.f32 0.0, %v4999
        %v5001 = vpop.f32.mrf.mxu0
        %v5002 = vpop.f32.mrf.mxu0
        %v5003 = vadd.f32 0.0, %v5002
        %v5004 = vpop.f32.mrf.mxu0
        %5005 = vmatprep.mubr.bf16.mxu0 0
        %5006 = vmatmul.mubr.bf16.gmra.mxu0 %v4788
        %v5007 = vpop.f32.mrf.mxu0
        %v5008 = vadd.f32 0.0, %v5007
        %v5009 = vpop.f32.mrf.mxu0
        %v5010 = vpop.f32.mrf.mxu0
        %v5011 = vadd.f32 0.0, %v5010
        %v5012 = vpop.f32.mrf.mxu0
        %5013 = vmatprep.mubr.bf16.mxu0 0
        %5014 = vmatmul.mubr.bf16.gmra.mxu0 %v4796
        %v5015 = vpop.f32.mrf.mxu0
        %v5016 = vadd.f32 0.0, %v5015
        %v5017 = vpop.f32.mrf.mxu0
        %v5018 = vpop.f32.mrf.mxu0
        %v5019 = vadd.f32 0.0, %v5018
        %v5020 = vpop.f32.mrf.mxu0
        %5021 = vmatprep.mubr.bf16.mxu0 0
        %5022 = vmatmul.mubr.bf16.gmra.mxu0 %v4804
        %v5023 = vpop.f32.mrf.mxu0
        %v5024 = vadd.f32 0.0, %v5023
        %v5025 = vpop.f32.mrf.mxu0
        %v5026 = vpop.f32.mrf.mxu0
        %v5027 = vadd.f32 0.0, %v5026
        %v5028 = vpop.f32.mrf.mxu0
        %5029 = vmatprep.mubr.bf16.mxu0 0
        %5030 = vmatmul.mubr.bf16.gmra.mxu0 %v4812
        %v5031 = vpop.f32.mrf.mxu0
        %v5032 = vadd.f32 0.0, %v5031
        %v5033 = vpop.f32.mrf.mxu0
        %v5034 = vpop.f32.mrf.mxu0
        %v5035 = vadd.f32 0.0, %v5034
        %v5036 = vpop.f32.mrf.mxu0
        %5037 = vmatprep.mubr.bf16.mxu0 0
        %5038 = vmatmul.mubr.bf16.gmra.mxu0 %v4820
        %v5039 = vpop.f32.mrf.mxu0
        %v5040 = vadd.f32 0.0, %v5039
        %v5041 = vpop.f32.mrf.mxu0
        %v5042 = vpop.f32.mrf.mxu0
        %v5043 = vadd.f32 0.0, %v5042
        %v5044 = vpop.f32.mrf.mxu0
        %5045 = vdwg.mxu0
        %v5046 = vadd.f32 %v4492, %v4920
        %v5047 = vadd.f32 %v4493, %v4923
        %v5048 = vadd.f32 %v4494, %v4928
        %v5049 = vadd.f32 %v4495, %v4931
        %v5050 = vadd.f32 %v4496, %v4936
        %v5051 = vadd.f32 %v4497, %v4939
        %v5052 = vadd.f32 %v4498, %v4944
        %v5053 = vadd.f32 %v4499, %v4947
        %v5054 = vadd.f32 %v4500, %v4952
        %v5055 = vadd.f32 %v4501, %v4955
        %v5056 = vadd.f32 %v4502, %v4960
        %v5057 = vadd.f32 %v4503, %v4963
        %v5058 = vadd.f32 %v4504, %v4968
        %v5059 = vadd.f32 %v4505, %v4971
        %v5060 = vadd.f32 %v4506, %v4976
        %v5061 = vadd.f32 %v4507, %v4979
        %v5062 = vadd.f32 %v4508, %v4984
        %v5063 = vadd.f32 %v4509, %v4987
        %v5064 = vadd.f32 %v4510, %v4992
        %v5065 = vadd.f32 %v4511, %v4995
        %v5066 = vadd.f32 %v4512, %v5000
        %v5067 = vadd.f32 %v4513, %v5003
        %v5068 = vadd.f32 %v4514, %v5008
        %v5069 = vadd.f32 %v4515, %v5011
        %v5070 = vadd.f32 %v4516, %v5016
        %v5071 = vadd.f32 %v4517, %v5019
        %v5072 = vadd.f32 %v4518, %v5024
        %v5073 = vadd.f32 %v4519, %v5027
        %v5074 = vadd.f32 %v4520, %v5032
        %v5075 = vadd.f32 %v4521, %v5035
        %v5076 = vadd.f32 %v4522, %v5040
        %v5077 = vadd.f32 %v4523, %v5043
        %v5078 = vld [vmem:[#allocation2 + $0x14] sm:$0x8]
        %v5079 = vld [vmem:[#allocation2 + $0x18] sm:$0xf]
        %v5080 = vld [vmem:[#allocation2 + $0x1c] sm:$0xf]
        %v5081 = vld [vmem:[#allocation2 + $0x20] sm:$0xf]
        %v5082 = vld [vmem:[#allocation2 + $0x24] sm:$0xf]
        %v5083 = vld [vmem:[#allocation2 + $0x28] sm:$0xf]
        %v5084 = vld [vmem:[#allocation2 + $0x2c] sm:$0xf]
        %v5085 = vld [vmem:[#allocation2 + $0x30] sm:$0xf]
        %v5086 = vld [vmem:[#allocation2 + $0x34] sm:$0xf]
        %v5087 = vld [vmem:[#allocation2 + $0x38] sm:$0xf]
        %v5088 = vld [vmem:[#allocation2 + $0x3c] sm:$0xf]
        %v5089 = vld [vmem:[#allocation2 + $0x40] sm:$0xf]
        %v5090 = vld [vmem:[#allocation2 + $0x44] sm:$0xf]
        %v5091 = vld [vmem:[#allocation2 + $0x48] sm:$0xf]
        %v5092 = vld [vmem:[#allocation2 + $0x4c] sm:$0xf]
        %v5093 = vld [vmem:[#allocation2 + $0x50] sm:$0xf]
        %v5094 = vld [vmem:[#allocation2 + $0x54] sm:$0xf]
        %v5095 = vld [vmem:[#allocation2 + $0x58] sm:$0xf]
        %v5096 = vld [vmem:[#allocation2 + $0x5c] sm:$0xf]
        %v5097 = vld [vmem:[#allocation2 + $0x60] sm:$0xf]
        %v5098 = vld [vmem:[#allocation2 + $0x64] sm:$0xf]
        %v5099 = vld [vmem:[#allocation2 + $0x68] sm:$0xf]
        %v5100 = vld [vmem:[#allocation2 + $0x6c] sm:$0xf]
        %v5101 = vld [vmem:[#allocation2 + $0x70] sm:$0xf]
        %v5102 = vld [vmem:[#allocation2 + $0x74] sm:$0xf]
        %v5103 = vld [vmem:[#allocation2 + $0x78] sm:$0xf]
        %v5104 = vld [vmem:[#allocation2 + $0x7c] sm:$0xf]
        %v5105 = vld [vmem:[#allocation2 + $0x80] sm:$0xf]
        %v5106 = vld [vmem:[#allocation2 + $0x84] sm:$0xf]
        %v5107 = vld [vmem:[#allocation2 + $0x88] sm:$0xf]
        %v5108 = vld [vmem:[#allocation2 + $0x8c] sm:$0xf]
        %v5109 = vld [vmem:[#allocation2 + $0x90] sm:$0xf]
        %v5110 = vld [vmem:[#allocation2 + $0x94] sm:$0xf]
        %v5111 = vsel %vm1728, %v5078, 0
        %v5112 = vsel %vm1729, %v5079, 0
        %v5113 = vsel %vm1730, %v5080, 0
        %v5114 = vsel %vm1731, %v5081, 0
        %v5115 = vsel %vm1732, %v5082, 0
        %v5116 = vsel %vm1733, %v5083, 0
        %v5117 = vsel %vm1734, %v5084, 0
        %v5118 = vsel %vm1735, %v5085, 0
        %v5119 = vsel %vm1736, %v5086, 0
        %v5120 = vsel %vm1737, %v5087, 0
        %v5121 = vsel %vm1738, %v5088, 0
        %v5122 = vsel %vm1739, %v5089, 0
        %v5123 = vsel %vm1740, %v5090, 0
        %v5124 = vsel %vm1741, %v5091, 0
        %v5125 = vsel %vm1742, %v5092, 0
        %v5126 = vsel %vm1743, %v5093, 0
        %v5127 = vsel %vm1744, %v5094, 0
        %v5128 = vsel %vm1745, %v5095, 0
        %v5129 = vsel %vm1746, %v5096, 0
        %v5130 = vsel %vm1747, %v5097, 0
        %v5131 = vsel %vm1748, %v5098, 0
        %v5132 = vsel %vm1749, %v5099, 0
        %v5133 = vsel %vm1750, %v5100, 0
        %v5134 = vsel %vm1751, %v5101, 0
        %v5135 = vsel %vm1752, %v5102, 0
        %v5136 = vsel %vm1753, %v5103, 0
        %v5137 = vsel %vm1754, %v5104, 0
        %v5138 = vsel %vm1755, %v5105, 0
        %v5139 = vsel %vm1756, %v5106, 0
        %v5140 = vsel %vm1757, %v5107, 0
        %v5141 = vsel %vm1758, %v5108, 0
        %v5142 = vsel %vm1759, %v5109, 0
        %v5143 = vsel %vm1760, %v5110, 0
        %v5144 = vld [vmem:[%s3 + $0x180] sm:$0xf]
        %v5145 = vld [vmem:[%s3 + $0x184] sm:$0xf]
        %v5146 = vld [vmem:[%s3 + $0x188] sm:$0xf]
        %v5147 = vld [vmem:[%s3 + $0x18c] sm:$0xf]
        %v5148 = vld [vmem:[%s3 + $0x190] sm:$0xf]
        %v5149 = vld [vmem:[%s3 + $0x194] sm:$0xf]
        %v5150 = vld [vmem:[%s3 + $0x198] sm:$0xf]
        %v5151 = vld [vmem:[%s3 + $0x19c] sm:$0xf]
        %v5152 = vld [vmem:[%s3 + $0x1a0] sm:$0xf]
        %v5153 = vld [vmem:[%s3 + $0x1a4] sm:$0xf]
        %v5154 = vld [vmem:[%s3 + $0x1a8] sm:$0xf]
        %v5155 = vld [vmem:[%s3 + $0x1ac] sm:$0xf]
        %v5156 = vld [vmem:[%s3 + $0x1b0] sm:$0xf]
        %v5157 = vld [vmem:[%s3 + $0x1b4] sm:$0xf]
        %v5158 = vld [vmem:[%s3 + $0x1b8] sm:$0xf]
        %v5159 = vld [vmem:[%s3 + $0x1bc] sm:$0xf]
        %v5193 = vunpack.c.l.b16 %v5111
        %v5194 = vunpack.c.l.b16 %v5112
        %v5195 = vunpack.c.l.b16 %v5113
        %v5196 = vunpack.c.l.b16 %v5114
        %v5197 = vunpack.c.l.b16 %v5115
        %v5198 = vunpack.c.l.b16 %v5116
        %v5199 = vunpack.c.l.b16 %v5117
        %v5200 = vunpack.c.l.b16 %v5118
        %v5201 = vunpack.c.l.b16 %v5119
        %v5202 = vunpack.c.l.b16 %v5120
        %v5203 = vunpack.c.l.b16 %v5121
        %v5204 = vunpack.c.l.b16 %v5122
        %v5205 = vunpack.c.l.b16 %v5123
        %v5206 = vunpack.c.l.b16 %v5124
        %v5207 = vunpack.c.l.b16 %v5125
        %v5208 = vunpack.c.l.b16 %v5126
        %v5209 = vunpack.c.l.b16 %v5127
        %v5210 = vunpack.c.l.b16 %v5128
        %v5211 = vunpack.c.l.b16 %v5129
        %v5212 = vunpack.c.l.b16 %v5130
        %v5213 = vunpack.c.l.b16 %v5131
        %v5214 = vunpack.c.l.b16 %v5132
        %v5215 = vunpack.c.l.b16 %v5133
        %v5216 = vunpack.c.l.b16 %v5134
        %v5217 = vunpack.c.l.b16 %v5135
        %v5218 = vunpack.c.l.b16 %v5136
        %v5219 = vunpack.c.l.b16 %v5137
        %v5220 = vunpack.c.l.b16 %v5138
        %v5221 = vunpack.c.l.b16 %v5139
        %v5222 = vunpack.c.l.b16 %v5140
        %v5223 = vunpack.c.l.b16 %v5141
        %v5224 = vunpack.c.l.b16 %v5142
        %v5225 = vunpack.c.l.b16 %v5143
        %v5226 = vpack.c.b16 %v5194, %v5193
        %v5227 = vpack.c.b16 %v5196, %v5195
        %v5228 = vpack.c.b16 %v5198, %v5197
        %v5229 = vpack.c.b16 %v5200, %v5199
        %v5230 = vpack.c.b16 %v5202, %v5201
        %v5231 = vpack.c.b16 %v5204, %v5203
        %v5232 = vpack.c.b16 %v5206, %v5205
        %v5233 = vpack.c.b16 %v5208, %v5207
        %v5234 = vpack.c.b16 %v5210, %v5209
        %v5235 = vpack.c.b16 %v5212, %v5211
        %v5236 = vpack.c.b16 %v5214, %v5213
        %v5237 = vpack.c.b16 %v5216, %v5215
        %v5238 = vpack.c.b16 %v5218, %v5217
        %v5239 = vpack.c.b16 %v5220, %v5219
        %v5240 = vpack.c.b16 %v5222, %v5221
        %v5241 = vpack.c.b16 %v5224, %v5223
        %v5242 = vpack.c.b16 %v5225, %v5225
        %v5244 = vshrl.u32 %v5226, 16
        %v5246 = vrot.slane %v5244, 3
        %v5247 = vshll.u32 %v5226, 16
        %v5249 = vrot.slane %v5247, 4
        %v5250 = vor.u32 %v5246, %v5249
        %v5252 = vshrl.u32 %v5227, 16
        %v5254 = vrot.slane %v5252, 3
        %v5255 = vshll.u32 %v5227, 16
        %v5257 = vrot.slane %v5255, 4
        %v5258 = vor.u32 %v5254, %v5257
        %v5259 = vsel %vm2214, %v5250, %v5258
        %v5261 = vshrl.u32 %v5228, 16
        %v5263 = vrot.slane %v5261, 3
        %v5264 = vshll.u32 %v5228, 16
        %v5266 = vrot.slane %v5264, 4
        %v5267 = vor.u32 %v5263, %v5266
        %v5268 = vsel %vm2214, %v5258, %v5267
        %v5270 = vshrl.u32 %v5229, 16
        %v5272 = vrot.slane %v5270, 3
        %v5273 = vshll.u32 %v5229, 16
        %v5275 = vrot.slane %v5273, 4
        %v5276 = vor.u32 %v5272, %v5275
        %v5277 = vsel %vm2214, %v5267, %v5276
        %v5279 = vshrl.u32 %v5230, 16
        %v5281 = vrot.slane %v5279, 3
        %v5282 = vshll.u32 %v5230, 16
        %v5284 = vrot.slane %v5282, 4
        %v5285 = vor.u32 %v5281, %v5284
        %v5286 = vsel %vm2214, %v5276, %v5285
        %v5288 = vshrl.u32 %v5231, 16
        %v5290 = vrot.slane %v5288, 3
        %v5291 = vshll.u32 %v5231, 16
        %v5293 = vrot.slane %v5291, 4
        %v5294 = vor.u32 %v5290, %v5293
        %v5295 = vsel %vm2214, %v5285, %v5294
        %v5297 = vshrl.u32 %v5232, 16
        %v5299 = vrot.slane %v5297, 3
        %v5300 = vshll.u32 %v5232, 16
        %v5302 = vrot.slane %v5300, 4
        %v5303 = vor.u32 %v5299, %v5302
        %v5304 = vsel %vm2214, %v5294, %v5303
        %v5306 = vshrl.u32 %v5233, 16
        %v5308 = vrot.slane %v5306, 3
        %v5309 = vshll.u32 %v5233, 16
        %v5311 = vrot.slane %v5309, 4
        %v5312 = vor.u32 %v5308, %v5311
        %v5313 = vsel %vm2214, %v5303, %v5312
        %v5315 = vshrl.u32 %v5234, 16
        %v5317 = vrot.slane %v5315, 3
        %v5318 = vshll.u32 %v5234, 16
        %v5320 = vrot.slane %v5318, 4
        %v5321 = vor.u32 %v5317, %v5320
        %v5322 = vsel %vm2214, %v5312, %v5321
        %v5324 = vshrl.u32 %v5235, 16
        %v5326 = vrot.slane %v5324, 3
        %v5327 = vshll.u32 %v5235, 16
        %v5329 = vrot.slane %v5327, 4
        %v5330 = vor.u32 %v5326, %v5329
        %v5331 = vsel %vm2214, %v5321, %v5330
        %v5333 = vshrl.u32 %v5236, 16
        %v5335 = vrot.slane %v5333, 3
        %v5336 = vshll.u32 %v5236, 16
        %v5338 = vrot.slane %v5336, 4
        %v5339 = vor.u32 %v5335, %v5338
        %v5340 = vsel %vm2214, %v5330, %v5339
        %v5342 = vshrl.u32 %v5237, 16
        %v5344 = vrot.slane %v5342, 3
        %v5345 = vshll.u32 %v5237, 16
        %v5347 = vrot.slane %v5345, 4
        %v5348 = vor.u32 %v5344, %v5347
        %v5349 = vsel %vm2214, %v5339, %v5348
        %v5351 = vshrl.u32 %v5238, 16
        %v5353 = vrot.slane %v5351, 3
        %v5354 = vshll.u32 %v5238, 16
        %v5356 = vrot.slane %v5354, 4
        %v5357 = vor.u32 %v5353, %v5356
        %v5358 = vsel %vm2214, %v5348, %v5357
        %v5360 = vshrl.u32 %v5239, 16
        %v5362 = vrot.slane %v5360, 3
        %v5363 = vshll.u32 %v5239, 16
        %v5365 = vrot.slane %v5363, 4
        %v5366 = vor.u32 %v5362, %v5365
        %v5367 = vsel %vm2214, %v5357, %v5366
        %v5369 = vshrl.u32 %v5240, 16
        %v5371 = vrot.slane %v5369, 3
        %v5372 = vshll.u32 %v5240, 16
        %v5374 = vrot.slane %v5372, 4
        %v5375 = vor.u32 %v5371, %v5374
        %v5376 = vsel %vm2214, %v5366, %v5375
        %v5378 = vshrl.u32 %v5241, 16
        %v5380 = vrot.slane %v5378, 3
        %v5381 = vshll.u32 %v5241, 16
        %v5383 = vrot.slane %v5381, 4
        %v5384 = vor.u32 %v5380, %v5383
        %v5385 = vsel %vm2214, %v5375, %v5384
        %v5387 = vshrl.u32 %v5242, 16
        %v5389 = vrot.slane %v5387, 3
        %v5390 = vshll.u32 %v5242, 16
        %v5392 = vrot.slane %v5390, 4
        %v5393 = vor.u32 %v5389, %v5392
        %v5394 = vsel %vm2214, %v5384, %v5393
        %v5427 = vunpack.c.l.b16 %v5144
        %v5428 = vunpack.c.l.b16 %v5145
        %v5429 = vunpack.c.l.b16 %v5146
        %v5430 = vunpack.c.l.b16 %v5147
        %v5431 = vunpack.c.l.b16 %v5148
        %v5432 = vunpack.c.l.b16 %v5149
        %v5433 = vunpack.c.l.b16 %v5150
        %v5434 = vunpack.c.l.b16 %v5151
        %v5435 = vunpack.c.l.b16 %v5152
        %v5436 = vunpack.c.l.b16 %v5153
        %v5437 = vunpack.c.l.b16 %v5154
        %v5438 = vunpack.c.l.b16 %v5155
        %v5439 = vunpack.c.l.b16 %v5156
        %v5440 = vunpack.c.l.b16 %v5157
        %v5441 = vunpack.c.l.b16 %v5158
        %v5442 = vunpack.c.l.b16 %v5159
        %v5443 = vpack.c.b16 %v5428, %v5427
        %v5444 = vpack.c.b16 %v5430, %v5429
        %v5445 = vpack.c.b16 %v5432, %v5431
        %v5446 = vpack.c.b16 %v5434, %v5433
        %v5447 = vpack.c.b16 %v5436, %v5435
        %v5448 = vpack.c.b16 %v5438, %v5437
        %v5449 = vpack.c.b16 %v5440, %v5439
        %v5450 = vpack.c.b16 %v5442, %v5441
        %5459 = vmatprep.subr.bf16.mxu0 0
        %5460 = vmatpush1.bf16.msra.mxu0 %v5450
        %5461 = vmatprep.subr.bf16.mxu0 0
        %5462 = vmatpush1.bf16.msra.mxu0 %v5449
        %5463 = vmatprep.subr.bf16.mxu0 0
        %5464 = vmatpush1.bf16.msra.mxu0 %v5448
        %5465 = vmatprep.subr.bf16.mxu0 0
        %5466 = vmatpush1.bf16.msra.mxu0 %v5447
        %5467 = vmatprep.subr.bf16.mxu0 0
        %5468 = vmatpush1.bf16.msra.mxu0 %v5446
        %5469 = vmatprep.subr.bf16.mxu0 0
        %5470 = vmatpush1.bf16.msra.mxu0 %v5445
        %5471 = vmatprep.subr.bf16.mxu0 0
        %5472 = vmatpush1.bf16.msra.mxu0 %v5444
        %5473 = vmatprep.subr.bf16.mxu0 0
        %5474 = vmatpush1.bf16.msra.mxu0 %v5443
        %5475 = vmatprep.subr.bf16.mxu0 0
        %5476 = vmatpush2.bf16.msra.mxu0 0
        %5477 = vmatprep.subr.bf16.mxu0 0
        %5478 = vmatpush2.bf16.msra.mxu0 0
        %5479 = vmatprep.subr.bf16.mxu0 0
        %5480 = vmatpush2.bf16.msra.mxu0 0
        %5481 = vmatprep.subr.bf16.mxu0 0
        %5482 = vmatpush2.bf16.msra.mxu0 0
        %5483 = vmatprep.subr.bf16.mxu0 0
        %5484 = vmatpush2.bf16.msra.mxu0 0
        %5485 = vmatprep.subr.bf16.mxu0 0
        %5486 = vmatpush2.bf16.msra.mxu0 0
        %5487 = vmatprep.subr.bf16.mxu0 0
        %5488 = vmatpush2.bf16.msra.mxu0 0
        %5489 = vmatprep.subr.bf16.mxu0 0
        %5490 = vmatpush2.bf16.msra.mxu0 0
        %5491 = vmatprep.mubr.bf16.mxu0 0
        %5492 = vmatmul.mubr.bf16.gmra.mxu0 %v5259
        %v5493 = vpop.f32.mrf.mxu0
        %v5494 = vadd.f32 0.0, %v5493
        %v5495 = vpop.f32.mrf.mxu0
        %v5496 = vpop.f32.mrf.mxu0
        %v5497 = vadd.f32 0.0, %v5496
        %v5498 = vpop.f32.mrf.mxu0
        %5499 = vmatprep.mubr.bf16.mxu0 0
        %5500 = vmatmul.mubr.bf16.gmra.mxu0 %v5268
        %v5501 = vpop.f32.mrf.mxu0
        %v5502 = vadd.f32 0.0, %v5501
        %v5503 = vpop.f32.mrf.mxu0
        %v5504 = vpop.f32.mrf.mxu0
        %v5505 = vadd.f32 0.0, %v5504
        %v5506 = vpop.f32.mrf.mxu0
        %5507 = vmatprep.mubr.bf16.mxu0 0
        %5508 = vmatmul.mubr.bf16.gmra.mxu0 %v5277
        %v5509 = vpop.f32.mrf.mxu0
        %v5510 = vadd.f32 0.0, %v5509
        %v5511 = vpop.f32.mrf.mxu0
        %v5512 = vpop.f32.mrf.mxu0
        %v5513 = vadd.f32 0.0, %v5512
        %v5514 = vpop.f32.mrf.mxu0
        %5515 = vmatprep.mubr.bf16.mxu0 0
        %5516 = vmatmul.mubr.bf16.gmra.mxu0 %v5286
        %v5517 = vpop.f32.mrf.mxu0
        %v5518 = vadd.f32 0.0, %v5517
        %v5519 = vpop.f32.mrf.mxu0
        %v5520 = vpop.f32.mrf.mxu0
        %v5521 = vadd.f32 0.0, %v5520
        %v5522 = vpop.f32.mrf.mxu0
        %5523 = vmatprep.mubr.bf16.mxu0 0
        %5524 = vmatmul.mubr.bf16.gmra.mxu0 %v5295
        %v5525 = vpop.f32.mrf.mxu0
        %v5526 = vadd.f32 0.0, %v5525
        %v5527 = vpop.f32.mrf.mxu0
        %v5528 = vpop.f32.mrf.mxu0
        %v5529 = vadd.f32 0.0, %v5528
        %v5530 = vpop.f32.mrf.mxu0
        %5531 = vmatprep.mubr.bf16.mxu0 0
        %5532 = vmatmul.mubr.bf16.gmra.mxu0 %v5304
        %v5533 = vpop.f32.mrf.mxu0
        %v5534 = vadd.f32 0.0, %v5533
        %v5535 = vpop.f32.mrf.mxu0
        %v5536 = vpop.f32.mrf.mxu0
        %v5537 = vadd.f32 0.0, %v5536
        %v5538 = vpop.f32.mrf.mxu0
        %5539 = vmatprep.mubr.bf16.mxu0 0
        %5540 = vmatmul.mubr.bf16.gmra.mxu0 %v5313
        %v5541 = vpop.f32.mrf.mxu0
        %v5542 = vadd.f32 0.0, %v5541
        %v5543 = vpop.f32.mrf.mxu0
        %v5544 = vpop.f32.mrf.mxu0
        %v5545 = vadd.f32 0.0, %v5544
        %v5546 = vpop.f32.mrf.mxu0
        %5547 = vmatprep.mubr.bf16.mxu0 0
        %5548 = vmatmul.mubr.bf16.gmra.mxu0 %v5322
        %v5549 = vpop.f32.mrf.mxu0
        %v5550 = vadd.f32 0.0, %v5549
        %v5551 = vpop.f32.mrf.mxu0
        %v5552 = vpop.f32.mrf.mxu0
        %v5553 = vadd.f32 0.0, %v5552
        %v5554 = vpop.f32.mrf.mxu0
        %5555 = vmatprep.mubr.bf16.mxu0 0
        %5556 = vmatmul.mubr.bf16.gmra.mxu0 %v5331
        %v5557 = vpop.f32.mrf.mxu0
        %v5558 = vadd.f32 0.0, %v5557
        %v5559 = vpop.f32.mrf.mxu0
        %v5560 = vpop.f32.mrf.mxu0
        %v5561 = vadd.f32 0.0, %v5560
        %v5562 = vpop.f32.mrf.mxu0
        %5563 = vmatprep.mubr.bf16.mxu0 0
        %5564 = vmatmul.mubr.bf16.gmra.mxu0 %v5340
        %v5565 = vpop.f32.mrf.mxu0
        %v5566 = vadd.f32 0.0, %v5565
        %v5567 = vpop.f32.mrf.mxu0
        %v5568 = vpop.f32.mrf.mxu0
        %v5569 = vadd.f32 0.0, %v5568
        %v5570 = vpop.f32.mrf.mxu0
        %5571 = vmatprep.mubr.bf16.mxu0 0
        %5572 = vmatmul.mubr.bf16.gmra.mxu0 %v5349
        %v5573 = vpop.f32.mrf.mxu0
        %v5574 = vadd.f32 0.0, %v5573
        %v5575 = vpop.f32.mrf.mxu0
        %v5576 = vpop.f32.mrf.mxu0
        %v5577 = vadd.f32 0.0, %v5576
        %v5578 = vpop.f32.mrf.mxu0
        %5579 = vmatprep.mubr.bf16.mxu0 0
        %5580 = vmatmul.mubr.bf16.gmra.mxu0 %v5358
        %v5581 = vpop.f32.mrf.mxu0
        %v5582 = vadd.f32 0.0, %v5581
        %v5583 = vpop.f32.mrf.mxu0
        %v5584 = vpop.f32.mrf.mxu0
        %v5585 = vadd.f32 0.0, %v5584
        %v5586 = vpop.f32.mrf.mxu0
        %5587 = vmatprep.mubr.bf16.mxu0 0
        %5588 = vmatmul.mubr.bf16.gmra.mxu0 %v5367
        %v5589 = vpop.f32.mrf.mxu0
        %v5590 = vadd.f32 0.0, %v5589
        %v5591 = vpop.f32.mrf.mxu0
        %v5592 = vpop.f32.mrf.mxu0
        %v5593 = vadd.f32 0.0, %v5592
        %v5594 = vpop.f32.mrf.mxu0
        %5595 = vmatprep.mubr.bf16.mxu0 0
        %5596 = vmatmul.mubr.bf16.gmra.mxu0 %v5376
        %v5597 = vpop.f32.mrf.mxu0
        %v5598 = vadd.f32 0.0, %v5597
        %v5599 = vpop.f32.mrf.mxu0
        %v5600 = vpop.f32.mrf.mxu0
        %v5601 = vadd.f32 0.0, %v5600
        %v5602 = vpop.f32.mrf.mxu0
        %5603 = vmatprep.mubr.bf16.mxu0 0
        %5604 = vmatmul.mubr.bf16.gmra.mxu0 %v5385
        %v5605 = vpop.f32.mrf.mxu0
        %v5606 = vadd.f32 0.0, %v5605
        %v5607 = vpop.f32.mrf.mxu0
        %v5608 = vpop.f32.mrf.mxu0
        %v5609 = vadd.f32 0.0, %v5608
        %v5610 = vpop.f32.mrf.mxu0
        %5611 = vmatprep.mubr.bf16.mxu0 0
        %5612 = vmatmul.mubr.bf16.gmra.mxu0 %v5394
        %v5613 = vpop.f32.mrf.mxu0
        %v5614 = vadd.f32 0.0, %v5613
        %v5615 = vpop.f32.mrf.mxu0
        %v5616 = vpop.f32.mrf.mxu0
        %v5617 = vadd.f32 0.0, %v5616
        %v5618 = vpop.f32.mrf.mxu0
        %5619 = vdwg.mxu0
        %v5620 = vadd.f32 %v5046, %v5494
        %v5621 = vadd.f32 %v5047, %v5497
        %v5622 = vadd.f32 %v5048, %v5502
        %v5623 = vadd.f32 %v5049, %v5505
        %v5624 = vadd.f32 %v5050, %v5510
        %v5625 = vadd.f32 %v5051, %v5513
        %v5626 = vadd.f32 %v5052, %v5518
        %v5627 = vadd.f32 %v5053, %v5521
        %v5628 = vadd.f32 %v5054, %v5526
        %v5629 = vadd.f32 %v5055, %v5529
        %v5630 = vadd.f32 %v5056, %v5534
        %v5631 = vadd.f32 %v5057, %v5537
        %v5632 = vadd.f32 %v5058, %v5542
        %v5633 = vadd.f32 %v5059, %v5545
        %v5634 = vadd.f32 %v5060, %v5550
        %v5635 = vadd.f32 %v5061, %v5553
        %v5636 = vadd.f32 %v5062, %v5558
        %v5637 = vadd.f32 %v5063, %v5561
        %v5638 = vadd.f32 %v5064, %v5566
        %v5639 = vadd.f32 %v5065, %v5569
        %v5640 = vadd.f32 %v5066, %v5574
        %v5641 = vadd.f32 %v5067, %v5577
        %v5642 = vadd.f32 %v5068, %v5582
        %v5643 = vadd.f32 %v5069, %v5585
        %v5644 = vadd.f32 %v5070, %v5590
        %v5645 = vadd.f32 %v5071, %v5593
        %v5646 = vadd.f32 %v5072, %v5598
        %v5647 = vadd.f32 %v5073, %v5601
        %v5648 = vadd.f32 %v5074, %v5606
        %v5649 = vadd.f32 %v5075, %v5609
        %v5650 = vadd.f32 %v5076, %v5614
        %v5651 = vadd.f32 %v5077, %v5617
        %v5652 = vld [vmem:[%s3 + $0x1c0] sm:$0xf]
        %v5653 = vld [vmem:[%s3 + $0x1c4] sm:$0xf]
        %v5654 = vld [vmem:[%s3 + $0x1c8] sm:$0xf]
        %v5655 = vld [vmem:[%s3 + $0x1cc] sm:$0xf]
        %v5656 = vld [vmem:[%s3 + $0x1d0] sm:$0xf]
        %v5657 = vld [vmem:[%s3 + $0x1d4] sm:$0xf]
        %v5658 = vld [vmem:[%s3 + $0x1d8] sm:$0xf]
        %v5659 = vld [vmem:[%s3 + $0x1dc] sm:$0xf]
        %v5660 = vld [vmem:[%s3 + $0x1e0] sm:$0xf]
        %v5661 = vld [vmem:[%s3 + $0x1e4] sm:$0xf]
        %v5662 = vld [vmem:[%s3 + $0x1e8] sm:$0xf]
        %v5663 = vld [vmem:[%s3 + $0x1ec] sm:$0xf]
        %v5664 = vld [vmem:[%s3 + $0x1f0] sm:$0xf]
        %v5665 = vld [vmem:[%s3 + $0x1f4] sm:$0xf]
        %v5666 = vld [vmem:[%s3 + $0x1f8] sm:$0xf]
        %v5667 = vld [vmem:[%s3 + $0x1fc] sm:$0xf]
        %v5700 = vunpack.c.l.b16 %v5079
        %v5701 = vunpack.c.l.b16 %v5080
        %v5702 = vunpack.c.l.b16 %v5081
        %v5703 = vunpack.c.l.b16 %v5082
        %v5704 = vunpack.c.l.b16 %v5083
        %v5705 = vunpack.c.l.b16 %v5084
        %v5706 = vunpack.c.l.b16 %v5085
        %v5707 = vunpack.c.l.b16 %v5086
        %v5708 = vunpack.c.l.b16 %v5087
        %v5709 = vunpack.c.l.b16 %v5088
        %v5710 = vunpack.c.l.b16 %v5089
        %v5711 = vunpack.c.l.b16 %v5090
        %v5712 = vunpack.c.l.b16 %v5091
        %v5713 = vunpack.c.l.b16 %v5092
        %v5714 = vunpack.c.l.b16 %v5093
        %v5715 = vunpack.c.l.b16 %v5094
        %v5716 = vunpack.c.l.b16 %v5095
        %v5717 = vunpack.c.l.b16 %v5096
        %v5718 = vunpack.c.l.b16 %v5097
        %v5719 = vunpack.c.l.b16 %v5098
        %v5720 = vunpack.c.l.b16 %v5099
        %v5721 = vunpack.c.l.b16 %v5100
        %v5722 = vunpack.c.l.b16 %v5101
        %v5723 = vunpack.c.l.b16 %v5102
        %v5724 = vunpack.c.l.b16 %v5103
        %v5725 = vunpack.c.l.b16 %v5104
        %v5726 = vunpack.c.l.b16 %v5105
        %v5727 = vunpack.c.l.b16 %v5106
        %v5728 = vunpack.c.l.b16 %v5107
        %v5729 = vunpack.c.l.b16 %v5108
        %v5730 = vunpack.c.l.b16 %v5109
        %v5731 = vunpack.c.l.b16 %v5110
        %v5732 = vpack.c.b16 %v5701, %v5700
        %v5733 = vpack.c.b16 %v5703, %v5702
        %v5734 = vpack.c.b16 %v5705, %v5704
        %v5735 = vpack.c.b16 %v5707, %v5706
        %v5736 = vpack.c.b16 %v5709, %v5708
        %v5737 = vpack.c.b16 %v5711, %v5710
        %v5738 = vpack.c.b16 %v5713, %v5712
        %v5739 = vpack.c.b16 %v5715, %v5714
        %v5740 = vpack.c.b16 %v5717, %v5716
        %v5741 = vpack.c.b16 %v5719, %v5718
        %v5742 = vpack.c.b16 %v5721, %v5720
        %v5743 = vpack.c.b16 %v5723, %v5722
        %v5744 = vpack.c.b16 %v5725, %v5724
        %v5745 = vpack.c.b16 %v5727, %v5726
        %v5746 = vpack.c.b16 %v5729, %v5728
        %v5747 = vpack.c.b16 %v5731, %v5730
        %v5780 = vunpack.c.l.b16 %v5652
        %v5781 = vunpack.c.l.b16 %v5653
        %v5782 = vunpack.c.l.b16 %v5654
        %v5783 = vunpack.c.l.b16 %v5655
        %v5784 = vunpack.c.l.b16 %v5656
        %v5785 = vunpack.c.l.b16 %v5657
        %v5786 = vunpack.c.l.b16 %v5658
        %v5787 = vunpack.c.l.b16 %v5659
        %v5788 = vunpack.c.l.b16 %v5660
        %v5789 = vunpack.c.l.b16 %v5661
        %v5790 = vunpack.c.l.b16 %v5662
        %v5791 = vunpack.c.l.b16 %v5663
        %v5792 = vunpack.c.l.b16 %v5664
        %v5793 = vunpack.c.l.b16 %v5665
        %v5794 = vunpack.c.l.b16 %v5666
        %v5795 = vunpack.c.l.b16 %v5667
        %v5796 = vpack.c.b16 %v5781, %v5780
        %v5797 = vpack.c.b16 %v5783, %v5782
        %v5798 = vpack.c.b16 %v5785, %v5784
        %v5799 = vpack.c.b16 %v5787, %v5786
        %v5800 = vpack.c.b16 %v5789, %v5788
        %v5801 = vpack.c.b16 %v5791, %v5790
        %v5802 = vpack.c.b16 %v5793, %v5792
        %v5803 = vpack.c.b16 %v5795, %v5794
        %5812 = vmatprep.subr.bf16.mxu0 0
        %5813 = vmatpush1.bf16.msra.mxu0 %v5803
        %5814 = vmatprep.subr.bf16.mxu0 0
        %5815 = vmatpush1.bf16.msra.mxu0 %v5802
        %5816 = vmatprep.subr.bf16.mxu0 0
        %5817 = vmatpush1.bf16.msra.mxu0 %v5801
        %5818 = vmatprep.subr.bf16.mxu0 0
        %5819 = vmatpush1.bf16.msra.mxu0 %v5800
        %5820 = vmatprep.subr.bf16.mxu0 0
        %5821 = vmatpush1.bf16.msra.mxu0 %v5799
        %5822 = vmatprep.subr.bf16.mxu0 0
        %5823 = vmatpush1.bf16.msra.mxu0 %v5798
        %5824 = vmatprep.subr.bf16.mxu0 0
        %5825 = vmatpush1.bf16.msra.mxu0 %v5797
        %5826 = vmatprep.subr.bf16.mxu0 0
        %5827 = vmatpush1.bf16.msra.mxu0 %v5796
        %5828 = vmatprep.subr.bf16.mxu0 0
        %5829 = vmatpush2.bf16.msra.mxu0 0
        %5830 = vmatprep.subr.bf16.mxu0 0
        %5831 = vmatpush2.bf16.msra.mxu0 0
        %5832 = vmatprep.subr.bf16.mxu0 0
        %5833 = vmatpush2.bf16.msra.mxu0 0
        %5834 = vmatprep.subr.bf16.mxu0 0
        %5835 = vmatpush2.bf16.msra.mxu0 0
        %5836 = vmatprep.subr.bf16.mxu0 0
        %5837 = vmatpush2.bf16.msra.mxu0 0
        %5838 = vmatprep.subr.bf16.mxu0 0
        %5839 = vmatpush2.bf16.msra.mxu0 0
        %5840 = vmatprep.subr.bf16.mxu0 0
        %5841 = vmatpush2.bf16.msra.mxu0 0
        %5842 = vmatprep.subr.bf16.mxu0 0
        %5843 = vmatpush2.bf16.msra.mxu0 0
        %5844 = vmatprep.mubr.bf16.mxu0 0
        %5845 = vmatmul.mubr.bf16.gmra.mxu0 %v5732
        %v5846 = vpop.f32.mrf.mxu0
        %v5847 = vadd.f32 0.0, %v5846
        %v5848 = vpop.f32.mrf.mxu0
        %v5849 = vpop.f32.mrf.mxu0
        %v5850 = vadd.f32 0.0, %v5849
        %v5851 = vpop.f32.mrf.mxu0
        %5852 = vmatprep.mubr.bf16.mxu0 0
        %5853 = vmatmul.mubr.bf16.gmra.mxu0 %v5733
        %v5854 = vpop.f32.mrf.mxu0
        %v5855 = vadd.f32 0.0, %v5854
        %v5856 = vpop.f32.mrf.mxu0
        %v5857 = vpop.f32.mrf.mxu0
        %v5858 = vadd.f32 0.0, %v5857
        %v5859 = vpop.f32.mrf.mxu0
        %5860 = vmatprep.mubr.bf16.mxu0 0
        %5861 = vmatmul.mubr.bf16.gmra.mxu0 %v5734
        %v5862 = vpop.f32.mrf.mxu0
        %v5863 = vadd.f32 0.0, %v5862
        %v5864 = vpop.f32.mrf.mxu0
        %v5865 = vpop.f32.mrf.mxu0
        %v5866 = vadd.f32 0.0, %v5865
        %v5867 = vpop.f32.mrf.mxu0
        %5868 = vmatprep.mubr.bf16.mxu0 0
        %5869 = vmatmul.mubr.bf16.gmra.mxu0 %v5735
        %v5870 = vpop.f32.mrf.mxu0
        %v5871 = vadd.f32 0.0, %v5870
        %v5872 = vpop.f32.mrf.mxu0
        %v5873 = vpop.f32.mrf.mxu0
        %v5874 = vadd.f32 0.0, %v5873
        %v5875 = vpop.f32.mrf.mxu0
        %5876 = vmatprep.mubr.bf16.mxu0 0
        %5877 = vmatmul.mubr.bf16.gmra.mxu0 %v5736
        %v5878 = vpop.f32.mrf.mxu0
        %v5879 = vadd.f32 0.0, %v5878
        %v5880 = vpop.f32.mrf.mxu0
        %v5881 = vpop.f32.mrf.mxu0
        %v5882 = vadd.f32 0.0, %v5881
        %v5883 = vpop.f32.mrf.mxu0
        %5884 = vmatprep.mubr.bf16.mxu0 0
        %5885 = vmatmul.mubr.bf16.gmra.mxu0 %v5737
        %v5886 = vpop.f32.mrf.mxu0
        %v5887 = vadd.f32 0.0, %v5886
        %v5888 = vpop.f32.mrf.mxu0
        %v5889 = vpop.f32.mrf.mxu0
        %v5890 = vadd.f32 0.0, %v5889
        %v5891 = vpop.f32.mrf.mxu0
        %5892 = vmatprep.mubr.bf16.mxu0 0
        %5893 = vmatmul.mubr.bf16.gmra.mxu0 %v5738
        %v5894 = vpop.f32.mrf.mxu0
        %v5895 = vadd.f32 0.0, %v5894
        %v5896 = vpop.f32.mrf.mxu0
        %v5897 = vpop.f32.mrf.mxu0
        %v5898 = vadd.f32 0.0, %v5897
        %v5899 = vpop.f32.mrf.mxu0
        %5900 = vmatprep.mubr.bf16.mxu0 0
        %5901 = vmatmul.mubr.bf16.gmra.mxu0 %v5739
        %v5902 = vpop.f32.mrf.mxu0
        %v5903 = vadd.f32 0.0, %v5902
        %v5904 = vpop.f32.mrf.mxu0
        %v5905 = vpop.f32.mrf.mxu0
        %v5906 = vadd.f32 0.0, %v5905
        %v5907 = vpop.f32.mrf.mxu0
        %5908 = vmatprep.mubr.bf16.mxu0 0
        %5909 = vmatmul.mubr.bf16.gmra.mxu0 %v5740
        %v5910 = vpop.f32.mrf.mxu0
        %v5911 = vadd.f32 0.0, %v5910
        %v5912 = vpop.f32.mrf.mxu0
        %v5913 = vpop.f32.mrf.mxu0
        %v5914 = vadd.f32 0.0, %v5913
        %v5915 = vpop.f32.mrf.mxu0
        %5916 = vmatprep.mubr.bf16.mxu0 0
        %5917 = vmatmul.mubr.bf16.gmra.mxu0 %v5741
        %v5918 = vpop.f32.mrf.mxu0
        %v5919 = vadd.f32 0.0, %v5918
        %v5920 = vpop.f32.mrf.mxu0
        %v5921 = vpop.f32.mrf.mxu0
        %v5922 = vadd.f32 0.0, %v5921
        %v5923 = vpop.f32.mrf.mxu0
        %5924 = vmatprep.mubr.bf16.mxu0 0
        %5925 = vmatmul.mubr.bf16.gmra.mxu0 %v5742
        %v5926 = vpop.f32.mrf.mxu0
        %v5927 = vadd.f32 0.0, %v5926
        %v5928 = vpop.f32.mrf.mxu0
        %v5929 = vpop.f32.mrf.mxu0
        %v5930 = vadd.f32 0.0, %v5929
        %v5931 = vpop.f32.mrf.mxu0
        %5932 = vmatprep.mubr.bf16.mxu0 0
        %5933 = vmatmul.mubr.bf16.gmra.mxu0 %v5743
        %v5934 = vpop.f32.mrf.mxu0
        %v5935 = vadd.f32 0.0, %v5934
        %v5936 = vpop.f32.mrf.mxu0
        %v5937 = vpop.f32.mrf.mxu0
        %v5938 = vadd.f32 0.0, %v5937
        %v5939 = vpop.f32.mrf.mxu0
        %5940 = vmatprep.mubr.bf16.mxu0 0
        %5941 = vmatmul.mubr.bf16.gmra.mxu0 %v5744
        %v5942 = vpop.f32.mrf.mxu0
        %v5943 = vadd.f32 0.0, %v5942
        %v5944 = vpop.f32.mrf.mxu0
        %v5945 = vpop.f32.mrf.mxu0
        %v5946 = vadd.f32 0.0, %v5945
        %v5947 = vpop.f32.mrf.mxu0
        %5948 = vmatprep.mubr.bf16.mxu0 0
        %5949 = vmatmul.mubr.bf16.gmra.mxu0 %v5745
        %v5950 = vpop.f32.mrf.mxu0
        %v5951 = vadd.f32 0.0, %v5950
        %v5952 = vpop.f32.mrf.mxu0
        %v5953 = vpop.f32.mrf.mxu0
        %v5954 = vadd.f32 0.0, %v5953
        %v5955 = vpop.f32.mrf.mxu0
        %5956 = vmatprep.mubr.bf16.mxu0 0
        %5957 = vmatmul.mubr.bf16.gmra.mxu0 %v5746
        %v5958 = vpop.f32.mrf.mxu0
        %v5959 = vadd.f32 0.0, %v5958
        %v5960 = vpop.f32.mrf.mxu0
        %v5961 = vpop.f32.mrf.mxu0
        %v5962 = vadd.f32 0.0, %v5961
        %v5963 = vpop.f32.mrf.mxu0
        %5964 = vmatprep.mubr.bf16.mxu0 0
        %5965 = vmatmul.mubr.bf16.gmra.mxu0 %v5747
        %v5966 = vpop.f32.mrf.mxu0
        %v5967 = vadd.f32 0.0, %v5966
        %v5968 = vpop.f32.mrf.mxu0
        %v5969 = vpop.f32.mrf.mxu0
        %v5970 = vadd.f32 0.0, %v5969
        %v5971 = vpop.f32.mrf.mxu0
        %5972 = vdwg.mxu0
        %v5973 = vadd.f32 %v5620, %v5847
        %v5974 = vadd.f32 %v5621, %v5850
        %v5975 = vadd.f32 %v5622, %v5855
        %v5976 = vadd.f32 %v5623, %v5858
        %v5977 = vadd.f32 %v5624, %v5863
        %v5978 = vadd.f32 %v5625, %v5866
        %v5979 = vadd.f32 %v5626, %v5871
        %v5980 = vadd.f32 %v5627, %v5874
        %v5981 = vadd.f32 %v5628, %v5879
        %v5982 = vadd.f32 %v5629, %v5882
        %v5983 = vadd.f32 %v5630, %v5887
        %v5984 = vadd.f32 %v5631, %v5890
        %v5985 = vadd.f32 %v5632, %v5895
        %v5986 = vadd.f32 %v5633, %v5898
        %v5987 = vadd.f32 %v5634, %v5903
        %v5988 = vadd.f32 %v5635, %v5906
        %v5989 = vadd.f32 %v5636, %v5911
        %v5990 = vadd.f32 %v5637, %v5914
        %v5991 = vadd.f32 %v5638, %v5919
        %v5992 = vadd.f32 %v5639, %v5922
        %v5993 = vadd.f32 %v5640, %v5927
        %v5994 = vadd.f32 %v5641, %v5930
        %v5995 = vadd.f32 %v5642, %v5935
        %v5996 = vadd.f32 %v5643, %v5938
        %v5997 = vadd.f32 %v5644, %v5943
        %v5998 = vadd.f32 %v5645, %v5946
        %v5999 = vadd.f32 %v5646, %v5951
        %v6000 = vadd.f32 %v5647, %v5954
        %v6001 = vadd.f32 %v5648, %v5959
        %v6002 = vadd.f32 %v5649, %v5962
        %v6003 = vadd.f32 %v5650, %v5967
        %v6004 = vadd.f32 %v5651, %v5970
        %v6005 = vld [vmem:[#allocation2 + $0x18] sm:$0xf]
        %v6006 = vld [vmem:[#allocation2 + $0x1c] sm:$0xf]
        %v6007 = vld [vmem:[#allocation2 + $0x20] sm:$0xf]
        %v6008 = vld [vmem:[#allocation2 + $0x24] sm:$0xf]
        %v6009 = vld [vmem:[#allocation2 + $0x28] sm:$0xf]
        %v6010 = vld [vmem:[#allocation2 + $0x2c] sm:$0xf]
        %v6011 = vld [vmem:[#allocation2 + $0x30] sm:$0xf]
        %v6012 = vld [vmem:[#allocation2 + $0x34] sm:$0xf]
        %v6013 = vld [vmem:[#allocation2 + $0x38] sm:$0xf]
        %v6014 = vld [vmem:[#allocation2 + $0x3c] sm:$0xf]
        %v6015 = vld [vmem:[#allocation2 + $0x40] sm:$0xf]
        %v6016 = vld [vmem:[#allocation2 + $0x44] sm:$0xf]
        %v6017 = vld [vmem:[#allocation2 + $0x48] sm:$0xf]
        %v6018 = vld [vmem:[#allocation2 + $0x4c] sm:$0xf]
        %v6019 = vld [vmem:[#allocation2 + $0x50] sm:$0xf]
        %v6020 = vld [vmem:[#allocation2 + $0x54] sm:$0xf]
        %v6021 = vld [vmem:[#allocation2 + $0x58] sm:$0xf]
        %v6022 = vld [vmem:[#allocation2 + $0x5c] sm:$0xf]
        %v6023 = vld [vmem:[#allocation2 + $0x60] sm:$0xf]
        %v6024 = vld [vmem:[#allocation2 + $0x64] sm:$0xf]
        %v6025 = vld [vmem:[#allocation2 + $0x68] sm:$0xf]
        %v6026 = vld [vmem:[#allocation2 + $0x6c] sm:$0xf]
        %v6027 = vld [vmem:[#allocation2 + $0x70] sm:$0xf]
        %v6028 = vld [vmem:[#allocation2 + $0x74] sm:$0xf]
        %v6029 = vld [vmem:[#allocation2 + $0x78] sm:$0xf]
        %v6030 = vld [vmem:[#allocation2 + $0x7c] sm:$0xf]
        %v6031 = vld [vmem:[#allocation2 + $0x80] sm:$0xf]
        %v6032 = vld [vmem:[#allocation2 + $0x84] sm:$0xf]
        %v6033 = vld [vmem:[#allocation2 + $0x88] sm:$0xf]
        %v6034 = vld [vmem:[#allocation2 + $0x8c] sm:$0xf]
        %v6035 = vld [vmem:[#allocation2 + $0x90] sm:$0xf]
        %v6036 = vld [vmem:[#allocation2 + $0x94] sm:$0xf]
        %v6037 = vld [vmem:[#allocation2 + $0x98] sm:$0x1]
        %v6038 = vsel %vm3042, %v6005, 0
        %v6039 = vsel %vm3043, %v6006, 0
        %v6040 = vsel %vm3044, %v6007, 0
        %v6041 = vsel %vm3045, %v6008, 0
        %v6042 = vsel %vm3046, %v6009, 0
        %v6043 = vsel %vm3047, %v6010, 0
        %v6044 = vsel %vm3048, %v6011, 0
        %v6045 = vsel %vm3049, %v6012, 0
        %v6046 = vsel %vm3050, %v6013, 0
        %v6047 = vsel %vm3051, %v6014, 0
        %v6048 = vsel %vm3052, %v6015, 0
        %v6049 = vsel %vm3053, %v6016, 0
        %v6050 = vsel %vm3054, %v6017, 0
        %v6051 = vsel %vm3055, %v6018, 0
        %v6052 = vsel %vm3056, %v6019, 0
        %v6053 = vsel %vm3057, %v6020, 0
        %v6054 = vsel %vm3058, %v6021, 0
        %v6055 = vsel %vm3059, %v6022, 0
        %v6056 = vsel %vm3060, %v6023, 0
        %v6057 = vsel %vm3061, %v6024, 0
        %v6058 = vsel %vm3062, %v6025, 0
        %v6059 = vsel %vm3063, %v6026, 0
        %v6060 = vsel %vm3064, %v6027, 0
        %v6061 = vsel %vm3065, %v6028, 0
        %v6062 = vsel %vm3066, %v6029, 0
        %v6063 = vsel %vm3067, %v6030, 0
        %v6064 = vsel %vm3068, %v6031, 0
        %v6065 = vsel %vm3069, %v6032, 0
        %v6066 = vsel %vm3070, %v6033, 0
        %v6067 = vsel %vm3071, %v6034, 0
        %v6068 = vsel %vm3072, %v6035, 0
        %v6069 = vsel %vm3073, %v6036, 0
        %v6070 = vsel %vm3074, %v6037, 0
        %v6071 = vld [vmem:[%s3 + $0x200] sm:$0xf]
        %v6072 = vld [vmem:[%s3 + $0x204] sm:$0xf]
        %v6073 = vld [vmem:[%s3 + $0x208] sm:$0xf]
        %v6074 = vld [vmem:[%s3 + $0x20c] sm:$0xf]
        %v6075 = vld [vmem:[%s3 + $0x210] sm:$0xf]
        %v6076 = vld [vmem:[%s3 + $0x214] sm:$0xf]
        %v6077 = vld [vmem:[%s3 + $0x218] sm:$0xf]
        %v6078 = vld [vmem:[%s3 + $0x21c] sm:$0xf]
        %v6079 = vld [vmem:[%s3 + $0x220] sm:$0xf]
        %v6080 = vld [vmem:[%s3 + $0x224] sm:$0xf]
        %v6081 = vld [vmem:[%s3 + $0x228] sm:$0xf]
        %v6082 = vld [vmem:[%s3 + $0x22c] sm:$0xf]
        %v6083 = vld [vmem:[%s3 + $0x230] sm:$0xf]
        %v6084 = vld [vmem:[%s3 + $0x234] sm:$0xf]
        %v6085 = vld [vmem:[%s3 + $0x238] sm:$0xf]
        %v6086 = vld [vmem:[%s3 + $0x23c] sm:$0xf]
        %v6120 = vunpack.c.l.b16 %v6038
        %v6121 = vunpack.c.l.b16 %v6039
        %v6122 = vunpack.c.l.b16 %v6040
        %v6123 = vunpack.c.l.b16 %v6041
        %v6124 = vunpack.c.l.b16 %v6042
        %v6125 = vunpack.c.l.b16 %v6043
        %v6126 = vunpack.c.l.b16 %v6044
        %v6127 = vunpack.c.l.b16 %v6045
        %v6128 = vunpack.c.l.b16 %v6046
        %v6129 = vunpack.c.l.b16 %v6047
        %v6130 = vunpack.c.l.b16 %v6048
        %v6131 = vunpack.c.l.b16 %v6049
        %v6132 = vunpack.c.l.b16 %v6050
        %v6133 = vunpack.c.l.b16 %v6051
        %v6134 = vunpack.c.l.b16 %v6052
        %v6135 = vunpack.c.l.b16 %v6053
        %v6136 = vunpack.c.l.b16 %v6054
        %v6137 = vunpack.c.l.b16 %v6055
        %v6138 = vunpack.c.l.b16 %v6056
        %v6139 = vunpack.c.l.b16 %v6057
        %v6140 = vunpack.c.l.b16 %v6058
        %v6141 = vunpack.c.l.b16 %v6059
        %v6142 = vunpack.c.l.b16 %v6060
        %v6143 = vunpack.c.l.b16 %v6061
        %v6144 = vunpack.c.l.b16 %v6062
        %v6145 = vunpack.c.l.b16 %v6063
        %v6146 = vunpack.c.l.b16 %v6064
        %v6147 = vunpack.c.l.b16 %v6065
        %v6148 = vunpack.c.l.b16 %v6066
        %v6149 = vunpack.c.l.b16 %v6067
        %v6150 = vunpack.c.l.b16 %v6068
        %v6151 = vunpack.c.l.b16 %v6069
        %v6152 = vunpack.c.l.b16 %v6070
        %v6153 = vpack.c.b16 %v6121, %v6120
        %v6154 = vpack.c.b16 %v6123, %v6122
        %v6155 = vpack.c.b16 %v6125, %v6124
        %v6156 = vpack.c.b16 %v6127, %v6126
        %v6157 = vpack.c.b16 %v6129, %v6128
        %v6158 = vpack.c.b16 %v6131, %v6130
        %v6159 = vpack.c.b16 %v6133, %v6132
        %v6160 = vpack.c.b16 %v6135, %v6134
        %v6161 = vpack.c.b16 %v6137, %v6136
        %v6162 = vpack.c.b16 %v6139, %v6138
        %v6163 = vpack.c.b16 %v6141, %v6140
        %v6164 = vpack.c.b16 %v6143, %v6142
        %v6165 = vpack.c.b16 %v6145, %v6144
        %v6166 = vpack.c.b16 %v6147, %v6146
        %v6167 = vpack.c.b16 %v6149, %v6148
        %v6168 = vpack.c.b16 %v6151, %v6150
        %v6169 = vpack.c.b16 %v6152, %v6152
        %v6171 = vshrl.u32 %v6153, 16
        %v6173 = vshll.u32 %v6153, 16
        %v6175 = vrot.slane %v6173, 1
        %v6176 = vor.u32 %v6171, %v6175
        %v6178 = vshll.u32 %v6154, 16
        %v6180 = vrot.slane %v6178, 1
        %v6181 = vsel %vm3207, %v6176, %v6180
        %v6182 = vshrl.u32 %v6154, 16
        %v6184 = vor.u32 %v6182, %v6180
        %v6186 = vshll.u32 %v6155, 16
        %v6188 = vrot.slane %v6186, 1
        %v6189 = vsel %vm3207, %v6184, %v6188
        %v6190 = vshrl.u32 %v6155, 16
        %v6192 = vor.u32 %v6190, %v6188
        %v6194 = vshll.u32 %v6156, 16
        %v6196 = vrot.slane %v6194, 1
        %v6197 = vsel %vm3207, %v6192, %v6196
        %v6198 = vshrl.u32 %v6156, 16
        %v6200 = vor.u32 %v6198, %v6196
        %v6202 = vshll.u32 %v6157, 16
        %v6204 = vrot.slane %v6202, 1
        %v6205 = vsel %vm3207, %v6200, %v6204
        %v6206 = vshrl.u32 %v6157, 16
        %v6208 = vor.u32 %v6206, %v6204
        %v6210 = vshll.u32 %v6158, 16
        %v6212 = vrot.slane %v6210, 1
        %v6213 = vsel %vm3207, %v6208, %v6212
        %v6214 = vshrl.u32 %v6158, 16
        %v6216 = vor.u32 %v6214, %v6212
        %v6218 = vshll.u32 %v6159, 16
        %v6220 = vrot.slane %v6218, 1
        %v6221 = vsel %vm3207, %v6216, %v6220
        %v6222 = vshrl.u32 %v6159, 16
        %v6224 = vor.u32 %v6222, %v6220
        %v6226 = vshll.u32 %v6160, 16
        %v6228 = vrot.slane %v6226, 1
        %v6229 = vsel %vm3207, %v6224, %v6228
        %v6230 = vshrl.u32 %v6160, 16
        %v6232 = vor.u32 %v6230, %v6228
        %v6234 = vshll.u32 %v6161, 16
        %v6236 = vrot.slane %v6234, 1
        %v6237 = vsel %vm3207, %v6232, %v6236
        %v6238 = vshrl.u32 %v6161, 16
        %v6240 = vor.u32 %v6238, %v6236
        %v6242 = vshll.u32 %v6162, 16
        %v6244 = vrot.slane %v6242, 1
        %v6245 = vsel %vm3207, %v6240, %v6244
        %v6246 = vshrl.u32 %v6162, 16
        %v6248 = vor.u32 %v6246, %v6244
        %v6250 = vshll.u32 %v6163, 16
        %v6252 = vrot.slane %v6250, 1
        %v6253 = vsel %vm3207, %v6248, %v6252
        %v6254 = vshrl.u32 %v6163, 16
        %v6256 = vor.u32 %v6254, %v6252
        %v6258 = vshll.u32 %v6164, 16
        %v6260 = vrot.slane %v6258, 1
        %v6261 = vsel %vm3207, %v6256, %v6260
        %v6262 = vshrl.u32 %v6164, 16
        %v6264 = vor.u32 %v6262, %v6260
        %v6266 = vshll.u32 %v6165, 16
        %v6268 = vrot.slane %v6266, 1
        %v6269 = vsel %vm3207, %v6264, %v6268
        %v6270 = vshrl.u32 %v6165, 16
        %v6272 = vor.u32 %v6270, %v6268
        %v6274 = vshll.u32 %v6166, 16
        %v6276 = vrot.slane %v6274, 1
        %v6277 = vsel %vm3207, %v6272, %v6276
        %v6278 = vshrl.u32 %v6166, 16
        %v6280 = vor.u32 %v6278, %v6276
        %v6282 = vshll.u32 %v6167, 16
        %v6284 = vrot.slane %v6282, 1
        %v6285 = vsel %vm3207, %v6280, %v6284
        %v6286 = vshrl.u32 %v6167, 16
        %v6288 = vor.u32 %v6286, %v6284
        %v6290 = vshll.u32 %v6168, 16
        %v6292 = vrot.slane %v6290, 1
        %v6293 = vsel %vm3207, %v6288, %v6292
        %v6294 = vshrl.u32 %v6168, 16
        %v6296 = vor.u32 %v6294, %v6292
        %v6298 = vshll.u32 %v6169, 16
        %v6300 = vrot.slane %v6298, 1
        %v6301 = vsel %vm3207, %v6296, %v6300
        %v6334 = vunpack.c.l.b16 %v6071
        %v6335 = vunpack.c.l.b16 %v6072
        %v6336 = vunpack.c.l.b16 %v6073
        %v6337 = vunpack.c.l.b16 %v6074
        %v6338 = vunpack.c.l.b16 %v6075
        %v6339 = vunpack.c.l.b16 %v6076
        %v6340 = vunpack.c.l.b16 %v6077
        %v6341 = vunpack.c.l.b16 %v6078
        %v6342 = vunpack.c.l.b16 %v6079
        %v6343 = vunpack.c.l.b16 %v6080
        %v6344 = vunpack.c.l.b16 %v6081
        %v6345 = vunpack.c.l.b16 %v6082
        %v6346 = vunpack.c.l.b16 %v6083
        %v6347 = vunpack.c.l.b16 %v6084
        %v6348 = vunpack.c.l.b16 %v6085
        %v6349 = vunpack.c.l.b16 %v6086
        %v6350 = vpack.c.b16 %v6335, %v6334
        %v6351 = vpack.c.b16 %v6337, %v6336
        %v6352 = vpack.c.b16 %v6339, %v6338
        %v6353 = vpack.c.b16 %v6341, %v6340
        %v6354 = vpack.c.b16 %v6343, %v6342
        %v6355 = vpack.c.b16 %v6345, %v6344
        %v6356 = vpack.c.b16 %v6347, %v6346
        %v6357 = vpack.c.b16 %v6349, %v6348
        %6366 = vmatprep.subr.bf16.mxu0 0
        %6367 = vmatpush1.bf16.msra.mxu0 %v6357
        %6368 = vmatprep.subr.bf16.mxu0 0
        %6369 = vmatpush1.bf16.msra.mxu0 %v6356
        %6370 = vmatprep.subr.bf16.mxu0 0
        %6371 = vmatpush1.bf16.msra.mxu0 %v6355
        %6372 = vmatprep.subr.bf16.mxu0 0
        %6373 = vmatpush1.bf16.msra.mxu0 %v6354
        %6374 = vmatprep.subr.bf16.mxu0 0
        %6375 = vmatpush1.bf16.msra.mxu0 %v6353
        %6376 = vmatprep.subr.bf16.mxu0 0
        %6377 = vmatpush1.bf16.msra.mxu0 %v6352
        %6378 = vmatprep.subr.bf16.mxu0 0
        %6379 = vmatpush1.bf16.msra.mxu0 %v6351
        %6380 = vmatprep.subr.bf16.mxu0 0
        %6381 = vmatpush1.bf16.msra.mxu0 %v6350
        %6382 = vmatprep.subr.bf16.mxu0 0
        %6383 = vmatpush2.bf16.msra.mxu0 0
        %6384 = vmatprep.subr.bf16.mxu0 0
        %6385 = vmatpush2.bf16.msra.mxu0 0
        %6386 = vmatprep.subr.bf16.mxu0 0
        %6387 = vmatpush2.bf16.msra.mxu0 0
        %6388 = vmatprep.subr.bf16.mxu0 0
        %6389 = vmatpush2.bf16.msra.mxu0 0
        %6390 = vmatprep.subr.bf16.mxu0 0
        %6391 = vmatpush2.bf16.msra.mxu0 0
        %6392 = vmatprep.subr.bf16.mxu0 0
        %6393 = vmatpush2.bf16.msra.mxu0 0
        %6394 = vmatprep.subr.bf16.mxu0 0
        %6395 = vmatpush2.bf16.msra.mxu0 0
        %6396 = vmatprep.subr.bf16.mxu0 0
        %6397 = vmatpush2.bf16.msra.mxu0 0
        %6398 = vmatprep.mubr.bf16.mxu0 0
        %6399 = vmatmul.mubr.bf16.gmra.mxu0 %v6181
        %v6400 = vpop.f32.mrf.mxu0
        %v6401 = vadd.f32 0.0, %v6400
        %v6402 = vpop.f32.mrf.mxu0
        %v6403 = vpop.f32.mrf.mxu0
        %v6404 = vadd.f32 0.0, %v6403
        %v6405 = vpop.f32.mrf.mxu0
        %6406 = vmatprep.mubr.bf16.mxu0 0
        %6407 = vmatmul.mubr.bf16.gmra.mxu0 %v6189
        %v6408 = vpop.f32.mrf.mxu0
        %v6409 = vadd.f32 0.0, %v6408
        %v6410 = vpop.f32.mrf.mxu0
        %v6411 = vpop.f32.mrf.mxu0
        %v6412 = vadd.f32 0.0, %v6411
        %v6413 = vpop.f32.mrf.mxu0
        %6414 = vmatprep.mubr.bf16.mxu0 0
        %6415 = vmatmul.mubr.bf16.gmra.mxu0 %v6197
        %v6416 = vpop.f32.mrf.mxu0
        %v6417 = vadd.f32 0.0, %v6416
        %v6418 = vpop.f32.mrf.mxu0
        %v6419 = vpop.f32.mrf.mxu0
        %v6420 = vadd.f32 0.0, %v6419
        %v6421 = vpop.f32.mrf.mxu0
        %6422 = vmatprep.mubr.bf16.mxu0 0
        %6423 = vmatmul.mubr.bf16.gmra.mxu0 %v6205
        %v6424 = vpop.f32.mrf.mxu0
        %v6425 = vadd.f32 0.0, %v6424
        %v6426 = vpop.f32.mrf.mxu0
        %v6427 = vpop.f32.mrf.mxu0
        %v6428 = vadd.f32 0.0, %v6427
        %v6429 = vpop.f32.mrf.mxu0
        %6430 = vmatprep.mubr.bf16.mxu0 0
        %6431 = vmatmul.mubr.bf16.gmra.mxu0 %v6213
        %v6432 = vpop.f32.mrf.mxu0
        %v6433 = vadd.f32 0.0, %v6432
        %v6434 = vpop.f32.mrf.mxu0
        %v6435 = vpop.f32.mrf.mxu0
        %v6436 = vadd.f32 0.0, %v6435
        %v6437 = vpop.f32.mrf.mxu0
        %6438 = vmatprep.mubr.bf16.mxu0 0
        %6439 = vmatmul.mubr.bf16.gmra.mxu0 %v6221
        %v6440 = vpop.f32.mrf.mxu0
        %v6441 = vadd.f32 0.0, %v6440
        %v6442 = vpop.f32.mrf.mxu0
        %v6443 = vpop.f32.mrf.mxu0
        %v6444 = vadd.f32 0.0, %v6443
        %v6445 = vpop.f32.mrf.mxu0
        %6446 = vmatprep.mubr.bf16.mxu0 0
        %6447 = vmatmul.mubr.bf16.gmra.mxu0 %v6229
        %v6448 = vpop.f32.mrf.mxu0
        %v6449 = vadd.f32 0.0, %v6448
        %v6450 = vpop.f32.mrf.mxu0
        %v6451 = vpop.f32.mrf.mxu0
        %v6452 = vadd.f32 0.0, %v6451
        %v6453 = vpop.f32.mrf.mxu0
        %6454 = vmatprep.mubr.bf16.mxu0 0
        %6455 = vmatmul.mubr.bf16.gmra.mxu0 %v6237
        %v6456 = vpop.f32.mrf.mxu0
        %v6457 = vadd.f32 0.0, %v6456
        %v6458 = vpop.f32.mrf.mxu0
        %v6459 = vpop.f32.mrf.mxu0
        %v6460 = vadd.f32 0.0, %v6459
        %v6461 = vpop.f32.mrf.mxu0
        %6462 = vmatprep.mubr.bf16.mxu0 0
        %6463 = vmatmul.mubr.bf16.gmra.mxu0 %v6245
        %v6464 = vpop.f32.mrf.mxu0
        %v6465 = vadd.f32 0.0, %v6464
        %v6466 = vpop.f32.mrf.mxu0
        %v6467 = vpop.f32.mrf.mxu0
        %v6468 = vadd.f32 0.0, %v6467
        %v6469 = vpop.f32.mrf.mxu0
        %6470 = vmatprep.mubr.bf16.mxu0 0
        %6471 = vmatmul.mubr.bf16.gmra.mxu0 %v6253
        %v6472 = vpop.f32.mrf.mxu0
        %v6473 = vadd.f32 0.0, %v6472
        %v6474 = vpop.f32.mrf.mxu0
        %v6475 = vpop.f32.mrf.mxu0
        %v6476 = vadd.f32 0.0, %v6475
        %v6477 = vpop.f32.mrf.mxu0
        %6478 = vmatprep.mubr.bf16.mxu0 0
        %6479 = vmatmul.mubr.bf16.gmra.mxu0 %v6261
        %v6480 = vpop.f32.mrf.mxu0
        %v6481 = vadd.f32 0.0, %v6480
        %v6482 = vpop.f32.mrf.mxu0
        %v6483 = vpop.f32.mrf.mxu0
        %v6484 = vadd.f32 0.0, %v6483
        %v6485 = vpop.f32.mrf.mxu0
        %6486 = vmatprep.mubr.bf16.mxu0 0
        %6487 = vmatmul.mubr.bf16.gmra.mxu0 %v6269
        %v6488 = vpop.f32.mrf.mxu0
        %v6489 = vadd.f32 0.0, %v6488
        %v6490 = vpop.f32.mrf.mxu0
        %v6491 = vpop.f32.mrf.mxu0
        %v6492 = vadd.f32 0.0, %v6491
        %v6493 = vpop.f32.mrf.mxu0
        %6494 = vmatprep.mubr.bf16.mxu0 0
        %6495 = vmatmul.mubr.bf16.gmra.mxu0 %v6277
        %v6496 = vpop.f32.mrf.mxu0
        %v6497 = vadd.f32 0.0, %v6496
        %v6498 = vpop.f32.mrf.mxu0
        %v6499 = vpop.f32.mrf.mxu0
        %v6500 = vadd.f32 0.0, %v6499
        %v6501 = vpop.f32.mrf.mxu0
        %6502 = vmatprep.mubr.bf16.mxu0 0
        %6503 = vmatmul.mubr.bf16.gmra.mxu0 %v6285
        %v6504 = vpop.f32.mrf.mxu0
        %v6505 = vadd.f32 0.0, %v6504
        %v6506 = vpop.f32.mrf.mxu0
        %v6507 = vpop.f32.mrf.mxu0
        %v6508 = vadd.f32 0.0, %v6507
        %v6509 = vpop.f32.mrf.mxu0
        %6510 = vmatprep.mubr.bf16.mxu0 0
        %6511 = vmatmul.mubr.bf16.gmra.mxu0 %v6293
        %v6512 = vpop.f32.mrf.mxu0
        %v6513 = vadd.f32 0.0, %v6512
        %v6514 = vpop.f32.mrf.mxu0
        %v6515 = vpop.f32.mrf.mxu0
        %v6516 = vadd.f32 0.0, %v6515
        %v6517 = vpop.f32.mrf.mxu0
        %6518 = vmatprep.mubr.bf16.mxu0 0
        %6519 = vmatmul.mubr.bf16.gmra.mxu0 %v6301
        %v6520 = vpop.f32.mrf.mxu0
        %v6521 = vadd.f32 0.0, %v6520
        %v6522 = vpop.f32.mrf.mxu0
        %v6523 = vpop.f32.mrf.mxu0
        %v6524 = vadd.f32 0.0, %v6523
        %v6525 = vpop.f32.mrf.mxu0
        %6526 = vdwg.mxu0
        %v6527 = vadd.f32 %v5973, %v6401
        %v6528 = vadd.f32 %v5974, %v6404
        %v6529 = vadd.f32 %v5975, %v6409
        %v6530 = vadd.f32 %v5976, %v6412
        %v6531 = vadd.f32 %v5977, %v6417
        %v6532 = vadd.f32 %v5978, %v6420
        %v6533 = vadd.f32 %v5979, %v6425
        %v6534 = vadd.f32 %v5980, %v6428
        %v6535 = vadd.f32 %v5981, %v6433
        %v6536 = vadd.f32 %v5982, %v6436
        %v6537 = vadd.f32 %v5983, %v6441
        %v6538 = vadd.f32 %v5984, %v6444
        %v6539 = vadd.f32 %v5985, %v6449
        %v6540 = vadd.f32 %v5986, %v6452
        %v6541 = vadd.f32 %v5987, %v6457
        %v6542 = vadd.f32 %v5988, %v6460
        %v6543 = vadd.f32 %v5989, %v6465
        %v6544 = vadd.f32 %v5990, %v6468
        %v6545 = vadd.f32 %v5991, %v6473
        %v6546 = vadd.f32 %v5992, %v6476
        %v6547 = vadd.f32 %v5993, %v6481
        %v6548 = vadd.f32 %v5994, %v6484
        %v6549 = vadd.f32 %v5995, %v6489
        %v6550 = vadd.f32 %v5996, %v6492
        %v6551 = vadd.f32 %v5997, %v6497
        %v6552 = vadd.f32 %v5998, %v6500
        %v6553 = vadd.f32 %v5999, %v6505
        %v6554 = vadd.f32 %v6000, %v6508
        %v6555 = vadd.f32 %v6001, %v6513
        %v6556 = vadd.f32 %v6002, %v6516
        %v6557 = vadd.f32 %v6003, %v6521
        %v6558 = vadd.f32 %v6004, %v6524
        %v6559 = vld [vmem:[%s4] sm:$0x1]
        %v6561 = vlaneseq
        %v6562 = vshrl.u32 %v6561, 7
        %v6563 = vsub.s32 0, %v6562
        %v6564 = vrot.slane %v6559, %v6563
        %v6566 = vadd.f32 %v6527, %v6564
        %v6567 = vadd.f32 %v6528, %v6564
        %v6568 = vadd.f32 %v6529, %v6564
        %v6569 = vadd.f32 %v6530, %v6564
        %v6570 = vadd.f32 %v6531, %v6564
        %v6571 = vadd.f32 %v6532, %v6564
        %v6572 = vadd.f32 %v6533, %v6564
        %v6573 = vadd.f32 %v6534, %v6564
        %v6574 = vadd.f32 %v6535, %v6564
        %v6575 = vadd.f32 %v6536, %v6564
        %v6576 = vadd.f32 %v6537, %v6564
        %v6577 = vadd.f32 %v6538, %v6564
        %v6578 = vadd.f32 %v6539, %v6564
        %v6579 = vadd.f32 %v6540, %v6564
        %v6580 = vadd.f32 %v6541, %v6564
        %v6581 = vadd.f32 %v6542, %v6564
        %v6582 = vadd.f32 %v6543, %v6564
        %v6583 = vadd.f32 %v6544, %v6564
        %v6584 = vadd.f32 %v6545, %v6564
        %v6585 = vadd.f32 %v6546, %v6564
        %v6586 = vadd.f32 %v6547, %v6564
        %v6587 = vadd.f32 %v6548, %v6564
        %v6588 = vadd.f32 %v6549, %v6564
        %v6589 = vadd.f32 %v6550, %v6564
        %v6590 = vadd.f32 %v6551, %v6564
        %v6591 = vadd.f32 %v6552, %v6564
        %v6592 = vadd.f32 %v6553, %v6564
        %v6593 = vadd.f32 %v6554, %v6564
        %v6594 = vadd.f32 %v6555, %v6564
        %v6595 = vadd.f32 %v6556, %v6564
        %v6596 = vadd.f32 %v6557, %v6564
        %v6597 = vadd.f32 %v6558, %v6564
        %v6598 = vmax.f32 %v6566, 0.0
        %v6599 = vmax.f32 %v6567, 0.0
        %v6600 = vmax.f32 %v6568, 0.0
        %v6601 = vmax.f32 %v6569, 0.0
        %v6602 = vmax.f32 %v6570, 0.0
        %v6603 = vmax.f32 %v6571, 0.0
        %v6604 = vmax.f32 %v6572, 0.0
        %v6605 = vmax.f32 %v6573, 0.0
        %v6606 = vmax.f32 %v6574, 0.0
        %v6607 = vmax.f32 %v6575, 0.0
        %v6608 = vmax.f32 %v6576, 0.0
        %v6609 = vmax.f32 %v6577, 0.0
        %v6610 = vmax.f32 %v6578, 0.0
        %v6611 = vmax.f32 %v6579, 0.0
        %v6612 = vmax.f32 %v6580, 0.0
        %v6613 = vmax.f32 %v6581, 0.0
        %v6614 = vmax.f32 %v6582, 0.0
        %v6615 = vmax.f32 %v6583, 0.0
        %v6616 = vmax.f32 %v6584, 0.0
        %v6617 = vmax.f32 %v6585, 0.0
        %v6618 = vmax.f32 %v6586, 0.0
        %v6619 = vmax.f32 %v6587, 0.0
        %v6620 = vmax.f32 %v6588, 0.0
        %v6621 = vmax.f32 %v6589, 0.0
        %v6622 = vmax.f32 %v6590, 0.0
        %v6623 = vmax.f32 %v6591, 0.0
        %v6624 = vmax.f32 %v6592, 0.0
        %v6625 = vmax.f32 %v6593, 0.0
        %v6626 = vmax.f32 %v6594, 0.0
        %v6627 = vmax.f32 %v6595, 0.0
        %v6628 = vmax.f32 %v6596, 0.0
        %v6629 = vmax.f32 %v6597, 0.0
        %v6630 = vpack.c.bf16 %v6599, %v6598
        %v6631 = vpack.c.bf16 %v6601, %v6600
        %v6632 = vpack.c.bf16 %v6603, %v6602
        %v6633 = vpack.c.bf16 %v6605, %v6604
        %v6634 = vpack.c.bf16 %v6607, %v6606
        %v6635 = vpack.c.bf16 %v6609, %v6608
        %v6636 = vpack.c.bf16 %v6611, %v6610
        %v6637 = vpack.c.bf16 %v6613, %v6612
        %v6638 = vpack.c.bf16 %v6615, %v6614
        %v6639 = vpack.c.bf16 %v6617, %v6616
        %v6640 = vpack.c.bf16 %v6619, %v6618
        %v6641 = vpack.c.bf16 %v6621, %v6620
        %v6642 = vpack.c.bf16 %v6623, %v6622
        %v6643 = vpack.c.bf16 %v6625, %v6624
        %v6644 = vpack.c.bf16 %v6627, %v6626
        %v6645 = vpack.c.bf16 %v6629, %v6628
        %v6646 = vld [vmem:[%s5] sm:$0xf]
        %v6647 = vld [vmem:[%s5 + $0x4] sm:$0xf]
        %v6648 = vld [vmem:[%s5 + $0x8] sm:$0xf]
        %v6649 = vld [vmem:[%s5 + $0xc] sm:$0xf]
        %v6650 = vld [vmem:[%s5 + $0x10] sm:$0xf]
        %v6651 = vld [vmem:[%s5 + $0x14] sm:$0xf]
        %v6652 = vld [vmem:[%s5 + $0x18] sm:$0xf]
        %v6653 = vld [vmem:[%s5 + $0x1c] sm:$0xf]
        %v6654 = vld [vmem:[%s5 + $0x20] sm:$0xf]
        %v6655 = vld [vmem:[%s5 + $0x24] sm:$0xf]
        %v6656 = vld [vmem:[%s5 + $0x28] sm:$0xf]
        %v6657 = vld [vmem:[%s5 + $0x2c] sm:$0xf]
        %v6658 = vld [vmem:[%s5 + $0x30] sm:$0xf]
        %v6659 = vld [vmem:[%s5 + $0x34] sm:$0xf]
        %v6660 = vld [vmem:[%s5 + $0x38] sm:$0xf]
        %v6661 = vld [vmem:[%s5 + $0x3c] sm:$0xf]
        %v6662 = vld [vmem:[%s6] sm:$0x1]
        %v6664 = vlaneseq
        %v6665 = vshrl.u32 %v6664, 7
        %v6666 = vsub.s32 0, %v6665
        %v6667 = vrot.slane %v6662, %v6666
        %v6685 = vunpack.c.l.b16 %v6646
        %v6686 = vunpack.c.l.b16 %v6647
        %v6687 = vunpack.c.l.b16 %v6648
        %v6688 = vunpack.c.l.b16 %v6649
        %v6689 = vunpack.c.l.b16 %v6650
        %v6690 = vunpack.c.l.b16 %v6651
        %v6691 = vunpack.c.l.b16 %v6652
        %v6692 = vunpack.c.l.b16 %v6653
        %v6693 = vunpack.c.l.b16 %v6654
        %v6694 = vunpack.c.l.b16 %v6655
        %v6695 = vunpack.c.l.b16 %v6656
        %v6696 = vunpack.c.l.b16 %v6657
        %v6697 = vunpack.c.l.b16 %v6658
        %v6698 = vunpack.c.l.b16 %v6659
        %v6699 = vunpack.c.l.b16 %v6660
        %v6700 = vunpack.c.l.b16 %v6661
        %v6701 = vpack.c.b16 %v6686, %v6685
        %v6702 = vpack.c.b16 %v6688, %v6687
        %v6703 = vpack.c.b16 %v6690, %v6689
        %v6704 = vpack.c.b16 %v6692, %v6691
        %v6705 = vpack.c.b16 %v6694, %v6693
        %v6706 = vpack.c.b16 %v6696, %v6695
        %v6707 = vpack.c.b16 %v6698, %v6697
        %v6708 = vpack.c.b16 %v6700, %v6699
        %6717 = vmatprep.subr.bf16.mxu0 0
        %6718 = vmatpush1.bf16.msra.mxu0 %v6708
        %6719 = vmatprep.subr.bf16.mxu0 0
        %6720 = vmatpush1.bf16.msra.mxu0 %v6707
        %6721 = vmatprep.subr.bf16.mxu0 0
        %6722 = vmatpush1.bf16.msra.mxu0 %v6706
        %6723 = vmatprep.subr.bf16.mxu0 0
        %6724 = vmatpush1.bf16.msra.mxu0 %v6705
        %6725 = vmatprep.subr.bf16.mxu0 0
        %6726 = vmatpush1.bf16.msra.mxu0 %v6704
        %6727 = vmatprep.subr.bf16.mxu0 0
        %6728 = vmatpush1.bf16.msra.mxu0 %v6703
        %6729 = vmatprep.subr.bf16.mxu0 0
        %6730 = vmatpush1.bf16.msra.mxu0 %v6702
        %6731 = vmatprep.subr.bf16.mxu0 0
        %6732 = vmatpush1.bf16.msra.mxu0 %v6701
        %6733 = vmatprep.subr.bf16.mxu0 0
        %6734 = vmatpush2.bf16.msra.mxu0 0
        %6735 = vmatprep.subr.bf16.mxu0 0
        %6736 = vmatpush2.bf16.msra.mxu0 0
        %6737 = vmatprep.subr.bf16.mxu0 0
        %6738 = vmatpush2.bf16.msra.mxu0 0
        %6739 = vmatprep.subr.bf16.mxu0 0
        %6740 = vmatpush2.bf16.msra.mxu0 0
        %6741 = vmatprep.subr.bf16.mxu0 0
        %6742 = vmatpush2.bf16.msra.mxu0 0
        %6743 = vmatprep.subr.bf16.mxu0 0
        %6744 = vmatpush2.bf16.msra.mxu0 0
        %6745 = vmatprep.subr.bf16.mxu0 0
        %6746 = vmatpush2.bf16.msra.mxu0 0
        %6747 = vmatprep.subr.bf16.mxu0 0
        %6748 = vmatpush2.bf16.msra.mxu0 0
        %6749 = vmatprep.mubr.bf16.mxu0 0
        %6750 = vmatmul.mubr.bf16.gmra.mxu0 %v6630
        %v6751 = vpop.f32.mrf.mxu0
        %v6752 = vadd.f32 %v6667, %v6751
        %v6753 = vpop.f32.mrf.mxu0
        %v6754 = vpop.f32.mrf.mxu0
        %v6755 = vadd.f32 %v6667, %v6754
        %v6756 = vpop.f32.mrf.mxu0
        %6757 = vmatprep.mubr.bf16.mxu0 0
        %6758 = vmatmul.mubr.bf16.gmra.mxu0 %v6631
        %v6759 = vpop.f32.mrf.mxu0
        %v6760 = vadd.f32 %v6667, %v6759
        %v6761 = vpop.f32.mrf.mxu0
        %v6762 = vpop.f32.mrf.mxu0
        %v6763 = vadd.f32 %v6667, %v6762
        %v6764 = vpop.f32.mrf.mxu0
        %6765 = vmatprep.mubr.bf16.mxu0 0
        %6766 = vmatmul.mubr.bf16.gmra.mxu0 %v6632
        %v6767 = vpop.f32.mrf.mxu0
        %v6768 = vadd.f32 %v6667, %v6767
        %v6769 = vpop.f32.mrf.mxu0
        %v6770 = vpop.f32.mrf.mxu0
        %v6771 = vadd.f32 %v6667, %v6770
        %v6772 = vpop.f32.mrf.mxu0
        %6773 = vmatprep.mubr.bf16.mxu0 0
        %6774 = vmatmul.mubr.bf16.gmra.mxu0 %v6633
        %v6775 = vpop.f32.mrf.mxu0
        %v6776 = vadd.f32 %v6667, %v6775
        %v6777 = vpop.f32.mrf.mxu0
        %v6778 = vpop.f32.mrf.mxu0
        %v6779 = vadd.f32 %v6667, %v6778
        %v6780 = vpop.f32.mrf.mxu0
        %6781 = vmatprep.mubr.bf16.mxu0 0
        %6782 = vmatmul.mubr.bf16.gmra.mxu0 %v6634
        %v6783 = vpop.f32.mrf.mxu0
        %v6784 = vadd.f32 %v6667, %v6783
        %v6785 = vpop.f32.mrf.mxu0
        %v6786 = vpop.f32.mrf.mxu0
        %v6787 = vadd.f32 %v6667, %v6786
        %v6788 = vpop.f32.mrf.mxu0
        %6789 = vmatprep.mubr.bf16.mxu0 0
        %6790 = vmatmul.mubr.bf16.gmra.mxu0 %v6635
        %v6791 = vpop.f32.mrf.mxu0
        %v6792 = vadd.f32 %v6667, %v6791
        %v6793 = vpop.f32.mrf.mxu0
        %v6794 = vpop.f32.mrf.mxu0
        %v6795 = vadd.f32 %v6667, %v6794
        %v6796 = vpop.f32.mrf.mxu0
        %6797 = vmatprep.mubr.bf16.mxu0 0
        %6798 = vmatmul.mubr.bf16.gmra.mxu0 %v6636
        %v6799 = vpop.f32.mrf.mxu0
        %v6800 = vadd.f32 %v6667, %v6799
        %v6801 = vpop.f32.mrf.mxu0
        %v6802 = vpop.f32.mrf.mxu0
        %v6803 = vadd.f32 %v6667, %v6802
        %v6804 = vpop.f32.mrf.mxu0
        %6805 = vmatprep.mubr.bf16.mxu0 0
        %6806 = vmatmul.mubr.bf16.gmra.mxu0 %v6637
        %v6807 = vpop.f32.mrf.mxu0
        %v6808 = vadd.f32 %v6667, %v6807
        %v6809 = vpop.f32.mrf.mxu0
        %v6810 = vpop.f32.mrf.mxu0
        %v6811 = vadd.f32 %v6667, %v6810
        %v6812 = vpop.f32.mrf.mxu0
        %6813 = vmatprep.mubr.bf16.mxu0 0
        %6814 = vmatmul.mubr.bf16.gmra.mxu0 %v6638
        %v6815 = vpop.f32.mrf.mxu0
        %v6816 = vadd.f32 %v6667, %v6815
        %v6817 = vpop.f32.mrf.mxu0
        %v6818 = vpop.f32.mrf.mxu0
        %v6819 = vadd.f32 %v6667, %v6818
        %v6820 = vpop.f32.mrf.mxu0
        %6821 = vmatprep.mubr.bf16.mxu0 0
        %6822 = vmatmul.mubr.bf16.gmra.mxu0 %v6639
        %v6823 = vpop.f32.mrf.mxu0
        %v6824 = vadd.f32 %v6667, %v6823
        %v6825 = vpop.f32.mrf.mxu0
        %v6826 = vpop.f32.mrf.mxu0
        %v6827 = vadd.f32 %v6667, %v6826
        %v6828 = vpop.f32.mrf.mxu0
        %6829 = vmatprep.mubr.bf16.mxu0 0
        %6830 = vmatmul.mubr.bf16.gmra.mxu0 %v6640
        %v6831 = vpop.f32.mrf.mxu0
        %v6832 = vadd.f32 %v6667, %v6831
        %v6833 = vpop.f32.mrf.mxu0
        %v6834 = vpop.f32.mrf.mxu0
        %v6835 = vadd.f32 %v6667, %v6834
        %v6836 = vpop.f32.mrf.mxu0
        %6837 = vmatprep.mubr.bf16.mxu0 0
        %6838 = vmatmul.mubr.bf16.gmra.mxu0 %v6641
        %v6839 = vpop.f32.mrf.mxu0
        %v6840 = vadd.f32 %v6667, %v6839
        %v6841 = vpop.f32.mrf.mxu0
        %v6842 = vpop.f32.mrf.mxu0
        %v6843 = vadd.f32 %v6667, %v6842
        %v6844 = vpop.f32.mrf.mxu0
        %6845 = vmatprep.mubr.bf16.mxu0 0
        %6846 = vmatmul.mubr.bf16.gmra.mxu0 %v6642
        %v6847 = vpop.f32.mrf.mxu0
        %v6848 = vadd.f32 %v6667, %v6847
        %v6849 = vpop.f32.mrf.mxu0
        %v6850 = vpop.f32.mrf.mxu0
        %v6851 = vadd.f32 %v6667, %v6850
        %v6852 = vpop.f32.mrf.mxu0
        %6853 = vmatprep.mubr.bf16.mxu0 0
        %6854 = vmatmul.mubr.bf16.gmra.mxu0 %v6643
        %v6855 = vpop.f32.mrf.mxu0
        %v6856 = vadd.f32 %v6667, %v6855
        %v6857 = vpop.f32.mrf.mxu0
        %v6858 = vpop.f32.mrf.mxu0
        %v6859 = vadd.f32 %v6667, %v6858
        %v6860 = vpop.f32.mrf.mxu0
        %6861 = vmatprep.mubr.bf16.mxu0 0
        %6862 = vmatmul.mubr.bf16.gmra.mxu0 %v6644
        %v6863 = vpop.f32.mrf.mxu0
        %v6864 = vadd.f32 %v6667, %v6863
        %v6865 = vpop.f32.mrf.mxu0
        %v6866 = vpop.f32.mrf.mxu0
        %v6867 = vadd.f32 %v6667, %v6866
        %v6868 = vpop.f32.mrf.mxu0
        %6869 = vmatprep.mubr.bf16.mxu0 0
        %6870 = vmatmul.mubr.bf16.gmra.mxu0 %v6645
        %v6871 = vpop.f32.mrf.mxu0
        %v6872 = vadd.f32 %v6667, %v6871
        %v6873 = vpop.f32.mrf.mxu0
        %v6874 = vpop.f32.mrf.mxu0
        %v6875 = vadd.f32 %v6667, %v6874
        %v6876 = vpop.f32.mrf.mxu0
        %6877 = vdwg.mxu0
        %v6878 = vld [vmem:[%s276] sm:$0xff]
        %v6879 = vld [vmem:[%s276 + $0x8] sm:$0xff]
        %v6880 = vld [vmem:[%s276 + $0x10] sm:$0xff]
        %v6881 = vld [vmem:[%s276 + $0x18] sm:$0xff]
        %v6882 = vld [vmem:[%s276 + $0x20] sm:$0xff]
        %v6883 = vld [vmem:[%s276 + $0x28] sm:$0xff]
        %v6884 = vld [vmem:[%s276 + $0x30] sm:$0xff]
        %v6885 = vld [vmem:[%s276 + $0x38] sm:$0xff]
        %v6886 = vld [vmem:[%s276 + $0x40] sm:$0xff]
        %v6887 = vld [vmem:[%s276 + $0x48] sm:$0xff]
        %v6888 = vld [vmem:[%s276 + $0x50] sm:$0xff]
        %v6889 = vld [vmem:[%s276 + $0x58] sm:$0xff]
        %v6890 = vld [vmem:[%s276 + $0x60] sm:$0xff]
        %v6891 = vld [vmem:[%s276 + $0x68] sm:$0xff]
        %v6892 = vld [vmem:[%s276 + $0x70] sm:$0xff]
        %v6893 = vld [vmem:[%s276 + $0x78] sm:$0xff]
        %v6894 = vld [vmem:[%s276 + $0x80] sm:$0xff]
        %v6895 = vld [vmem:[%s276 + $0x88] sm:$0xff]
        %v6896 = vld [vmem:[%s276 + $0x90] sm:$0xff]
        %v6897 = vld [vmem:[%s276 + $0x98] sm:$0xff]
        %v6898 = vld [vmem:[%s276 + $0xa0] sm:$0xff]
        %v6899 = vld [vmem:[%s276 + $0xa8] sm:$0xff]
        %v6900 = vld [vmem:[%s276 + $0xb0] sm:$0xff]
        %v6901 = vld [vmem:[%s276 + $0xb8] sm:$0xff]
        %v6902 = vld [vmem:[%s276 + $0xc0] sm:$0xff]
        %v6903 = vld [vmem:[%s276 + $0xc8] sm:$0xff]
        %v6904 = vld [vmem:[%s276 + $0xd0] sm:$0xff]
        %v6905 = vld [vmem:[%s276 + $0xd8] sm:$0xff]
        %v6906 = vld [vmem:[%s276 + $0xe0] sm:$0xff]
        %v6907 = vld [vmem:[%s276 + $0xe8] sm:$0xff]
        %v6908 = vld [vmem:[%s276 + $0xf0] sm:$0xff]
        %v6909 = vld [vmem:[%s276 + $0xf8] sm:$0xff]
        %v6910 = vadd.f32 %v6752, %v6878
        %v6911 = vadd.f32 %v6755, %v6879
        %v6912 = vadd.f32 %v6760, %v6880
        %v6913 = vadd.f32 %v6763, %v6881
        %v6914 = vadd.f32 %v6768, %v6882
        %v6915 = vadd.f32 %v6771, %v6883
        %v6916 = vadd.f32 %v6776, %v6884
        %v6917 = vadd.f32 %v6779, %v6885
        %v6918 = vadd.f32 %v6784, %v6886
        %v6919 = vadd.f32 %v6787, %v6887
        %v6920 = vadd.f32 %v6792, %v6888
        %v6921 = vadd.f32 %v6795, %v6889
        %v6922 = vadd.f32 %v6800, %v6890
        %v6923 = vadd.f32 %v6803, %v6891
        %v6924 = vadd.f32 %v6808, %v6892
        %v6925 = vadd.f32 %v6811, %v6893
        %v6926 = vadd.f32 %v6816, %v6894
        %v6927 = vadd.f32 %v6819, %v6895
        %v6928 = vadd.f32 %v6824, %v6896
        %v6929 = vadd.f32 %v6827, %v6897
        %v6930 = vadd.f32 %v6832, %v6898
        %v6931 = vadd.f32 %v6835, %v6899
        %v6932 = vadd.f32 %v6840, %v6900
        %v6933 = vadd.f32 %v6843, %v6901
        %v6934 = vadd.f32 %v6848, %v6902
        %v6935 = vadd.f32 %v6851, %v6903
        %v6936 = vadd.f32 %v6856, %v6904
        %v6937 = vadd.f32 %v6859, %v6905
        %v6938 = vadd.f32 %v6864, %v6906
        %v6939 = vadd.f32 %v6867, %v6907
        %v6940 = vadd.f32 %v6872, %v6908
        %v6941 = vadd.f32 %v6875, %v6909
        %v6942 = vmax.f32 %v6910, 0.0
        %v6943 = vmax.f32 %v6911, 0.0
        %v6944 = vmax.f32 %v6912, 0.0
        %v6945 = vmax.f32 %v6913, 0.0
        %v6946 = vmax.f32 %v6914, 0.0
        %v6947 = vmax.f32 %v6915, 0.0
        %v6948 = vmax.f32 %v6916, 0.0
        %v6949 = vmax.f32 %v6917, 0.0
        %v6950 = vmax.f32 %v6918, 0.0
        %v6951 = vmax.f32 %v6919, 0.0
        %v6952 = vmax.f32 %v6920, 0.0
        %v6953 = vmax.f32 %v6921, 0.0
        %v6954 = vmax.f32 %v6922, 0.0
        %v6955 = vmax.f32 %v6923, 0.0
        %v6956 = vmax.f32 %v6924, 0.0
        %v6957 = vmax.f32 %v6925, 0.0
        %v6958 = vmax.f32 %v6926, 0.0
        %v6959 = vmax.f32 %v6927, 0.0
        %v6960 = vmax.f32 %v6928, 0.0
        %v6961 = vmax.f32 %v6929, 0.0
        %v6962 = vmax.f32 %v6930, 0.0
        %v6963 = vmax.f32 %v6931, 0.0
        %v6964 = vmax.f32 %v6932, 0.0
        %v6965 = vmax.f32 %v6933, 0.0
        %v6966 = vmax.f32 %v6934, 0.0
        %v6967 = vmax.f32 %v6935, 0.0
        %v6968 = vmax.f32 %v6936, 0.0
        %v6969 = vmax.f32 %v6937, 0.0
        %v6970 = vmax.f32 %v6938, 0.0
        %v6971 = vmax.f32 %v6939, 0.0
        %v6972 = vmax.f32 %v6940, 0.0
        %v6973 = vmax.f32 %v6941, 0.0
        %6974 = vst [vmem:[%s271] sm:$0xff] %v6942
        %6975 = vst [vmem:[%s271 + $0x8] sm:$0xff] %v6943
        %6976 = vst [vmem:[%s271 + $0x10] sm:$0xff] %v6944
        %6977 = vst [vmem:[%s271 + $0x18] sm:$0xff] %v6945
        %6978 = vst [vmem:[%s271 + $0x20] sm:$0xff] %v6946
        %6979 = vst [vmem:[%s271 + $0x28] sm:$0xff] %v6947
        %6980 = vst [vmem:[%s271 + $0x30] sm:$0xff] %v6948
        %6981 = vst [vmem:[%s271 + $0x38] sm:$0xff] %v6949
        %6982 = vst [vmem:[%s271 + $0x40] sm:$0xff] %v6950
        %6983 = vst [vmem:[%s271 + $0x48] sm:$0xff] %v6951
        %6984 = vst [vmem:[%s271 + $0x50] sm:$0xff] %v6952
        %6985 = vst [vmem:[%s271 + $0x58] sm:$0xff] %v6953
        %6986 = vst [vmem:[%s271 + $0x60] sm:$0xff] %v6954
        %6987 = vst [vmem:[%s271 + $0x68] sm:$0xff] %v6955
        %6988 = vst [vmem:[%s271 + $0x70] sm:$0xff] %v6956
        %6989 = vst [vmem:[%s271 + $0x78] sm:$0xff] %v6957
        %6990 = vst [vmem:[%s271 + $0x80] sm:$0xff] %v6958
        %6991 = vst [vmem:[%s271 + $0x88] sm:$0xff] %v6959
        %6992 = vst [vmem:[%s271 + $0x90] sm:$0xff] %v6960
        %6993 = vst [vmem:[%s271 + $0x98] sm:$0xff] %v6961
        %6994 = vst [vmem:[%s271 + $0xa0] sm:$0xff] %v6962
        %6995 = vst [vmem:[%s271 + $0xa8] sm:$0xff] %v6963
        %6996 = vst [vmem:[%s271 + $0xb0] sm:$0xff] %v6964
        %6997 = vst [vmem:[%s271 + $0xb8] sm:$0xff] %v6965
        %6998 = vst [vmem:[%s271 + $0xc0] sm:$0xff] %v6966
        %6999 = vst [vmem:[%s271 + $0xc8] sm:$0xff] %v6967
        %7000 = vst [vmem:[%s271 + $0xd0] sm:$0xff] %v6968
        %7001 = vst [vmem:[%s271 + $0xd8] sm:$0xff] %v6969
        %7002 = vst [vmem:[%s271 + $0xe0] sm:$0xff] %v6970
        %7003 = vst [vmem:[%s271 + $0xe8] sm:$0xff] %v6971
        %7004 = vst [vmem:[%s271 + $0xf0] sm:$0xff] %v6972
        %7005 = vst [vmem:[%s271 + $0xf8] sm:$0xff] %v6973
        %s7006 = sand.u32 %s181, 1
        %s7007 = scalar_lea.sflag [#allocation4], %s7006
        %s7008 = sand.u32 %s181, 1
        %s7009 = smul.addr %s7008, 256
        %s7010 = scalar_lea.vmem [#allocation3], %s7009
        // Predicated region
        $region49: #{trident_block_forward.1} parent=47 // pred_check
          %p7011 = pneg %p191
        $region50: #{trident_block_forward.1} parent=47 // pred_check_branch
          %7013 = sbr.rel (%p7011) target = $region52
        $region51: #{trident_block_forward.1} parent=47 // pred_region
          %s7015 = ssub.s32 4096, 4096
          %7016 = vsyncadd %s7007, %s7015
          %s7017 = smul.addr %s21, 32
          %s7018 = smul.addr %s7017, 128
          %s7019 = scalar_lea.hbm %s7, %s7018
          %s7020 = sshll.u32 %s7010, 4
          %s7021 = int_to_ptr.vmem [resolvable:$true] %s7020
          %7026 = dma.vmem_to_hbm [thread:$0]  %s7021, 4096, %s7019, %s7007, 128, 128, 8
        $region52: #{trident_block_forward.1} parent=47 // pred_fallthru
          _
      $region48: #{trident_block_forward.1} parent=5 // pred_fallthru
        _
      %p7027 = scmp.le.s32.totalorder 2, %s16
      // Predicated region
      $region53: #{trident_block_forward.1} parent=5 // pred_check
        %p7028 = pneg %p7027
      $region54: #{trident_block_forward.1} parent=5 // pred_check_branch
        %7030 = sbr.rel (%p7028) target = $region56
      $region55: #{trident_block_forward.1} parent=5 // pred_region
        %s7031 = ssub.s32 %s16, 2
        // Predicated region
        $region57: #{trident_block_forward.1} parent=55 // pred_check
          %p7032 = pneg %p197
        $region58: #{trident_block_forward.1} parent=55 // pred_check_branch
          %7034 = sbr.rel (%p7032) target = $region60
        $region59: #{trident_block_forward.1} parent=55 // pred_region
          %s7035 = sand.u32 %s182, 1
          %s7036 = scalar_lea.sflag [#allocation4], %s7035
          %s7037 = sand.u32 %s182, 1
          %s7038 = smul.addr %s7037, 256
          %s7039 = scalar_lea.vmem [#allocation3], %s7038
          %7040 = dma.done %s7036, 4096
        $region60: #{trident_block_forward.1} parent=55 // pred_fallthru
          _
      $region56: #{trident_block_forward.1} parent=5 // pred_fallthru
        _
    $region6: #{trident_block_forward.1} parent=1 // loop_footer
      %s20 = sadd.s32 1, %s16
    $region7: #{trident_block_forward.1} parent=1 // loop_footer_branch
      %15 = sbr.rel target = $region3
    $region8: #{trident_block_forward.1} parent=1 // loop_exit
      _
    %7041 = vsyncpa [#allocation4], 1
    %s7042 = scalar_lea.sflag [#allocation4], 1
    %7043 = vsyncpa %s7042, 1

</llo_original>
